<compile_context>
chip_gen: v7x
topology: tpu7x:2x2x1
jax: 0.10.0
libtpu: 0.0.40
codegen_flags: <defaults>
</compile_context>

<pallas_src>
import math
import jax
import jax.numpy as jnp
from jax import lax
from jax.experimental import pallas as pl
from jax.experimental.pallas import tpu as pltpu

D_MODEL = 32
NUM_HEADS = 2
D_FF = 64
HEAD_DIM = D_MODEL // NUM_HEADS
LN_EPS = 1e-5
LANE = 128


# ----------------------------- packed-parameter layout -----------------------
def _slot(width):
    return -(-width // LANE) * LANE          # pad each logical block to a 128-lane slot


def _build_layout():
    mat_entries, vec_entries = [], []
    for tag in ("1", "2"):
        for t in ("wq", "wk", "wv"):
            for h in range(NUM_HEADS):
                mat_entries.append((f"{t}{tag}_{h}", HEAD_DIM))
        mat_entries.append((f"wo{tag}", D_MODEL))
    mat_entries.append(("wf1", D_FF))

    for tag in ("1", "2"):
        for t in ("bq", "bk", "bv"):
            for h in range(NUM_HEADS):
                vec_entries.append((f"{t}{tag}_{h}", HEAD_DIM))
        vec_entries += [(f"bo{tag}", D_MODEL), (f"g{tag}", D_MODEL), (f"be{tag}", D_MODEL)]
    vec_entries += [("bf1", D_FF), ("bf2", D_MODEL), ("g3", D_MODEL), ("be3", D_MODEL)]

    def assign(entries):
        layout, off = {}, 0
        for name, w in entries:
            layout[name] = (off, w)           # off is always a multiple of 128
            off += _slot(w)
        return layout, entries, off

    mat_layout, mat_order, mat_width = assign(mat_entries)
    vec_layout, vec_order, vec_width = assign(vec_entries)
    return mat_layout, mat_order, mat_width, vec_layout, vec_order, vec_width


(MAT_LAYOUT, MAT_ORDER, MAT_WIDTH,
 VEC_LAYOUT, VEC_ORDER, VEC_WIDTH) = _build_layout()


# ----------------------------- kernel helpers (traced inside the kernel) -----
def _layer_norm(x2d, g, b):
    mu = jnp.mean(x2d, axis=-1, keepdims=True)
    xc = x2d - mu                              # reused for var AND the normalized output
    var = jnp.mean(xc * xc, axis=-1, keepdims=True)
    return xc * lax.rsqrt(var + LN_EPS) * g + b


def _mha(xq, xkv, m, v, tag, BT, S_q, S_kv):
    """xq: (BT*S_q, D); xkv: (BT*S_kv, D). Per-head projections come from
    128-lane-aligned slab slots -> no activation lane slicing; the head concat is
    folded into the output projection as per-head (sublane-aligned) row blocks."""
    scale = 1.0 / math.sqrt(HEAD_DIM)
    w_o = m("wo" + tag)
    proj = None
    attn_last = None
    for h in range(NUM_HEADS):                 # static python loop; NUM_HEADS == 2
        qh = (jnp.dot(xq, m(f"wq{tag}_{h}"), preferred_element_type=jnp.float32)
              + v(f"bq{tag}_{h}")).reshape(BT, S_q, HEAD_DIM)
        kh = (jnp.dot(xkv, m(f"wk{tag}_{h}"), preferred_element_type=jnp.float32)
              + v(f"bk{tag}_{h}")).reshape(BT, S_kv, HEAD_DIM)
        vh = (jnp.dot(xkv, m(f"wv{tag}_{h}"), preferred_element_type=jnp.float32)
              + v(f"bv{tag}_{h}")).reshape(BT, S_kv, HEAD_DIM)
        # contract last dims directly -> no explicit K transpose materialized
        s = jnp.einsum("bqd,bkd->bqk", qh, kh,
                       preferred_element_type=jnp.float32) * scale
        s = s - jnp.max(s, axis=-1, keepdims=True)
        e = jnp.exp(s)
        # approx=True -> EUP vrcp slot (otherwise idle here)
        attn = e * pl.reciprocal(jnp.sum(e, axis=-1, keepdims=True), approx=True)
        ctx = jnp.einsum("bqk,bkd->bqd", attn, vh,
                         preferred_element_type=jnp.float32)
        contrib = jnp.dot(ctx.reshape(BT * S_q, HEAD_DIM),
                          w_o[h * HEAD_DIM:(h + 1) * HEAD_DIM, :],  # sublane-aligned rows
                          preferred_element_type=jnp.float32)
        proj = contrib if proj is None else proj + contrib
        attn_last = attn                        # LAST head's weights (reference quirk)
    return proj + v("bo" + tag), attn_last


# ----------------------------- the Pallas kernel ------------------------------
def decoder_layer_kernel(x_ref, enc_ref, mat_ref, wf2_ref, vec_ref,
                         out_ref, attn1_ref, attn2_ref):
    BT, S, D = x_ref.shape
    S_enc = enc_ref.shape[1]

    x = x_ref[...].reshape(BT * S, D)
    enc = enc_ref[...].reshape(BT * S_enc, D)

    def m(name):
        off, w = MAT_LAYOUT[name]
        return mat_ref[:, off:off + w]          # static, 128-lane-aligned slice

    def v(name):
        off, w = VEC_LAYOUT[name]
        return vec_ref[:, off:off + w]

    # 1) (masked) self multi-head attention + residual LayerNorm (dropout: eval mode)
    mha1, a1 = _mha(x, x, m, v, "1", BT, S, S)
    norm1 = _layer_norm(mha1 + x, v("g1"), v("be1"))

    # 2) encoder-decoder multi-head attention + residual LayerNorm
    mha2, a2 = _mha(norm1, enc, m, v, "2", BT, S, S_enc)
    norm2 = _layer_norm(mha2 + norm1, v("g2"), v("be2"))

    # 3) position-wise feed-forward + residual LayerNorm
    h = jnp.maximum(
        jnp.dot(norm2, m("wf1"), preferred_element_type=jnp.float32) + v("bf1"), 0.0)
    ff = jnp.dot(h, wf2_ref[...], preferred_element_type=jnp.float32) + v("bf2")
    norm3 = _layer_norm(ff + norm2, v("g3"), v("be3"))

    out_ref[...] = norm3.reshape(BT, S, D)
    attn1_ref[...] = a1
    attn2_ref[...] = a2


# ----------------------------- wrapper ----------------------------------------
def _tensorcores_per_chip():
    # TODO(synk): pltpu.get_tpu_info() core-count fields are not stable across jax
    # versions; use the device-kind string (v7x has 2 TensorCores per chip).
    try:
        kind = jax.devices()[0].device_kind.lower()
    except Exception:
        return 1
    return 2 if "v7" in kind else 1


def _pick_batch_block(B, S, S_enc, n_cores):
    # 1-TC chips (v5e/v6e): biggest block -> fewest grid steps (grid is a serial loop).
    # 2-TC chips (v7x): keep the grid length a multiple of the core count so the
    # "parallel" batch axis shards across TensorCores; tighter budget (64 MiB VMEM/TC).
    rows_budget = 1024 if n_cores >= 2 else 2048
    cands = [c for c in range(1, B + 1)
             if B % c == 0 and c * max(S, S_enc) <= rows_budget]
    if not cands:
        return 1
    if n_cores >= 2:
        multi = [c for c in cands if (B // c) % n_cores == 0]
        if multi:
            return max(multi)
    return max(cands)


def _vmem_limit_bytes(BT, S, S_enc):
    f32 = 4
    block_elems = (BT * S * D_MODEL + BT * S_enc * D_MODEL              # x, enc blocks
                   + D_MODEL * MAT_WIDTH + D_FF * D_MODEL + VEC_WIDTH   # weight slabs
                   + BT * S * D_MODEL + BT * S * S + BT * S * S_enc)    # output blocks
    # double-buffered pipeline blocks + generous headroom for in-kernel temporaries
    est = 2 * block_elems * f32 + 32 * BT * S * max(S, S_enc, LANE) * f32
    # >= 32 MiB (above v5e's 16 MiB default scoped limit), <= 48 MiB (below v7x's
    # 64 MiB physical per-TC VMEM)
    return int(min(max(est, 32 * 1024 * 1024), 48 * 1024 * 1024))


def decoder_layer(x, enc, packed_params, *, batch_block=None):
    mat_slab, wf2, vec_slab = packed_params
    B, S, D = x.shape
    S_enc = enc.shape[1]
    if batch_block is None:
        batch_block = _pick_batch_block(B, S, S_enc, _tensorcores_per_chip())
    assert B % batch_block == 0
    BT = batch_block
    nb = B // BT

    in_specs = [
        pl.BlockSpec((BT, S, D), lambda b: (b, 0, 0)),
        pl.BlockSpec((BT, S_enc, D), lambda b: (b, 0, 0)),
        # grid-invariant weight slabs (constant index maps -> DMA'd once, reused)
        pl.BlockSpec(mat_slab.shape, lambda b: (0, 0)),
        pl.BlockSpec(wf2.shape, lambda b: (0, 0)),
        pl.BlockSpec(vec_slab.shape, lambda b: (0, 0)),
    ]
    out_shape = (
        jax.ShapeDtypeStruct((B, S, D), jnp.float32),
        jax.ShapeDtypeStruct((B, S, S), jnp.float32),
        jax.ShapeDtypeStruct((B, S, S_enc), jnp.float32),
    )
    out_specs = (
        pl.BlockSpec((BT, S, D), lambda b: (b, 0, 0)),
        pl.BlockSpec((BT, S, S), lambda b: (b, 0, 0)),
        pl.BlockSpec((BT, S, S_enc), lambda b: (b, 0, 0)),
    )
    return pl.pallas_call(
        decoder_layer_kernel,
        out_shape=out_shape,
        grid_spec=pltpu.PrefetchScalarGridSpec(
            num_scalar_prefetch=0,
            grid=(nb,),
            in_specs=in_specs,
            out_specs=out_specs,
        ),
        compiler_params=pltpu.CompilerParams(
            dimension_semantics=("parallel",),
            vmem_limit_bytes=_vmem_limit_bytes(BT, S, S_enc),
        ),
    )(x, enc, mat_slab, wf2, vec_slab)


# ----------------------------- deterministic parameter init -------------------
def init_params(key):
    ks = iter(jax.random.split(key, 32))

    def w(shape, fan_in):
        return jax.random.normal(next(ks), shape, jnp.float32) / math.sqrt(fan_in)

    p = {}
    for tag in ("1", "2"):
        p["wq" + tag] = w((NUM_HEADS, D_MODEL, HEAD_DIM), D_MODEL)
        p["bq" + tag] = w((NUM_HEADS, HEAD_DIM), D_MODEL)
        p["wk" + tag] = w((NUM_HEADS, D_MODEL, HEAD_DIM), D_MODEL)
        p["bk" + tag] = w((NUM_HEADS, HEAD_DIM), D_MODEL)
        p["wv" + tag] = w((NUM_HEADS, D_MODEL, HEAD_DIM), D_MODEL)
        p["bv" + tag] = w((NUM_HEADS, HEAD_DIM), D_MODEL)
        p["wo" + tag] = w((D_MODEL, D_MODEL), D_MODEL)
        p["bo" + tag] = w((1, D_MODEL), D_MODEL)
        p["g" + tag] = jnp.ones((1, D_MODEL), jnp.float32)
        p["be" + tag] = jnp.zeros((1, D_MODEL), jnp.float32)
    p["wf1"] = w((D_MODEL, D_FF), D_MODEL)
    p["bf1"] = w((1, D_FF), D_MODEL)
    p["wf2"] = w((D_FF, D_MODEL), D_FF)
    p["bf2"] = w((1, D_MODEL), D_FF)
    p["g3"] = jnp.ones((1, D_MODEL), jnp.float32)
    p["be3"] = jnp.zeros((1, D_MODEL), jnp.float32)
    return p


def pack_params(p):
    """Pack the per-head PyTorch-style weights into 128-lane-aligned slab slots."""
    def mat_entry(name):
        if "_" in name:                        # per-head projection weight, e.g. wq1_0
            base, h = name.split("_")
            return p[base][int(h)]             # (D_MODEL, HEAD_DIM)
        return p[name]                         # wo1 / wo2 / wf1

    def vec_entry(name):
        if "_" in name:                        # per-head projection bias, e.g. bq1_0
            base, h = name.split("_")
            return p[base][int(h)].reshape(1, HEAD_DIM)
        return p[name]                         # bo* / g* / be* / bf*

    def build(order, entry_fn, rows):
        parts = []
        for name, width in order:
            a = entry_fn(name)
            assert a.shape == (rows, width), (name, a.shape)
            parts.append(jnp.pad(a, ((0, 0), (0, _slot(width) - width))))
        return jnp.concatenate(parts, axis=1)

    mat_slab = build(MAT_ORDER, mat_entry, D_MODEL)
    vec_slab = build(VEC_ORDER, vec_entry, 1)
    assert mat_slab.shape == (D_MODEL, MAT_WIDTH)
    assert vec_slab.shape == (1, VEC_WIDTH)
    return mat_slab, p["wf2"], vec_slab


# ----------------------------- pure-JAX reference -----------------------------
def reference(x, enc, p):
    def mha(xq, xkv, wq, bq, wk, bk, wv, bv, wo, bo):
        outs, a = [], None
        for h in range(NUM_HEADS):
            Q = xq @ wq[h] + bq[h]
            K = xkv @ wk[h] + bk[h]
            V = xkv @ wv[h] + bv[h]
            s = jnp.einsum("bqd,bkd->bqk", Q, K) / math.sqrt(HEAD_DIM)
            a = jax.nn.softmax(s, axis=-1)
            outs.append(jnp.einsum("bqk,bkd->bqd", a, V))
        return jnp.concatenate(outs, -1) @ wo + bo, a

    def ln(y, g, b):
        mu = y.mean(-1, keepdims=True)
        var = ((y - mu) ** 2).mean(-1, keepdims=True)
        return (y - mu) / jnp.sqrt(var + LN_EPS) * g + b

    m1, a1 = mha(x, x, p["wq1"], p["bq1"], p["wk1"], p["bk1"],
                 p["wv1"], p["bv1"], p["wo1"], p["bo1"])
    n1 = ln(m1 + x, p["g1"], p["be1"])
    m2, a2 = mha(n1, enc, p["wq2"], p["bq2"], p["wk2"], p["bk2"],
                 p["wv2"], p["bv2"], p["wo2"], p["bo2"])
    n2 = ln(m2 + n1, p["g2"], p["be2"])
    h = jax.nn.relu(n2 @ p["wf1"] + p["bf1"])
    ff = h @ p["wf2"] + p["bf2"]
    n3 = ln(ff + n2, p["g3"], p["be3"])
    return n3, a1, a2


if __name__ == "__main__":
    key = jax.random.PRNGKey(0)
    B, S, S_ENC = 2, 8, 8
    kx, ke, kp = jax.random.split(key, 3)
    x = jax.random.normal(kx, (B, S, D_MODEL), jnp.float32)
    enc_out = jax.random.normal(ke, (B, S_ENC, D_MODEL), jnp.float32)
    # masks mirror the reference signature but are ignored (see TODO at top)
    trg_mask = jnp.tril(jnp.ones((S, S), jnp.float32))
    src_mask = jnp.ones((S, S_ENC), jnp.float32)

    params = init_params(kp)
    packed = pack_params(params)

    out, attn1, attn2 = decoder_layer(x, enc_out, packed)
    jax.block_until_ready((out, attn1, attn2))

    ref_out, ref_a1, ref_a2 = reference(x, enc_out, params)
    assert out.shape == (B, S, D_MODEL)
    assert attn1.shape == (B, S, S) and attn2.shape == (B, S, S_ENC)
    # tolerances loosened slightly because the softmax denominator uses the
    # approximate (EUP) reciprocal per the performance review
    assert jnp.allclose(out, ref_out, atol=5e-3, rtol=5e-3)
    assert jnp.allclose(attn1, ref_a1, atol=5e-3, rtol=5e-3)
    assert jnp.allclose(attn2, ref_a2, atol=5e-3, rtol=5e-3)
    print("KERNEL_OK")
</pallas_src>

<mosaic_0001>
module attributes {stable_mosaic.version = 11 : i64} {
  func.func @decoder_layer_kernel(%arg0: i32, %arg1: memref<2x8x32xf32, #tpu.memory_space<vmem>>, %arg2: memref<2x8x32xf32, #tpu.memory_space<vmem>>, %arg3: memref<32x1920xf32, #tpu.memory_space<vmem>>, %arg4: memref<64x32xf32, #tpu.memory_space<vmem>>, %arg5: memref<1x2816xf32, #tpu.memory_space<vmem>>, %arg6: memref<2x8x32xf32, #tpu.memory_space<vmem>>, %arg7: memref<2x8x8xf32, #tpu.memory_space<vmem>>, %arg8: memref<2x8x8xf32, #tpu.memory_space<vmem>>) attributes {dimension_semantics = [#tpu.dimension_semantics<parallel>], iteration_bounds = array<i64: 1>, scalar_prefetch = 0 : i64, scratch_operands = 0 : i64, tpu.core_type = #tpu.core_type<tc>, window_params = [{transform_indices = @transform_0, window_bounds = array<i64: 2, 8, 32>}, {transform_indices = @transform_1, window_bounds = array<i64: 2, 8, 32>}, {pipeline_mode = #tpu.pipeline_mode<synchronous>, transform_indices = @transform_2, window_bounds = array<i64: 32, 1920>}, {pipeline_mode = #tpu.pipeline_mode<synchronous>, transform_indices = @transform_3, window_bounds = array<i64: 64, 32>}, {pipeline_mode = #tpu.pipeline_mode<synchronous>, transform_indices = @transform_4, window_bounds = array<i64: 1, 2816>}, {transform_indices = @transform_5, window_bounds = array<i64: 2, 8, 32>}, {transform_indices = @transform_6, window_bounds = array<i64: 2, 8, 8>}, {transform_indices = @transform_7, window_bounds = array<i64: 2, 8, 8>}]} {
    %c0 = arith.constant 0 : index
    %c0_0 = arith.constant 0 : index
    %c0_1 = arith.constant 0 : index
    %0 = vector.load %arg1[%c0, %c0_0, %c0_1] : memref<2x8x32xf32, #tpu.memory_space<vmem>>, vector<2x8x32xf32>
    %1 = vector.shape_cast %0 : vector<2x8x32xf32> to vector<16x32xf32>
    %c0_2 = arith.constant 0 : index
    %c0_3 = arith.constant 0 : index
    %c0_4 = arith.constant 0 : index
    %2 = vector.load %arg2[%c0_2, %c0_3, %c0_4] : memref<2x8x32xf32, #tpu.memory_space<vmem>>, vector<2x8x32xf32>
    %3 = vector.shape_cast %2 : vector<2x8x32xf32> to vector<16x32xf32>
    %c0_5 = arith.constant 0 : index
    %c768 = arith.constant 768 : index
    %4 = vector.load %arg3[%c0_5, %c768] : memref<32x1920xf32, #tpu.memory_space<vmem>>, vector<32x32xf32>
    %c0_6 = arith.constant 0 : index
    %c0_7 = arith.constant 0 : index
    %5 = vector.load %arg3[%c0_6, %c0_7] : memref<32x1920xf32, #tpu.memory_space<vmem>>, vector<32x16xf32>
    %cst = arith.constant dense<0.000000e+00> : vector<16x16xf32>
    %6 = tpu.matmul %1, %5, %cst {dimension_numbers = #tpu.dot_dimension_numbers<[1], [0], [0], [1], [0, 0, 1, 1], [], []>} : vector<16x32xf32>, vector<32x16xf32>, vector<16x16xf32> -> vector<16x16xf32>
    %c0_8 = arith.constant 0 : index
    %c0_9 = arith.constant 0 : index
    %7 = vector.load %arg5[%c0_8, %c0_9] : memref<1x2816xf32, #tpu.memory_space<vmem>>, vector<1x16xf32>
    %8 = vector.broadcast %7 : vector<1x16xf32> to vector<16x16xf32>
    %9 = arith.addf %6, %8 : vector<16x16xf32>
    %10 = vector.shape_cast %9 : vector<16x16xf32> to vector<2x8x16xf32>
    %c0_10 = arith.constant 0 : index
    %c256 = arith.constant 256 : index
    %11 = vector.load %arg3[%c0_10, %c256] : memref<32x1920xf32, #tpu.memory_space<vmem>>, vector<32x16xf32>
    %cst_11 = arith.constant dense<0.000000e+00> : vector<16x16xf32>
    %12 = tpu.matmul %1, %11, %cst_11 {dimension_numbers = #tpu.dot_dimension_numbers<[1], [0], [0], [1], [0, 0, 1, 1], [], []>} : vector<16x32xf32>, vector<32x16xf32>, vector<16x16xf32> -> vector<16x16xf32>
    %c0_12 = arith.constant 0 : index
    %c256_13 = arith.constant 256 : index
    %13 = vector.load %arg5[%c0_12, %c256_13] : memref<1x2816xf32, #tpu.memory_space<vmem>>, vector<1x16xf32>
    %14 = vector.broadcast %13 : vector<1x16xf32> to vector<16x16xf32>
    %15 = arith.addf %12, %14 : vector<16x16xf32>
    %16 = vector.shape_cast %15 : vector<16x16xf32> to vector<2x8x16xf32>
    %c0_14 = arith.constant 0 : index
    %c512 = arith.constant 512 : index
    %17 = vector.load %arg3[%c0_14, %c512] : memref<32x1920xf32, #tpu.memory_space<vmem>>, vector<32x16xf32>
    %cst_15 = arith.constant dense<0.000000e+00> : vector<16x16xf32>
    %18 = tpu.matmul %1, %17, %cst_15 {dimension_numbers = #tpu.dot_dimension_numbers<[1], [0], [0], [1], [0, 0, 1, 1], [], []>} : vector<16x32xf32>, vector<32x16xf32>, vector<16x16xf32> -> vector<16x16xf32>
    %c0_16 = arith.constant 0 : index
    %c512_17 = arith.constant 512 : index
    %19 = vector.load %arg5[%c0_16, %c512_17] : memref<1x2816xf32, #tpu.memory_space<vmem>>, vector<1x16xf32>
    %20 = vector.broadcast %19 : vector<1x16xf32> to vector<16x16xf32>
    %21 = arith.addf %18, %20 : vector<16x16xf32>
    %22 = vector.shape_cast %21 : vector<16x16xf32> to vector<2x8x16xf32>
    "tpu.trace_start"() <{level = 10 : i32, message = "bqd,bkd->bqk"}> : () -> ()
    %cst_18 = arith.constant dense<0.000000e+00> : vector<2x8x8xf32>
    %23 = tpu.matmul %10, %16, %cst_18 {dimension_numbers = #tpu.dot_dimension_numbers<[2], [2], [1], [1], [0, 0, 0, 1, 1, 1], [0], [0]>} : vector<2x8x16xf32>, vector<2x8x16xf32>, vector<2x8x8xf32> -> vector<2x8x8xf32>
    "tpu.trace_stop"() : () -> ()
    %cst_19 = arith.constant 2.500000e-01 : f32
    %24 = vector.broadcast %cst_19 : f32 to vector<2x8x8xf32>
    %25 = arith.mulf %23, %24 : vector<2x8x8xf32>
    %cst_20 = arith.constant dense<0xFF800000> : vector<2x8xf32>
    %26 = vector.multi_reduction <maximumf>, %25, %cst_20 [2] : vector<2x8x8xf32> to vector<2x8xf32>
    %27 = vector.shape_cast %26 : vector<2x8xf32> to vector<2x8x1xf32>
    %28 = vector.broadcast %27 : vector<2x8x1xf32> to vector<2x8x8xf32>
    %29 = arith.subf %25, %28 : vector<2x8x8xf32>
    %30 = math.exp %29 : vector<2x8x8xf32>
    %cst_21 = arith.constant dense<0.000000e+00> : vector<2x8xf32>
    %31 = vector.multi_reduction <add>, %30, %cst_21 [2] : vector<2x8x8xf32> to vector<2x8xf32>
    %32 = vector.shape_cast %31 : vector<2x8xf32> to vector<2x8x1xf32>
    %33 = tpu.reciprocal %32 {approx = true} : vector<2x8x1xf32> -> vector<2x8x1xf32>
    %34 = vector.broadcast %33 : vector<2x8x1xf32> to vector<2x8x8xf32>
    %35 = arith.mulf %30, %34 : vector<2x8x8xf32>
    "tpu.trace_start"() <{level = 10 : i32, message = "bqk,bkd->bqd"}> : () -> ()
    %cst_22 = arith.constant dense<0.000000e+00> : vector<2x8x16xf32>
    %36 = tpu.matmul %35, %22, %cst_22 {dimension_numbers = #tpu.dot_dimension_numbers<[2], [1], [1], [2], [0, 0, 0, 1, 1, 2], [0], [0]>} : vector<2x8x8xf32>, vector<2x8x16xf32>, vector<2x8x16xf32> -> vector<2x8x16xf32>
    "tpu.trace_stop"() : () -> ()
    %37 = vector.shape_cast %36 : vector<2x8x16xf32> to vector<16x16xf32>
    %38 = vector.extract_strided_slice %4 {offsets = [0, 0], sizes = [16, 32], strides = [1, 1]} : vector<32x32xf32> to vector<16x32xf32>
    %cst_23 = arith.constant dense<0.000000e+00> : vector<16x32xf32>
    %39 = tpu.matmul %37, %38, %cst_23 {dimension_numbers = #tpu.dot_dimension_numbers<[1], [0], [0], [1], [0, 0, 1, 1], [], []>} : vector<16x16xf32>, vector<16x32xf32>, vector<16x32xf32> -> vector<16x32xf32>
    %c0_24 = arith.constant 0 : index
    %c128 = arith.constant 128 : index
    %40 = vector.load %arg3[%c0_24, %c128] : memref<32x1920xf32, #tpu.memory_space<vmem>>, vector<32x16xf32>
    %cst_25 = arith.constant dense<0.000000e+00> : vector<16x16xf32>
    %41 = tpu.matmul %1, %40, %cst_25 {dimension_numbers = #tpu.dot_dimension_numbers<[1], [0], [0], [1], [0, 0, 1, 1], [], []>} : vector<16x32xf32>, vector<32x16xf32>, vector<16x16xf32> -> vector<16x16xf32>
    %c0_26 = arith.constant 0 : index
    %c128_27 = arith.constant 128 : index
    %42 = vector.load %arg5[%c0_26, %c128_27] : memref<1x2816xf32, #tpu.memory_space<vmem>>, vector<1x16xf32>
    %43 = vector.broadcast %42 : vector<1x16xf32> to vector<16x16xf32>
    %44 = arith.addf %41, %43 : vector<16x16xf32>
    %45 = vector.shape_cast %44 : vector<16x16xf32> to vector<2x8x16xf32>
    %c0_28 = arith.constant 0 : index
    %c384 = arith.constant 384 : index
    %46 = vector.load %arg3[%c0_28, %c384] : memref<32x1920xf32, #tpu.memory_space<vmem>>, vector<32x16xf32>
    %cst_29 = arith.constant dense<0.000000e+00> : vector<16x16xf32>
    %47 = tpu.matmul %1, %46, %cst_29 {dimension_numbers = #tpu.dot_dimension_numbers<[1], [0], [0], [1], [0, 0, 1, 1], [], []>} : vector<16x32xf32>, vector<32x16xf32>, vector<16x16xf32> -> vector<16x16xf32>
    %c0_30 = arith.constant 0 : index
    %c384_31 = arith.constant 384 : index
    %48 = vector.load %arg5[%c0_30, %c384_31] : memref<1x2816xf32, #tpu.memory_space<vmem>>, vector<1x16xf32>
    %49 = vector.broadcast %48 : vector<1x16xf32> to vector<16x16xf32>
    %50 = arith.addf %47, %49 : vector<16x16xf32>
    %51 = vector.shape_cast %50 : vector<16x16xf32> to vector<2x8x16xf32>
    %c0_32 = arith.constant 0 : index
    %c640 = arith.constant 640 : index
    %52 = vector.load %arg3[%c0_32, %c640] : memref<32x1920xf32, #tpu.memory_space<vmem>>, vector<32x16xf32>
    %cst_33 = arith.constant dense<0.000000e+00> : vector<16x16xf32>
    %53 = tpu.matmul %1, %52, %cst_33 {dimension_numbers = #tpu.dot_dimension_numbers<[1], [0], [0], [1], [0, 0, 1, 1], [], []>} : vector<16x32xf32>, vector<32x16xf32>, vector<16x16xf32> -> vector<16x16xf32>
    %c0_34 = arith.constant 0 : index
    %c640_35 = arith.constant 640 : index
    %54 = vector.load %arg5[%c0_34, %c640_35] : memref<1x2816xf32, #tpu.memory_space<vmem>>, vector<1x16xf32>
    %55 = vector.broadcast %54 : vector<1x16xf32> to vector<16x16xf32>
    %56 = arith.addf %53, %55 : vector<16x16xf32>
    %57 = vector.shape_cast %56 : vector<16x16xf32> to vector<2x8x16xf32>
    "tpu.trace_start"() <{level = 10 : i32, message = "bqd,bkd->bqk"}> : () -> ()
    %cst_36 = arith.constant dense<0.000000e+00> : vector<2x8x8xf32>
    %58 = tpu.matmul %45, %51, %cst_36 {dimension_numbers = #tpu.dot_dimension_numbers<[2], [2], [1], [1], [0, 0, 0, 1, 1, 1], [0], [0]>} : vector<2x8x16xf32>, vector<2x8x16xf32>, vector<2x8x8xf32> -> vector<2x8x8xf32>
    "tpu.trace_stop"() : () -> ()
    %cst_37 = arith.constant 2.500000e-01 : f32
    %59 = vector.broadcast %cst_37 : f32 to vector<2x8x8xf32>
    %60 = arith.mulf %58, %59 : vector<2x8x8xf32>
    %cst_38 = arith.constant dense<0xFF800000> : vector<2x8xf32>
    %61 = vector.multi_reduction <maximumf>, %60, %cst_38 [2] : vector<2x8x8xf32> to vector<2x8xf32>
    %62 = vector.shape_cast %61 : vector<2x8xf32> to vector<2x8x1xf32>
    %63 = vector.broadcast %62 : vector<2x8x1xf32> to vector<2x8x8xf32>
    %64 = arith.subf %60, %63 : vector<2x8x8xf32>
    %65 = math.exp %64 : vector<2x8x8xf32>
    %cst_39 = arith.constant dense<0.000000e+00> : vector<2x8xf32>
    %66 = vector.multi_reduction <add>, %65, %cst_39 [2] : vector<2x8x8xf32> to vector<2x8xf32>
    %67 = vector.shape_cast %66 : vector<2x8xf32> to vector<2x8x1xf32>
    %68 = tpu.reciprocal %67 {approx = true} : vector<2x8x1xf32> -> vector<2x8x1xf32>
    %69 = vector.broadcast %68 : vector<2x8x1xf32> to vector<2x8x8xf32>
    %70 = arith.mulf %65, %69 : vector<2x8x8xf32>
    "tpu.trace_start"() <{level = 10 : i32, message = "bqk,bkd->bqd"}> : () -> ()
    %cst_40 = arith.constant dense<0.000000e+00> : vector<2x8x16xf32>
    %71 = tpu.matmul %70, %57, %cst_40 {dimension_numbers = #tpu.dot_dimension_numbers<[2], [1], [1], [2], [0, 0, 0, 1, 1, 2], [0], [0]>} : vector<2x8x8xf32>, vector<2x8x16xf32>, vector<2x8x16xf32> -> vector<2x8x16xf32>
    "tpu.trace_stop"() : () -> ()
    %72 = vector.shape_cast %71 : vector<2x8x16xf32> to vector<16x16xf32>
    %73 = vector.extract_strided_slice %4 {offsets = [16, 0], sizes = [16, 32], strides = [1, 1]} : vector<32x32xf32> to vector<16x32xf32>
    %cst_41 = arith.constant dense<0.000000e+00> : vector<16x32xf32>
    %74 = tpu.matmul %72, %73, %cst_41 {dimension_numbers = #tpu.dot_dimension_numbers<[1], [0], [0], [1], [0, 0, 1, 1], [], []>} : vector<16x16xf32>, vector<16x32xf32>, vector<16x32xf32> -> vector<16x32xf32>
    %75 = arith.addf %39, %74 : vector<16x32xf32>
    %c0_42 = arith.constant 0 : index
    %c768_43 = arith.constant 768 : index
    %76 = vector.load %arg5[%c0_42, %c768_43] : memref<1x2816xf32, #tpu.memory_space<vmem>>, vector<1x32xf32>
    %77 = vector.broadcast %76 : vector<1x32xf32> to vector<16x32xf32>
    %78 = arith.addf %75, %77 : vector<16x32xf32>
    %79 = arith.addf %78, %1 : vector<16x32xf32>
    %c0_44 = arith.constant 0 : index
    %c896 = arith.constant 896 : index
    %80 = vector.load %arg5[%c0_44, %c896] : memref<1x2816xf32, #tpu.memory_space<vmem>>, vector<1x32xf32>
    %c0_45 = arith.constant 0 : index
    %c1024 = arith.constant 1024 : index
    %81 = vector.load %arg5[%c0_45, %c1024] : memref<1x2816xf32, #tpu.memory_space<vmem>>, vector<1x32xf32>
    %cst_46 = arith.constant dense<0.000000e+00> : vector<16xf32>
    %82 = vector.multi_reduction <add>, %79, %cst_46 [1] : vector<16x32xf32> to vector<16xf32>
    %83 = vector.shape_cast %82 : vector<16xf32> to vector<16x1xf32>
    %cst_47 = arith.constant 3.200000e+01 : f32
    %84 = vector.broadcast %cst_47 : f32 to vector<16x1xf32>
    %85 = arith.divf %83, %84 : vector<16x1xf32>
    %86 = vector.broadcast %85 : vector<16x1xf32> to vector<16x32xf32>
    %87 = arith.subf %79, %86 : vector<16x32xf32>
    %88 = arith.mulf %87, %87 : vector<16x32xf32>
    %cst_48 = arith.constant dense<0.000000e+00> : vector<16xf32>
    %89 = vector.multi_reduction <add>, %88, %cst_48 [1] : vector<16x32xf32> to vector<16xf32>
    %90 = vector.shape_cast %89 : vector<16xf32> to vector<16x1xf32>
    %cst_49 = arith.constant 3.200000e+01 : f32
    %91 = vector.broadcast %cst_49 : f32 to vector<16x1xf32>
    %92 = arith.divf %90, %91 : vector<16x1xf32>
    %cst_50 = arith.constant 9.99999974E-6 : f32
    %93 = vector.broadcast %cst_50 : f32 to vector<16x1xf32>
    %94 = arith.addf %92, %93 : vector<16x1xf32>
    %95 = math.rsqrt %94 : vector<16x1xf32>
    %96 = vector.broadcast %95 : vector<16x1xf32> to vector<16x32xf32>
    %97 = arith.mulf %87, %96 : vector<16x32xf32>
    %98 = vector.broadcast %80 : vector<1x32xf32> to vector<16x32xf32>
    %99 = arith.mulf %97, %98 : vector<16x32xf32>
    %100 = vector.broadcast %81 : vector<1x32xf32> to vector<16x32xf32>
    %101 = arith.addf %99, %100 : vector<16x32xf32>
    %c0_51 = arith.constant 0 : index
    %c1664 = arith.constant 1664 : index
    %102 = vector.load %arg3[%c0_51, %c1664] : memref<32x1920xf32, #tpu.memory_space<vmem>>, vector<32x32xf32>
    %c0_52 = arith.constant 0 : index
    %c896_53 = arith.constant 896 : index
    %103 = vector.load %arg3[%c0_52, %c896_53] : memref<32x1920xf32, #tpu.memory_space<vmem>>, vector<32x16xf32>
    %cst_54 = arith.constant dense<0.000000e+00> : vector<16x16xf32>
    %104 = tpu.matmul %101, %103, %cst_54 {dimension_numbers = #tpu.dot_dimension_numbers<[1], [0], [0], [1], [0, 0, 1, 1], [], []>} : vector<16x32xf32>, vector<32x16xf32>, vector<16x16xf32> -> vector<16x16xf32>
    %c0_55 = arith.constant 0 : index
    %c1152 = arith.constant 1152 : index
    %105 = vector.load %arg5[%c0_55, %c1152] : memref<1x2816xf32, #tpu.memory_space<vmem>>, vector<1x16xf32>
    %106 = vector.broadcast %105 : vector<1x16xf32> to vector<16x16xf32>
    %107 = arith.addf %104, %106 : vector<16x16xf32>
    %108 = vector.shape_cast %107 : vector<16x16xf32> to vector<2x8x16xf32>
    %c0_56 = arith.constant 0 : index
    %c1152_57 = arith.constant 1152 : index
    %109 = vector.load %arg3[%c0_56, %c1152_57] : memref<32x1920xf32, #tpu.memory_space<vmem>>, vector<32x16xf32>
    %cst_58 = arith.constant dense<0.000000e+00> : vector<16x16xf32>
    %110 = tpu.matmul %3, %109, %cst_58 {dimension_numbers = #tpu.dot_dimension_numbers<[1], [0], [0], [1], [0, 0, 1, 1], [], []>} : vector<16x32xf32>, vector<32x16xf32>, vector<16x16xf32> -> vector<16x16xf32>
    %c0_59 = arith.constant 0 : index
    %c1408 = arith.constant 1408 : index
    %111 = vector.load %arg5[%c0_59, %c1408] : memref<1x2816xf32, #tpu.memory_space<vmem>>, vector<1x16xf32>
    %112 = vector.broadcast %111 : vector<1x16xf32> to vector<16x16xf32>
    %113 = arith.addf %110, %112 : vector<16x16xf32>
    %114 = vector.shape_cast %113 : vector<16x16xf32> to vector<2x8x16xf32>
    %c0_60 = arith.constant 0 : index
    %c1408_61 = arith.constant 1408 : index
    %115 = vector.load %arg3[%c0_60, %c1408_61] : memref<32x1920xf32, #tpu.memory_space<vmem>>, vector<32x16xf32>
    %cst_62 = arith.constant dense<0.000000e+00> : vector<16x16xf32>
    %116 = tpu.matmul %3, %115, %cst_62 {dimension_numbers = #tpu.dot_dimension_numbers<[1], [0], [0], [1], [0, 0, 1, 1], [], []>} : vector<16x32xf32>, vector<32x16xf32>, vector<16x16xf32> -> vector<16x16xf32>
    %c0_63 = arith.constant 0 : index
    %c1664_64 = arith.constant 1664 : index
    %117 = vector.load %arg5[%c0_63, %c1664_64] : memref<1x2816xf32, #tpu.memory_space<vmem>>, vector<1x16xf32>
    %118 = vector.broadcast %117 : vector<1x16xf32> to vector<16x16xf32>
    %119 = arith.addf %116, %118 : vector<16x16xf32>
    %120 = vector.shape_cast %119 : vector<16x16xf32> to vector<2x8x16xf32>
    "tpu.trace_start"() <{level = 10 : i32, message = "bqd,bkd->bqk"}> : () -> ()
    %cst_65 = arith.constant dense<0.000000e+00> : vector<2x8x8xf32>
    %121 = tpu.matmul %108, %114, %cst_65 {dimension_numbers = #tpu.dot_dimension_numbers<[2], [2], [1], [1], [0, 0, 0, 1, 1, 1], [0], [0]>} : vector<2x8x16xf32>, vector<2x8x16xf32>, vector<2x8x8xf32> -> vector<2x8x8xf32>
    "tpu.trace_stop"() : () -> ()
    %cst_66 = arith.constant 2.500000e-01 : f32
    %122 = vector.broadcast %cst_66 : f32 to vector<2x8x8xf32>
    %123 = arith.mulf %121, %122 : vector<2x8x8xf32>
    %cst_67 = arith.constant dense<0xFF800000> : vector<2x8xf32>
    %124 = vector.multi_reduction <maximumf>, %123, %cst_67 [2] : vector<2x8x8xf32> to vector<2x8xf32>
    %125 = vector.shape_cast %124 : vector<2x8xf32> to vector<2x8x1xf32>
    %126 = vector.broadcast %125 : vector<2x8x1xf32> to vector<2x8x8xf32>
    %127 = arith.subf %123, %126 : vector<2x8x8xf32>
    %128 = math.exp %127 : vector<2x8x8xf32>
    %cst_68 = arith.constant dense<0.000000e+00> : vector<2x8xf32>
    %129 = vector.multi_reduction <add>, %128, %cst_68 [2] : vector<2x8x8xf32> to vector<2x8xf32>
    %130 = vector.shape_cast %129 : vector<2x8xf32> to vector<2x8x1xf32>
    %131 = tpu.reciprocal %130 {approx = true} : vector<2x8x1xf32> -> vector<2x8x1xf32>
    %132 = vector.broadcast %131 : vector<2x8x1xf32> to vector<2x8x8xf32>
    %133 = arith.mulf %128, %132 : vector<2x8x8xf32>
    "tpu.trace_start"() <{level = 10 : i32, message = "bqk,bkd->bqd"}> : () -> ()
    %cst_69 = arith.constant dense<0.000000e+00> : vector<2x8x16xf32>
    %134 = tpu.matmul %133, %120, %cst_69 {dimension_numbers = #tpu.dot_dimension_numbers<[2], [1], [1], [2], [0, 0, 0, 1, 1, 2], [0], [0]>} : vector<2x8x8xf32>, vector<2x8x16xf32>, vector<2x8x16xf32> -> vector<2x8x16xf32>
    "tpu.trace_stop"() : () -> ()
    %135 = vector.shape_cast %134 : vector<2x8x16xf32> to vector<16x16xf32>
    %136 = vector.extract_strided_slice %102 {offsets = [0, 0], sizes = [16, 32], strides = [1, 1]} : vector<32x32xf32> to vector<16x32xf32>
    %cst_70 = arith.constant dense<0.000000e+00> : vector<16x32xf32>
    %137 = tpu.matmul %135, %136, %cst_70 {dimension_numbers = #tpu.dot_dimension_numbers<[1], [0], [0], [1], [0, 0, 1, 1], [], []>} : vector<16x16xf32>, vector<16x32xf32>, vector<16x32xf32> -> vector<16x32xf32>
    %c0_71 = arith.constant 0 : index
    %c1024_72 = arith.constant 1024 : index
    %138 = vector.load %arg3[%c0_71, %c1024_72] : memref<32x1920xf32, #tpu.memory_space<vmem>>, vector<32x16xf32>
    %cst_73 = arith.constant dense<0.000000e+00> : vector<16x16xf32>
    %139 = tpu.matmul %101, %138, %cst_73 {dimension_numbers = #tpu.dot_dimension_numbers<[1], [0], [0], [1], [0, 0, 1, 1], [], []>} : vector<16x32xf32>, vector<32x16xf32>, vector<16x16xf32> -> vector<16x16xf32>
    %c0_74 = arith.constant 0 : index
    %c1280 = arith.constant 1280 : index
    %140 = vector.load %arg5[%c0_74, %c1280] : memref<1x2816xf32, #tpu.memory_space<vmem>>, vector<1x16xf32>
    %141 = vector.broadcast %140 : vector<1x16xf32> to vector<16x16xf32>
    %142 = arith.addf %139, %141 : vector<16x16xf32>
    %143 = vector.shape_cast %142 : vector<16x16xf32> to vector<2x8x16xf32>
    %c0_75 = arith.constant 0 : index
    %c1280_76 = arith.constant 1280 : index
    %144 = vector.load %arg3[%c0_75, %c1280_76] : memref<32x1920xf32, #tpu.memory_space<vmem>>, vector<32x16xf32>
    %cst_77 = arith.constant dense<0.000000e+00> : vector<16x16xf32>
    %145 = tpu.matmul %3, %144, %cst_77 {dimension_numbers = #tpu.dot_dimension_numbers<[1], [0], [0], [1], [0, 0, 1, 1], [], []>} : vector<16x32xf32>, vector<32x16xf32>, vector<16x16xf32> -> vector<16x16xf32>
    %c0_78 = arith.constant 0 : index
    %c1536 = arith.constant 1536 : index
    %146 = vector.load %arg5[%c0_78, %c1536] : memref<1x2816xf32, #tpu.memory_space<vmem>>, vector<1x16xf32>
    %147 = vector.broadcast %146 : vector<1x16xf32> to vector<16x16xf32>
    %148 = arith.addf %145, %147 : vector<16x16xf32>
    %149 = vector.shape_cast %148 : vector<16x16xf32> to vector<2x8x16xf32>
    %c0_79 = arith.constant 0 : index
    %c1536_80 = arith.constant 1536 : index
    %150 = vector.load %arg3[%c0_79, %c1536_80] : memref<32x1920xf32, #tpu.memory_space<vmem>>, vector<32x16xf32>
    %cst_81 = arith.constant dense<0.000000e+00> : vector<16x16xf32>
    %151 = tpu.matmul %3, %150, %cst_81 {dimension_numbers = #tpu.dot_dimension_numbers<[1], [0], [0], [1], [0, 0, 1, 1], [], []>} : vector<16x32xf32>, vector<32x16xf32>, vector<16x16xf32> -> vector<16x16xf32>
    %c0_82 = arith.constant 0 : index
    %c1792 = arith.constant 1792 : index
    %152 = vector.load %arg5[%c0_82, %c1792] : memref<1x2816xf32, #tpu.memory_space<vmem>>, vector<1x16xf32>
    %153 = vector.broadcast %152 : vector<1x16xf32> to vector<16x16xf32>
    %154 = arith.addf %151, %153 : vector<16x16xf32>
    %155 = vector.shape_cast %154 : vector<16x16xf32> to vector<2x8x16xf32>
    "tpu.trace_start"() <{level = 10 : i32, message = "bqd,bkd->bqk"}> : () -> ()
    %cst_83 = arith.constant dense<0.000000e+00> : vector<2x8x8xf32>
    %156 = tpu.matmul %143, %149, %cst_83 {dimension_numbers = #tpu.dot_dimension_numbers<[2], [2], [1], [1], [0, 0, 0, 1, 1, 1], [0], [0]>} : vector<2x8x16xf32>, vector<2x8x16xf32>, vector<2x8x8xf32> -> vector<2x8x8xf32>
    "tpu.trace_stop"() : () -> ()
    %cst_84 = arith.constant 2.500000e-01 : f32
    %157 = vector.broadcast %cst_84 : f32 to vector<2x8x8xf32>
    %158 = arith.mulf %156, %157 : vector<2x8x8xf32>
    %cst_85 = arith.constant dense<0xFF800000> : vector<2x8xf32>
    %159 = vector.multi_reduction <maximumf>, %158, %cst_85 [2] : vector<2x8x8xf32> to vector<2x8xf32>
    %160 = vector.shape_cast %159 : vector<2x8xf32> to vector<2x8x1xf32>
    %161 = vector.broadcast %160 : vector<2x8x1xf32> to vector<2x8x8xf32>
    %162 = arith.subf %158, %161 : vector<2x8x8xf32>
    %163 = math.exp %162 : vector<2x8x8xf32>
    %cst_86 = arith.constant dense<0.000000e+00> : vector<2x8xf32>
    %164 = vector.multi_reduction <add>, %163, %cst_86 [2] : vector<2x8x8xf32> to vector<2x8xf32>
    %165 = vector.shape_cast %164 : vector<2x8xf32> to vector<2x8x1xf32>
    %166 = tpu.reciprocal %165 {approx = true} : vector<2x8x1xf32> -> vector<2x8x1xf32>
    %167 = vector.broadcast %166 : vector<2x8x1xf32> to vector<2x8x8xf32>
    %168 = arith.mulf %163, %167 : vector<2x8x8xf32>
    "tpu.trace_start"() <{level = 10 : i32, message = "bqk,bkd->bqd"}> : () -> ()
    %cst_87 = arith.constant dense<0.000000e+00> : vector<2x8x16xf32>
    %169 = tpu.matmul %168, %155, %cst_87 {dimension_numbers = #tpu.dot_dimension_numbers<[2], [1], [1], [2], [0, 0, 0, 1, 1, 2], [0], [0]>} : vector<2x8x8xf32>, vector<2x8x16xf32>, vector<2x8x16xf32> -> vector<2x8x16xf32>
    "tpu.trace_stop"() : () -> ()
    %170 = vector.shape_cast %169 : vector<2x8x16xf32> to vector<16x16xf32>
    %171 = vector.extract_strided_slice %102 {offsets = [16, 0], sizes = [16, 32], strides = [1, 1]} : vector<32x32xf32> to vector<16x32xf32>
    %cst_88 = arith.constant dense<0.000000e+00> : vector<16x32xf32>
    %172 = tpu.matmul %170, %171, %cst_88 {dimension_numbers = #tpu.dot_dimension_numbers<[1], [0], [0], [1], [0, 0, 1, 1], [], []>} : vector<16x16xf32>, vector<16x32xf32>, vector<16x32xf32> -> vector<16x32xf32>
    %173 = arith.addf %137, %172 : vector<16x32xf32>
    %c0_89 = arith.constant 0 : index
    %c1920 = arith.constant 1920 : index
    %174 = vector.load %arg5[%c0_89, %c1920] : memref<1x2816xf32, #tpu.memory_space<vmem>>, vector<1x32xf32>
    %175 = vector.broadcast %174 : vector<1x32xf32> to vector<16x32xf32>
    %176 = arith.addf %173, %175 : vector<16x32xf32>
    %177 = arith.addf %176, %101 : vector<16x32xf32>
    %c0_90 = arith.constant 0 : index
    %c2048 = arith.constant 2048 : index
    %178 = vector.load %arg5[%c0_90, %c2048] : memref<1x2816xf32, #tpu.memory_space<vmem>>, vector<1x32xf32>
    %c0_91 = arith.constant 0 : index
    %c2176 = arith.constant 2176 : index
    %179 = vector.load %arg5[%c0_91, %c2176] : memref<1x2816xf32, #tpu.memory_space<vmem>>, vector<1x32xf32>
    %cst_92 = arith.constant dense<0.000000e+00> : vector<16xf32>
    %180 = vector.multi_reduction <add>, %177, %cst_92 [1] : vector<16x32xf32> to vector<16xf32>
    %181 = vector.shape_cast %180 : vector<16xf32> to vector<16x1xf32>
    %cst_93 = arith.constant 3.200000e+01 : f32
    %182 = vector.broadcast %cst_93 : f32 to vector<16x1xf32>
    %183 = arith.divf %181, %182 : vector<16x1xf32>
    %184 = vector.broadcast %183 : vector<16x1xf32> to vector<16x32xf32>
    %185 = arith.subf %177, %184 : vector<16x32xf32>
    %186 = arith.mulf %185, %185 : vector<16x32xf32>
    %cst_94 = arith.constant dense<0.000000e+00> : vector<16xf32>
    %187 = vector.multi_reduction <add>, %186, %cst_94 [1] : vector<16x32xf32> to vector<16xf32>
    %188 = vector.shape_cast %187 : vector<16xf32> to vector<16x1xf32>
    %cst_95 = arith.constant 3.200000e+01 : f32
    %189 = vector.broadcast %cst_95 : f32 to vector<16x1xf32>
    %190 = arith.divf %188, %189 : vector<16x1xf32>
    %cst_96 = arith.constant 9.99999974E-6 : f32
    %191 = vector.broadcast %cst_96 : f32 to vector<16x1xf32>
    %192 = arith.addf %190, %191 : vector<16x1xf32>
    %193 = math.rsqrt %192 : vector<16x1xf32>
    %194 = vector.broadcast %193 : vector<16x1xf32> to vector<16x32xf32>
    %195 = arith.mulf %185, %194 : vector<16x32xf32>
    %196 = vector.broadcast %178 : vector<1x32xf32> to vector<16x32xf32>
    %197 = arith.mulf %195, %196 : vector<16x32xf32>
    %198 = vector.broadcast %179 : vector<1x32xf32> to vector<16x32xf32>
    %199 = arith.addf %197, %198 : vector<16x32xf32>
    %c0_97 = arith.constant 0 : index
    %c1792_98 = arith.constant 1792 : index
    %200 = vector.load %arg3[%c0_97, %c1792_98] : memref<32x1920xf32, #tpu.memory_space<vmem>>, vector<32x64xf32>
    %cst_99 = arith.constant dense<0.000000e+00> : vector<16x64xf32>
    %201 = tpu.matmul %199, %200, %cst_99 {dimension_numbers = #tpu.dot_dimension_numbers<[1], [0], [0], [1], [0, 0, 1, 1], [], []>} : vector<16x32xf32>, vector<32x64xf32>, vector<16x64xf32> -> vector<16x64xf32>
    %c0_100 = arith.constant 0 : index
    %c2304 = arith.constant 2304 : index
    %202 = vector.load %arg5[%c0_100, %c2304] : memref<1x2816xf32, #tpu.memory_space<vmem>>, vector<1x64xf32>
    %203 = vector.broadcast %202 : vector<1x64xf32> to vector<16x64xf32>
    %204 = arith.addf %201, %203 : vector<16x64xf32>
    %cst_101 = arith.constant 0.000000e+00 : f32
    %205 = vector.broadcast %cst_101 : f32 to vector<16x64xf32>
    %206 = arith.maximumf %204, %205 : vector<16x64xf32>
    %c0_102 = arith.constant 0 : index
    %c0_103 = arith.constant 0 : index
    %207 = vector.load %arg4[%c0_102, %c0_103] : memref<64x32xf32, #tpu.memory_space<vmem>>, vector<64x32xf32>
    %cst_104 = arith.constant dense<0.000000e+00> : vector<16x32xf32>
    %208 = tpu.matmul %206, %207, %cst_104 {dimension_numbers = #tpu.dot_dimension_numbers<[1], [0], [0], [1], [0, 0, 1, 1], [], []>} : vector<16x64xf32>, vector<64x32xf32>, vector<16x32xf32> -> vector<16x32xf32>
    %c0_105 = arith.constant 0 : index
    %c2432 = arith.constant 2432 : index
    %209 = vector.load %arg5[%c0_105, %c2432] : memref<1x2816xf32, #tpu.memory_space<vmem>>, vector<1x32xf32>
    %210 = vector.broadcast %209 : vector<1x32xf32> to vector<16x32xf32>
    %211 = arith.addf %208, %210 : vector<16x32xf32>
    %212 = arith.addf %211, %199 : vector<16x32xf32>
    %c0_106 = arith.constant 0 : index
    %c2560 = arith.constant 2560 : index
    %213 = vector.load %arg5[%c0_106, %c2560] : memref<1x2816xf32, #tpu.memory_space<vmem>>, vector<1x32xf32>
    %c0_107 = arith.constant 0 : index
    %c2688 = arith.constant 2688 : index
    %214 = vector.load %arg5[%c0_107, %c2688] : memref<1x2816xf32, #tpu.memory_space<vmem>>, vector<1x32xf32>
    %cst_108 = arith.constant dense<0.000000e+00> : vector<16xf32>
    %215 = vector.multi_reduction <add>, %212, %cst_108 [1] : vector<16x32xf32> to vector<16xf32>
    %216 = vector.shape_cast %215 : vector<16xf32> to vector<16x1xf32>
    %cst_109 = arith.constant 3.200000e+01 : f32
    %217 = vector.broadcast %cst_109 : f32 to vector<16x1xf32>
    %218 = arith.divf %216, %217 : vector<16x1xf32>
    %219 = vector.broadcast %218 : vector<16x1xf32> to vector<16x32xf32>
    %220 = arith.subf %212, %219 : vector<16x32xf32>
    %221 = arith.mulf %220, %220 : vector<16x32xf32>
    %cst_110 = arith.constant dense<0.000000e+00> : vector<16xf32>
    %222 = vector.multi_reduction <add>, %221, %cst_110 [1] : vector<16x32xf32> to vector<16xf32>
    %223 = vector.shape_cast %222 : vector<16xf32> to vector<16x1xf32>
    %cst_111 = arith.constant 3.200000e+01 : f32
    %224 = vector.broadcast %cst_111 : f32 to vector<16x1xf32>
    %225 = arith.divf %223, %224 : vector<16x1xf32>
    %cst_112 = arith.constant 9.99999974E-6 : f32
    %226 = vector.broadcast %cst_112 : f32 to vector<16x1xf32>
    %227 = arith.addf %225, %226 : vector<16x1xf32>
    %228 = math.rsqrt %227 : vector<16x1xf32>
    %229 = vector.broadcast %228 : vector<16x1xf32> to vector<16x32xf32>
    %230 = arith.mulf %220, %229 : vector<16x32xf32>
    %231 = vector.broadcast %213 : vector<1x32xf32> to vector<16x32xf32>
    %232 = arith.mulf %230, %231 : vector<16x32xf32>
    %233 = vector.broadcast %214 : vector<1x32xf32> to vector<16x32xf32>
    %234 = arith.addf %232, %233 : vector<16x32xf32>
    %235 = vector.shape_cast %234 : vector<16x32xf32> to vector<2x8x32xf32>
    %c0_113 = arith.constant 0 : index
    %c0_114 = arith.constant 0 : index
    %c0_115 = arith.constant 0 : index
    %236 = vector.load %arg6[%c0_113, %c0_114, %c0_115] : memref<2x8x32xf32, #tpu.memory_space<vmem>>, vector<2x8x32xf32>
    tpu.vector_store %arg6[%c0_113, %c0_114, %c0_115], %235 {strides = array<i32>} : memref<2x8x32xf32, #tpu.memory_space<vmem>>, vector<2x8x32xf32>,
    %c0_116 = arith.constant 0 : index
    %c0_117 = arith.constant 0 : index
    %c0_118 = arith.constant 0 : index
    %237 = vector.load %arg7[%c0_116, %c0_117, %c0_118] : memref<2x8x8xf32, #tpu.memory_space<vmem>>, vector<2x8x8xf32>
    tpu.vector_store %arg7[%c0_116, %c0_117, %c0_118], %70 {strides = array<i32>} : memref<2x8x8xf32, #tpu.memory_space<vmem>>, vector<2x8x8xf32>,
    %c0_119 = arith.constant 0 : index
    %c0_120 = arith.constant 0 : index
    %c0_121 = arith.constant 0 : index
    %238 = vector.load %arg8[%c0_119, %c0_120, %c0_121] : memref<2x8x8xf32, #tpu.memory_space<vmem>>, vector<2x8x8xf32>
    tpu.vector_store %arg8[%c0_119, %c0_120, %c0_121], %168 {strides = array<i32>} : memref<2x8x8xf32, #tpu.memory_space<vmem>>, vector<2x8x8xf32>,
    return
  }
  func.func @transform_0(%arg0: i32) -> (i32, i32, i32) {
    %c0_i32 = arith.constant 0 : i32
    %c0_i32_0 = arith.constant 0 : i32
    %c0_i32_1 = arith.constant 0 : i32
    return %arg0, %c0_i32, %c0_i32_0 : i32, i32, i32
  }
  func.func @transform_1(%arg0: i32) -> (i32, i32, i32) {
    %c0_i32 = arith.constant 0 : i32
    %c0_i32_0 = arith.constant 0 : i32
    %c0_i32_1 = arith.constant 0 : i32
    return %arg0, %c0_i32, %c0_i32_0 : i32, i32, i32
  }
  func.func @transform_2(%arg0: i32) -> (i32, i32) {
    %c0_i32 = arith.constant 0 : i32
    %c0_i32_0 = arith.constant 0 : i32
    %c0_i32_1 = arith.constant 0 : i32
    return %c0_i32, %c0_i32_0 : i32, i32
  }
  func.func @transform_3(%arg0: i32) -> (i32, i32) {
    %c0_i32 = arith.constant 0 : i32
    %c0_i32_0 = arith.constant 0 : i32
    %c0_i32_1 = arith.constant 0 : i32
    return %c0_i32, %c0_i32_0 : i32, i32
  }
  func.func @transform_4(%arg0: i32) -> (i32, i32) {
    %c0_i32 = arith.constant 0 : i32
    %c0_i32_0 = arith.constant 0 : i32
    %c0_i32_1 = arith.constant 0 : i32
    return %c0_i32, %c0_i32_0 : i32, i32
  }
  func.func @transform_5(%arg0: i32) -> (i32, i32, i32) {
    %c0_i32 = arith.constant 0 : i32
    %c0_i32_0 = arith.constant 0 : i32
    %c0_i32_1 = arith.constant 0 : i32
    return %arg0, %c0_i32, %c0_i32_0 : i32, i32, i32
  }
  func.func @transform_6(%arg0: i32) -> (i32, i32, i32) {
    %c0_i32 = arith.constant 0 : i32
    %c0_i32_0 = arith.constant 0 : i32
    %c0_i32_1 = arith.constant 0 : i32
    return %arg0, %c0_i32, %c0_i32_0 : i32, i32, i32
  }
  func.func @transform_7(%arg0: i32) -> (i32, i32, i32) {
    %c0_i32 = arith.constant 0 : i32
    %c0_i32_0 = arith.constant 0 : i32
    %c0_i32_1 = arith.constant 0 : i32
    return %arg0, %c0_i32, %c0_i32_0 : i32, i32, i32
  }
}

</mosaic_0001>

<llo_original>
// kernel: tpu_custom_call.1
$region0: #{tpu_custom_call.1}
  #allocation0 [shape = 'u32[]', space=smem, size = 0x4, offset = 0x4, fixed_abs, tag = 'smem constant byte address 0x4 - core index']
  #allocation1 [shape = 'u32[144,128]{1,0:T(1,128)}', space=vmem, size = 0x12000, scoped, tag = 'internal scratch']
  %s0 = inlined_call_operand.vmem [shape: f32[2,8,32], index: 0, kind: input, shape index: {}]
  %s1 = inlined_call_operand.vmem [shape: f32[2,8,32], index: 1, kind: input, shape index: {}]
  %s2 = inlined_call_operand.hbm [shape: f32[32,1920], index: 2, kind: input, shape index: {}]
  %s3 = inlined_call_operand.vmem [shape: f32[64,32], index: 3, kind: input, shape index: {}]
  %s4 = inlined_call_operand.vmem [shape: f32[1,2816], index: 4, kind: input, shape index: {}]
  %s5 = inlined_call_operand.hbm [shape: f32[2,8,32], index: 5, kind: output, shape index: {0}]
  %s6 = inlined_call_operand.hbm [shape: f32[2,8,8], index: 6, kind: output, shape index: {1}]
  %s7 = inlined_call_operand.hbm [shape: f32[2,8,8], index: 7, kind: output, shape index: {2}]
  %8 = xla_tuple %s5, %s6, %s7
  %s9 = sld [smem:[#allocation0]]
  $region50: #{tpu_custom_call.1} parent=0
    _
  %s11 = ssub.s32 1, %s9
  %s12 = scalar_select 0, %s11, %s9
  $region1: #{tpu_custom_call.1} parent=0
    #allocation2 [shape = 'u8[245760]{0}', space=vmem, size = 0x3c000, scoped, tag = 'input window, operand 2, single buffered']
    #allocation3 [shape = 's32[1]{0}', space=sflag, size = 0x4, scoped, tag = 'scoped memory for tpu_custom_call.1']
    #allocation4 [shape = 's32[1]{0}', space=sflag, size = 0x4, scoped, tag = 'scoped memory for tpu_custom_call.1']
    #allocation5 [shape = 'u8[8192]{0}', space=vmem, size = 0x2000, scoped, tag = 'output window, operand 0, single buffered']
    #allocation6 [shape = 'u8[8192]{0}', space=vmem, size = 0x2000, scoped, tag = 'output window, operand 1, single buffered']
    #allocation7 [shape = 's32[1]{0}', space=sflag, size = 0x4, scoped, tag = 'scoped memory for tpu_custom_call.1']
    #allocation8 [shape = 'u8[8192]{0}', space=vmem, size = 0x2000, scoped, tag = 'output window, operand 2, single buffered']
    %13 = vsyncpa [#allocation3], 0
    %14 = vsyncpa [#allocation4], 0
    %15 = vsyncpa [#allocation7], 0
    // Predicated region
    $region2: #{tpu_custom_call.1} parent=1 // pred_check
      _
    $region3: #{tpu_custom_call.1} parent=1 // pred_check_branch
      %17 = sbr.rel (0) target = $region5
    $region4: #{tpu_custom_call.1} parent=1 // pred_region
      _
    $region5: #{tpu_custom_call.1} parent=1 // pred_fallthru
      _
    // Predicated region
    $region6: #{tpu_custom_call.1} parent=1 // pred_check
      _
    $region7: #{tpu_custom_call.1} parent=1 // pred_check_branch
      %19 = sbr.rel (0) target = $region9
    $region8: #{tpu_custom_call.1} parent=1 // pred_region
      _
    $region9: #{tpu_custom_call.1} parent=1 // pred_fallthru
      _
    // Predicated region
    $region10: #{tpu_custom_call.1} parent=1 // pred_check
      _
    $region11: #{tpu_custom_call.1} parent=1 // pred_check_branch
      %21 = sbr.rel (0) target = $region13
    $region12: #{tpu_custom_call.1} parent=1 // pred_region
      %s23 = ssub.s32 7680, 7680
      %24 = vsyncadd [#allocation3], %s23
      %s25 = sshll.u32 [#allocation2], 4
      %s26 = int_to_ptr.vmem [resolvable:$true] %s25
      %31 = dma.hbm_to_vmem [thread:$0]  %s2, 7680, %s26, [#allocation3], 1920, 1920, 120
    $region13: #{tpu_custom_call.1} parent=1 // pred_fallthru
      _
    // Predicated region
    $region14: #{tpu_custom_call.1} parent=1 // pred_check
      _
    $region15: #{tpu_custom_call.1} parent=1 // pred_check_branch
      %33 = sbr.rel (0) target = $region17
    $region16: #{tpu_custom_call.1} parent=1 // pred_region
      _
    $region17: #{tpu_custom_call.1} parent=1 // pred_fallthru
      _
    // Predicated region
    $region18: #{tpu_custom_call.1} parent=1 // pred_check
      _
    $region19: #{tpu_custom_call.1} parent=1 // pred_check_branch
      %35 = sbr.rel (0) target = $region21
    $region20: #{tpu_custom_call.1} parent=1 // pred_region
      _
    $region21: #{tpu_custom_call.1} parent=1 // pred_fallthru
      _
    // Predicated region
    $region22: #{tpu_custom_call.1} parent=1 // pred_check
      _
    $region23: #{tpu_custom_call.1} parent=1 // pred_check_branch
      %37 = sbr.rel (0) target = $region25
    $region24: #{tpu_custom_call.1} parent=1 // pred_region
      %38 = dma.done [#allocation3], 7680
    $region25: #{tpu_custom_call.1} parent=1 // pred_fallthru
      _
    %v39 = vld [vmem:[%s0] sm:$0xff]
    %v40 = vld [vmem:[%s0 + $0x8] sm:$0xff]
    %v41 = vld [vmem:[%s1] sm:$0xff]
    %v42 = vld [vmem:[%s1 + $0x8] sm:$0xff]
    %v43 = vld [vmem:[#allocation2 + $0x30] sm:$0xff]
    %v44 = vld [vmem:[#allocation2 + $0xa8] sm:$0xff]
    %v45 = vld [vmem:[#allocation2 + $0x120] sm:$0xff]
    %v46 = vld [vmem:[#allocation2 + $0x198] sm:$0xff]
    %v47 = vld [vmem:[#allocation2] sm:$0xff]
    %v48 = vld [vmem:[#allocation2 + $0x78] sm:$0xff]
    %v49 = vld [vmem:[#allocation2 + $0xf0] sm:$0xff]
    %v50 = vld [vmem:[#allocation2 + $0x168] sm:$0xff]
    %v51 = vld [vmem:[%s4] sm:$0x1]
    %v53 = vlaneseq
    %v54 = vshrl.u32 %v53, 7
    %v55 = vsub.s32 0, %v54
    %v56 = vrot.slane %v51, %v55
    %vm58 = vcmask 261120
    %v60 = vsel %vm58, %v39, 0
    %v63 = vsel %vm58, %v40, 0
    %65 = vmatprep.subr.mxu0 0.0
    %66 = vmatpush1.msra.mxu0 %v47
    %67 = vmatprep.subr.mxu0 0.0
    %68 = vmatpush1.msra.mxu0 %v48
    %69 = vmatprep.subr.mxu0 0.0
    %70 = vmatpush1.msra.mxu0 %v49
    %71 = vmatprep.subr.mxu0 0.0
    %72 = vmatpush1.msra.mxu0 %v50
    %73 = vmatprep.subr.mxu0 0.0
    %74 = vmatpush1.msra.mxu0 0.0
    %75 = vmatprep.subr.mxu0 0.0
    %76 = vmatpush1.msra.mxu0 0.0
    %77 = vmatprep.subr.mxu0 0.0
    %78 = vmatpush1.msra.mxu0 0.0
    %79 = vmatprep.subr.mxu0 0.0
    %80 = vmatpush1.msra.mxu0 0.0
    %81 = vmatprep.subr.mxu0 0.0
    %82 = vmatpush1.msra.mxu0 0.0
    %83 = vmatprep.subr.mxu0 0.0
    %84 = vmatpush1.msra.mxu0 0.0
    %85 = vmatprep.subr.mxu0 0.0
    %86 = vmatpush1.msra.mxu0 0.0
    %87 = vmatprep.subr.mxu0 0.0
    %88 = vmatpush1.msra.mxu0 0.0
    %89 = vmatprep.subr.mxu0 0.0
    %90 = vmatpush1.msra.mxu0 0.0
    %91 = vmatprep.subr.mxu0 0.0
    %92 = vmatpush1.msra.mxu0 0.0
    %93 = vmatprep.subr.mxu0 0.0
    %94 = vmatpush1.msra.mxu0 0.0
    %95 = vmatprep.subr.mxu0 0.0
    %96 = vmatpush1.msra.mxu0 0.0
    %97 = vmatprep.subr.mxu0 0.0
    %98 = vmatpush1.msra.mxu0 0.0
    %99 = vmatprep.subr.mxu0 0.0
    %100 = vmatpush1.msra.mxu0 0.0
    %101 = vmatprep.subr.mxu0 0.0
    %102 = vmatpush1.msra.mxu0 0.0
    %103 = vmatprep.subr.mxu0 0.0
    %104 = vmatpush1.msra.mxu0 0.0
    %105 = vmatprep.subr.mxu0 0.0
    %106 = vmatpush1.msra.mxu0 0.0
    %107 = vmatprep.subr.mxu0 0.0
    %108 = vmatpush1.msra.mxu0 0.0
    %109 = vmatprep.subr.mxu0 0.0
    %110 = vmatpush1.msra.mxu0 0.0
    %111 = vmatprep.subr.mxu0 0.0
    %112 = vmatpush1.msra.mxu0 0.0
    %113 = vmatprep.subr.mxu0 0.0
    %114 = vmatpush1.msra.mxu0 0.0
    %115 = vmatprep.subr.mxu0 0.0
    %116 = vmatpush1.msra.mxu0 0.0
    %117 = vmatprep.subr.mxu0 0.0
    %118 = vmatpush1.msra.mxu0 0.0
    %119 = vmatprep.subr.mxu0 0.0
    %120 = vmatpush1.msra.mxu0 0.0
    %121 = vmatprep.subr.mxu0 0.0
    %122 = vmatpush1.msra.mxu0 0.0
    %123 = vmatprep.subr.mxu0 0.0
    %124 = vmatpush1.msra.mxu0 0.0
    %125 = vmatprep.subr.mxu0 0.0
    %126 = vmatpush1.msra.mxu0 0.0
    %127 = vmatprep.subr.mxu0 0.0
    %128 = vmatpush1.msra.mxu0 0.0
    %129 = vmatprep.mubr.f32.mxu0 0.0
    %130 = vmatmul.mubr.f32.gmra.mrb[0].mxu0 %v60
    %v131 = vpop.f32.mrb[0].mxu0
    %v132 = vadd.f32 %v56, %v131
    %v133 = vpop.f32.mrb[0].mxu0
    %134 = vmatprep.mubr.f32.mxu0 0.0
    %135 = vmatmul.mubr.f32.gmra.mrb[0].mxu0 %v63
    %v136 = vpop.f32.mrb[0].mxu0
    %v137 = vadd.f32 %v56, %v136
    %v138 = vpop.f32.mrb[0].mxu0
    %139 = vdwg.mxu0
    %v140 = vld [vmem:[#allocation2 + $0x10] sm:$0xff]
    %v141 = vld [vmem:[#allocation2 + $0x88] sm:$0xff]
    %v142 = vld [vmem:[#allocation2 + $0x100] sm:$0xff]
    %v143 = vld [vmem:[#allocation2 + $0x178] sm:$0xff]
    %v144 = vld [vmem:[%s4 + $0x2] sm:$0x1]
    %v146 = vlaneseq
    %v147 = vshrl.u32 %v146, 7
    %v148 = vsub.s32 0, %v147
    %v149 = vrot.slane %v144, %v148
    %151 = vmatprep.subr.mxu0 0.0
    %152 = vmatpush1.msra.mxu0 %v140
    %153 = vmatprep.subr.mxu0 0.0
    %154 = vmatpush1.msra.mxu0 %v141
    %155 = vmatprep.subr.mxu0 0.0
    %156 = vmatpush1.msra.mxu0 %v142
    %157 = vmatprep.subr.mxu0 0.0
    %158 = vmatpush1.msra.mxu0 %v143
    %159 = vmatprep.subr.mxu0 0.0
    %160 = vmatpush1.msra.mxu0 0.0
    %161 = vmatprep.subr.mxu0 0.0
    %162 = vmatpush1.msra.mxu0 0.0
    %163 = vmatprep.subr.mxu0 0.0
    %164 = vmatpush1.msra.mxu0 0.0
    %165 = vmatprep.subr.mxu0 0.0
    %166 = vmatpush1.msra.mxu0 0.0
    %167 = vmatprep.subr.mxu0 0.0
    %168 = vmatpush1.msra.mxu0 0.0
    %169 = vmatprep.subr.mxu0 0.0
    %170 = vmatpush1.msra.mxu0 0.0
    %171 = vmatprep.subr.mxu0 0.0
    %172 = vmatpush1.msra.mxu0 0.0
    %173 = vmatprep.subr.mxu0 0.0
    %174 = vmatpush1.msra.mxu0 0.0
    %175 = vmatprep.subr.mxu0 0.0
    %176 = vmatpush1.msra.mxu0 0.0
    %177 = vmatprep.subr.mxu0 0.0
    %178 = vmatpush1.msra.mxu0 0.0
    %179 = vmatprep.subr.mxu0 0.0
    %180 = vmatpush1.msra.mxu0 0.0
    %181 = vmatprep.subr.mxu0 0.0
    %182 = vmatpush1.msra.mxu0 0.0
    %183 = vmatprep.subr.mxu0 0.0
    %184 = vmatpush1.msra.mxu0 0.0
    %185 = vmatprep.subr.mxu0 0.0
    %186 = vmatpush1.msra.mxu0 0.0
    %187 = vmatprep.subr.mxu0 0.0
    %188 = vmatpush1.msra.mxu0 0.0
    %189 = vmatprep.subr.mxu0 0.0
    %190 = vmatpush1.msra.mxu0 0.0
    %191 = vmatprep.subr.mxu0 0.0
    %192 = vmatpush1.msra.mxu0 0.0
    %193 = vmatprep.subr.mxu0 0.0
    %194 = vmatpush1.msra.mxu0 0.0
    %195 = vmatprep.subr.mxu0 0.0
    %196 = vmatpush1.msra.mxu0 0.0
    %197 = vmatprep.subr.mxu0 0.0
    %198 = vmatpush1.msra.mxu0 0.0
    %199 = vmatprep.subr.mxu0 0.0
    %200 = vmatpush1.msra.mxu0 0.0
    %201 = vmatprep.subr.mxu0 0.0
    %202 = vmatpush1.msra.mxu0 0.0
    %203 = vmatprep.subr.mxu0 0.0
    %204 = vmatpush1.msra.mxu0 0.0
    %205 = vmatprep.subr.mxu0 0.0
    %206 = vmatpush1.msra.mxu0 0.0
    %207 = vmatprep.subr.mxu0 0.0
    %208 = vmatpush1.msra.mxu0 0.0
    %209 = vmatprep.subr.mxu0 0.0
    %210 = vmatpush1.msra.mxu0 0.0
    %211 = vmatprep.subr.mxu0 0.0
    %212 = vmatpush1.msra.mxu0 0.0
    %213 = vmatprep.subr.mxu0 0.0
    %214 = vmatpush1.msra.mxu0 0.0
    %215 = vmatprep.mubr.f32.mxu0 0.0
    %216 = vmatmul.mubr.f32.gmra.mrb[0].mxu0 %v60
    %v217 = vpop.f32.mrb[0].mxu0
    %v218 = vadd.f32 %v149, %v217
    %v219 = vpop.f32.mrb[0].mxu0
    %220 = vmatprep.mubr.f32.mxu0 0.0
    %221 = vmatmul.mubr.f32.gmra.mrb[0].mxu0 %v63
    %v222 = vpop.f32.mrb[0].mxu0
    %v223 = vadd.f32 %v149, %v222
    %v224 = vpop.f32.mrb[0].mxu0
    %225 = vdwg.mxu0
    %v226 = vld [vmem:[#allocation2 + $0x20] sm:$0xff]
    %v227 = vld [vmem:[#allocation2 + $0x98] sm:$0xff]
    %v228 = vld [vmem:[#allocation2 + $0x110] sm:$0xff]
    %v229 = vld [vmem:[#allocation2 + $0x188] sm:$0xff]
    %v230 = vld [vmem:[%s4 + $0x4] sm:$0x1]
    %v232 = vlaneseq
    %v233 = vshrl.u32 %v232, 7
    %v234 = vsub.s32 0, %v233
    %v235 = vrot.slane %v230, %v234
    %237 = vmatprep.subr.mxu0 0.0
    %238 = vmatpush1.msra.mxu0 %v226
    %239 = vmatprep.subr.mxu0 0.0
    %240 = vmatpush1.msra.mxu0 %v227
    %241 = vmatprep.subr.mxu0 0.0
    %242 = vmatpush1.msra.mxu0 %v228
    %243 = vmatprep.subr.mxu0 0.0
    %244 = vmatpush1.msra.mxu0 %v229
    %245 = vmatprep.subr.mxu0 0.0
    %246 = vmatpush1.msra.mxu0 0.0
    %247 = vmatprep.subr.mxu0 0.0
    %248 = vmatpush1.msra.mxu0 0.0
    %249 = vmatprep.subr.mxu0 0.0
    %250 = vmatpush1.msra.mxu0 0.0
    %251 = vmatprep.subr.mxu0 0.0
    %252 = vmatpush1.msra.mxu0 0.0
    %253 = vmatprep.subr.mxu0 0.0
    %254 = vmatpush1.msra.mxu0 0.0
    %255 = vmatprep.subr.mxu0 0.0
    %256 = vmatpush1.msra.mxu0 0.0
    %257 = vmatprep.subr.mxu0 0.0
    %258 = vmatpush1.msra.mxu0 0.0
    %259 = vmatprep.subr.mxu0 0.0
    %260 = vmatpush1.msra.mxu0 0.0
    %261 = vmatprep.subr.mxu0 0.0
    %262 = vmatpush1.msra.mxu0 0.0
    %263 = vmatprep.subr.mxu0 0.0
    %264 = vmatpush1.msra.mxu0 0.0
    %265 = vmatprep.subr.mxu0 0.0
    %266 = vmatpush1.msra.mxu0 0.0
    %267 = vmatprep.subr.mxu0 0.0
    %268 = vmatpush1.msra.mxu0 0.0
    %269 = vmatprep.subr.mxu0 0.0
    %270 = vmatpush1.msra.mxu0 0.0
    %271 = vmatprep.subr.mxu0 0.0
    %272 = vmatpush1.msra.mxu0 0.0
    %273 = vmatprep.subr.mxu0 0.0
    %274 = vmatpush1.msra.mxu0 0.0
    %275 = vmatprep.subr.mxu0 0.0
    %276 = vmatpush1.msra.mxu0 0.0
    %277 = vmatprep.subr.mxu0 0.0
    %278 = vmatpush1.msra.mxu0 0.0
    %279 = vmatprep.subr.mxu0 0.0
    %280 = vmatpush1.msra.mxu0 0.0
    %281 = vmatprep.subr.mxu0 0.0
    %282 = vmatpush1.msra.mxu0 0.0
    %283 = vmatprep.subr.mxu0 0.0
    %284 = vmatpush1.msra.mxu0 0.0
    %285 = vmatprep.subr.mxu0 0.0
    %286 = vmatpush1.msra.mxu0 0.0
    %287 = vmatprep.subr.mxu0 0.0
    %288 = vmatpush1.msra.mxu0 0.0
    %289 = vmatprep.subr.mxu0 0.0
    %290 = vmatpush1.msra.mxu0 0.0
    %291 = vmatprep.subr.mxu0 0.0
    %292 = vmatpush1.msra.mxu0 0.0
    %293 = vmatprep.subr.mxu0 0.0
    %294 = vmatpush1.msra.mxu0 0.0
    %295 = vmatprep.subr.mxu0 0.0
    %296 = vmatpush1.msra.mxu0 0.0
    %297 = vmatprep.subr.mxu0 0.0
    %298 = vmatpush1.msra.mxu0 0.0
    %299 = vmatprep.subr.mxu0 0.0
    %300 = vmatpush1.msra.mxu0 0.0
    %301 = vmatprep.mubr.f32.mxu0 0.0
    %302 = vmatmul.mubr.f32.gmra.mrb[0].mxu0 %v60
    %v303 = vpop.f32.mrb[0].mxu0
    %v304 = vadd.f32 %v235, %v303
    %v305 = vpop.f32.mrb[0].mxu0
    %306 = vmatprep.mubr.f32.mxu0 0.0
    %307 = vmatmul.mubr.f32.gmra.mrb[0].mxu0 %v63
    %v308 = vpop.f32.mrb[0].mxu0
    %v309 = vadd.f32 %v235, %v308
    %v310 = vpop.f32.mrb[0].mxu0
    %311 = vdwg.mxu0
    %vm312 = vcmask 130048
    %v314 = vsel %vm312, %v132, 0
    %v317 = vsel %vm312, %v218, 0
    %319 = vmatprep.subr.mxu0 0.0
    %320 = vmatpush1.xpose.msra.mxu0 %v317
    %321 = vmatprep.subr.mxu0 0.0
    %322 = vmatpush1.xpose.msra.mxu0 0.0
    %323 = vmatprep.subr.mxu0 0.0
    %324 = vmatpush1.xpose.msra.mxu0 0.0
    %325 = vmatprep.subr.mxu0 0.0
    %326 = vmatpush1.xpose.msra.mxu0 0.0
    %327 = vmatprep.subr.mxu0 0.0
    %328 = vmatpush1.xpose.msra.mxu0 0.0
    %329 = vmatprep.subr.mxu0 0.0
    %330 = vmatpush1.xpose.msra.mxu0 0.0
    %331 = vmatprep.subr.mxu0 0.0
    %332 = vmatpush1.xpose.msra.mxu0 0.0
    %333 = vmatprep.subr.mxu0 0.0
    %334 = vmatpush1.xpose.msra.mxu0 0.0
    %335 = vmatprep.subr.mxu0 0.0
    %336 = vmatpush1.xpose.msra.mxu0 0.0
    %337 = vmatprep.subr.mxu0 0.0
    %338 = vmatpush1.xpose.msra.mxu0 0.0
    %339 = vmatprep.subr.mxu0 0.0
    %340 = vmatpush1.xpose.msra.mxu0 0.0
    %341 = vmatprep.subr.mxu0 0.0
    %342 = vmatpush1.xpose.msra.mxu0 0.0
    %343 = vmatprep.subr.mxu0 0.0
    %344 = vmatpush1.xpose.msra.mxu0 0.0
    %345 = vmatprep.subr.mxu0 0.0
    %346 = vmatpush1.xpose.msra.mxu0 0.0
    %347 = vmatprep.subr.mxu0 0.0
    %348 = vmatpush1.xpose.msra.mxu0 0.0
    %349 = vmatprep.subr.mxu0 0.0
    %350 = vmatpush1.xpose.msra.mxu0 0.0
    %351 = vmatprep.subr.mxu0 0.0
    %352 = vmatpush1.xpose.msra.mxu0 0.0
    %353 = vmatprep.subr.mxu0 0.0
    %354 = vmatpush1.xpose.msra.mxu0 0.0
    %355 = vmatprep.subr.mxu0 0.0
    %356 = vmatpush1.xpose.msra.mxu0 0.0
    %357 = vmatprep.subr.mxu0 0.0
    %358 = vmatpush1.xpose.msra.mxu0 0.0
    %359 = vmatprep.subr.mxu0 0.0
    %360 = vmatpush1.xpose.msra.mxu0 0.0
    %361 = vmatprep.subr.mxu0 0.0
    %362 = vmatpush1.xpose.msra.mxu0 0.0
    %363 = vmatprep.subr.mxu0 0.0
    %364 = vmatpush1.xpose.msra.mxu0 0.0
    %365 = vmatprep.subr.mxu0 0.0
    %366 = vmatpush1.xpose.msra.mxu0 0.0
    %367 = vmatprep.subr.mxu0 0.0
    %368 = vmatpush1.xpose.msra.mxu0 0.0
    %369 = vmatprep.subr.mxu0 0.0
    %370 = vmatpush1.xpose.msra.mxu0 0.0
    %371 = vmatprep.subr.mxu0 0.0
    %372 = vmatpush1.xpose.msra.mxu0 0.0
    %373 = vmatprep.subr.mxu0 0.0
    %374 = vmatpush1.xpose.msra.mxu0 0.0
    %375 = vmatprep.subr.mxu0 0.0
    %376 = vmatpush1.xpose.msra.mxu0 0.0
    %377 = vmatprep.subr.mxu0 0.0
    %378 = vmatpush1.xpose.msra.mxu0 0.0
    %379 = vmatprep.subr.mxu0 0.0
    %380 = vmatpush1.xpose.msra.mxu0 0.0
    %381 = vmatprep.subr.mxu0 0.0
    %382 = vmatpush1.xpose.msra.mxu0 0.0
    %383 = vmatprep.mubr.f32.mxu0 0.0
    %384 = vmatmul.mubr.f32.gmra.mrb[0].mxu0 %v314
    %v385 = vpop.f32.mrb[0].mxu0
    %v386 = vadd.f32 0.0, %v385
    %v387 = vpop.f32.mrb[0].mxu0
    %388 = vdwg.mxu0
    %v390 = vsel %vm312, %v137, 0
    %v393 = vsel %vm312, %v223, 0
    %395 = vmatprep.subr.mxu0 0.0
    %396 = vmatpush1.xpose.msra.mxu0 %v393
    %397 = vmatprep.subr.mxu0 0.0
    %398 = vmatpush1.xpose.msra.mxu0 0.0
    %399 = vmatprep.subr.mxu0 0.0
    %400 = vmatpush1.xpose.msra.mxu0 0.0
    %401 = vmatprep.subr.mxu0 0.0
    %402 = vmatpush1.xpose.msra.mxu0 0.0
    %403 = vmatprep.subr.mxu0 0.0
    %404 = vmatpush1.xpose.msra.mxu0 0.0
    %405 = vmatprep.subr.mxu0 0.0
    %406 = vmatpush1.xpose.msra.mxu0 0.0
    %407 = vmatprep.subr.mxu0 0.0
    %408 = vmatpush1.xpose.msra.mxu0 0.0
    %409 = vmatprep.subr.mxu0 0.0
    %410 = vmatpush1.xpose.msra.mxu0 0.0
    %411 = vmatprep.subr.mxu0 0.0
    %412 = vmatpush1.xpose.msra.mxu0 0.0
    %413 = vmatprep.subr.mxu0 0.0
    %414 = vmatpush1.xpose.msra.mxu0 0.0
    %415 = vmatprep.subr.mxu0 0.0
    %416 = vmatpush1.xpose.msra.mxu0 0.0
    %417 = vmatprep.subr.mxu0 0.0
    %418 = vmatpush1.xpose.msra.mxu0 0.0
    %419 = vmatprep.subr.mxu0 0.0
    %420 = vmatpush1.xpose.msra.mxu0 0.0
    %421 = vmatprep.subr.mxu0 0.0
    %422 = vmatpush1.xpose.msra.mxu0 0.0
    %423 = vmatprep.subr.mxu0 0.0
    %424 = vmatpush1.xpose.msra.mxu0 0.0
    %425 = vmatprep.subr.mxu0 0.0
    %426 = vmatpush1.xpose.msra.mxu0 0.0
    %427 = vmatprep.subr.mxu0 0.0
    %428 = vmatpush1.xpose.msra.mxu0 0.0
    %429 = vmatprep.subr.mxu0 0.0
    %430 = vmatpush1.xpose.msra.mxu0 0.0
    %431 = vmatprep.subr.mxu0 0.0
    %432 = vmatpush1.xpose.msra.mxu0 0.0
    %433 = vmatprep.subr.mxu0 0.0
    %434 = vmatpush1.xpose.msra.mxu0 0.0
    %435 = vmatprep.subr.mxu0 0.0
    %436 = vmatpush1.xpose.msra.mxu0 0.0
    %437 = vmatprep.subr.mxu0 0.0
    %438 = vmatpush1.xpose.msra.mxu0 0.0
    %439 = vmatprep.subr.mxu0 0.0
    %440 = vmatpush1.xpose.msra.mxu0 0.0
    %441 = vmatprep.subr.mxu0 0.0
    %442 = vmatpush1.xpose.msra.mxu0 0.0
    %443 = vmatprep.subr.mxu0 0.0
    %444 = vmatpush1.xpose.msra.mxu0 0.0
    %445 = vmatprep.subr.mxu0 0.0
    %446 = vmatpush1.xpose.msra.mxu0 0.0
    %447 = vmatprep.subr.mxu0 0.0
    %448 = vmatpush1.xpose.msra.mxu0 0.0
    %449 = vmatprep.subr.mxu0 0.0
    %450 = vmatpush1.xpose.msra.mxu0 0.0
    %451 = vmatprep.subr.mxu0 0.0
    %452 = vmatpush1.xpose.msra.mxu0 0.0
    %453 = vmatprep.subr.mxu0 0.0
    %454 = vmatpush1.xpose.msra.mxu0 0.0
    %455 = vmatprep.subr.mxu0 0.0
    %456 = vmatpush1.xpose.msra.mxu0 0.0
    %457 = vmatprep.subr.mxu0 0.0
    %458 = vmatpush1.xpose.msra.mxu0 0.0
    %459 = vmatprep.mubr.f32.mxu0 0.0
    %460 = vmatmul.mubr.f32.gmra.mrb[0].mxu0 %v390
    %v461 = vpop.f32.mrb[0].mxu0
    %v462 = vadd.f32 0.0, %v461
    %v463 = vpop.f32.mrb[0].mxu0
    %464 = vdwg.mxu0
    %v465 = vmul.f32 %v386, 0.25
    %v466 = vmul.f32 %v462, 0.25
    %vm467 = vcmask 64512
    %v468 = vsel %vm467, %v465, -inf
    %469 = vmax.xlane.f32.xlu0 %v468
    %v470 = vpop.xlane.xlu0 %469
    %v471 = vsel %vm467, %v466, -inf
    %472 = vmax.xlane.f32.xlu0 %v471
    %v473 = vpop.xlane.xlu0 %472
    %v474 = vsub.f32 %v465, %v470
    %v475 = vsub.f32 %v466, %v473
    %v476 = vmul.f32 %v474, 1.442695
    %v477 = vpow.pop %v476
    %v478 = vmul.f32 %v475, 1.442695
    %v479 = vpow.pop %v478
    %v480 = vsel %vm467, %v477, 0.0
    %481 = vadd.xlane.f32.xlu0 %v480
    %v482 = vpop.xlane.xlu0 %481
    %v483 = vsel %vm467, %v479, 0.0
    %484 = vadd.xlane.f32.xlu0 %v483
    %v485 = vpop.xlane.xlu0 %484
    %v486 = vrcp.pop %v482
    %v487 = vrcp.pop %v485
    %v488 = vmul.f32 %v477, %v486
    %v489 = vmul.f32 %v479, %v487
    %v491 = vsel %vm467, %v488, 0
    %493 = vmatprep.subr.mxu0 0.0
    %494 = vmatpush1.msra.mxu0 %v304
    %495 = vmatprep.subr.mxu0 0.0
    %496 = vmatpush1.msra.mxu0 0.0
    %497 = vmatprep.subr.mxu0 0.0
    %498 = vmatpush1.msra.mxu0 0.0
    %499 = vmatprep.subr.mxu0 0.0
    %500 = vmatpush1.msra.mxu0 0.0
    %501 = vmatprep.subr.mxu0 0.0
    %502 = vmatpush1.msra.mxu0 0.0
    %503 = vmatprep.subr.mxu0 0.0
    %504 = vmatpush1.msra.mxu0 0.0
    %505 = vmatprep.subr.mxu0 0.0
    %506 = vmatpush1.msra.mxu0 0.0
    %507 = vmatprep.subr.mxu0 0.0
    %508 = vmatpush1.msra.mxu0 0.0
    %509 = vmatprep.subr.mxu0 0.0
    %510 = vmatpush1.msra.mxu0 0.0
    %511 = vmatprep.subr.mxu0 0.0
    %512 = vmatpush1.msra.mxu0 0.0
    %513 = vmatprep.subr.mxu0 0.0
    %514 = vmatpush1.msra.mxu0 0.0
    %515 = vmatprep.subr.mxu0 0.0
    %516 = vmatpush1.msra.mxu0 0.0
    %517 = vmatprep.subr.mxu0 0.0
    %518 = vmatpush1.msra.mxu0 0.0
    %519 = vmatprep.subr.mxu0 0.0
    %520 = vmatpush1.msra.mxu0 0.0
    %521 = vmatprep.subr.mxu0 0.0
    %522 = vmatpush1.msra.mxu0 0.0
    %523 = vmatprep.subr.mxu0 0.0
    %524 = vmatpush1.msra.mxu0 0.0
    %525 = vmatprep.subr.mxu0 0.0
    %526 = vmatpush1.msra.mxu0 0.0
    %527 = vmatprep.subr.mxu0 0.0
    %528 = vmatpush1.msra.mxu0 0.0
    %529 = vmatprep.subr.mxu0 0.0
    %530 = vmatpush1.msra.mxu0 0.0
    %531 = vmatprep.subr.mxu0 0.0
    %532 = vmatpush1.msra.mxu0 0.0
    %533 = vmatprep.subr.mxu0 0.0
    %534 = vmatpush1.msra.mxu0 0.0
    %535 = vmatprep.subr.mxu0 0.0
    %536 = vmatpush1.msra.mxu0 0.0
    %537 = vmatprep.subr.mxu0 0.0
    %538 = vmatpush1.msra.mxu0 0.0
    %539 = vmatprep.subr.mxu0 0.0
    %540 = vmatpush1.msra.mxu0 0.0
    %541 = vmatprep.subr.mxu0 0.0
    %542 = vmatpush1.msra.mxu0 0.0
    %543 = vmatprep.subr.mxu0 0.0
    %544 = vmatpush1.msra.mxu0 0.0
    %545 = vmatprep.subr.mxu0 0.0
    %546 = vmatpush1.msra.mxu0 0.0
    %547 = vmatprep.subr.mxu0 0.0
    %548 = vmatpush1.msra.mxu0 0.0
    %549 = vmatprep.subr.mxu0 0.0
    %550 = vmatpush1.msra.mxu0 0.0
    %551 = vmatprep.subr.mxu0 0.0
    %552 = vmatpush1.msra.mxu0 0.0
    %553 = vmatprep.subr.mxu0 0.0
    %554 = vmatpush1.msra.mxu0 0.0
    %555 = vmatprep.subr.mxu0 0.0
    %556 = vmatpush1.msra.mxu0 0.0
    %557 = vmatprep.mubr.f32.mxu0 0.0
    %558 = vmatmul.mubr.f32.gmra.mrb[0].mxu0 %v491
    %v559 = vpop.f32.mrb[0].mxu0
    %v560 = vadd.f32 0.0, %v559
    %v561 = vpop.f32.mrb[0].mxu0
    %562 = vdwg.mxu0
    %v564 = vsel %vm467, %v489, 0
    %566 = vmatprep.subr.mxu0 0.0
    %567 = vmatpush1.msra.mxu0 %v309
    %568 = vmatprep.subr.mxu0 0.0
    %569 = vmatpush1.msra.mxu0 0.0
    %570 = vmatprep.subr.mxu0 0.0
    %571 = vmatpush1.msra.mxu0 0.0
    %572 = vmatprep.subr.mxu0 0.0
    %573 = vmatpush1.msra.mxu0 0.0
    %574 = vmatprep.subr.mxu0 0.0
    %575 = vmatpush1.msra.mxu0 0.0
    %576 = vmatprep.subr.mxu0 0.0
    %577 = vmatpush1.msra.mxu0 0.0
    %578 = vmatprep.subr.mxu0 0.0
    %579 = vmatpush1.msra.mxu0 0.0
    %580 = vmatprep.subr.mxu0 0.0
    %581 = vmatpush1.msra.mxu0 0.0
    %582 = vmatprep.subr.mxu0 0.0
    %583 = vmatpush1.msra.mxu0 0.0
    %584 = vmatprep.subr.mxu0 0.0
    %585 = vmatpush1.msra.mxu0 0.0
    %586 = vmatprep.subr.mxu0 0.0
    %587 = vmatpush1.msra.mxu0 0.0
    %588 = vmatprep.subr.mxu0 0.0
    %589 = vmatpush1.msra.mxu0 0.0
    %590 = vmatprep.subr.mxu0 0.0
    %591 = vmatpush1.msra.mxu0 0.0
    %592 = vmatprep.subr.mxu0 0.0
    %593 = vmatpush1.msra.mxu0 0.0
    %594 = vmatprep.subr.mxu0 0.0
    %595 = vmatpush1.msra.mxu0 0.0
    %596 = vmatprep.subr.mxu0 0.0
    %597 = vmatpush1.msra.mxu0 0.0
    %598 = vmatprep.subr.mxu0 0.0
    %599 = vmatpush1.msra.mxu0 0.0
    %600 = vmatprep.subr.mxu0 0.0
    %601 = vmatpush1.msra.mxu0 0.0
    %602 = vmatprep.subr.mxu0 0.0
    %603 = vmatpush1.msra.mxu0 0.0
    %604 = vmatprep.subr.mxu0 0.0
    %605 = vmatpush1.msra.mxu0 0.0
    %606 = vmatprep.subr.mxu0 0.0
    %607 = vmatpush1.msra.mxu0 0.0
    %608 = vmatprep.subr.mxu0 0.0
    %609 = vmatpush1.msra.mxu0 0.0
    %610 = vmatprep.subr.mxu0 0.0
    %611 = vmatpush1.msra.mxu0 0.0
    %612 = vmatprep.subr.mxu0 0.0
    %613 = vmatpush1.msra.mxu0 0.0
    %614 = vmatprep.subr.mxu0 0.0
    %615 = vmatpush1.msra.mxu0 0.0
    %616 = vmatprep.subr.mxu0 0.0
    %617 = vmatpush1.msra.mxu0 0.0
    %618 = vmatprep.subr.mxu0 0.0
    %619 = vmatpush1.msra.mxu0 0.0
    %620 = vmatprep.subr.mxu0 0.0
    %621 = vmatpush1.msra.mxu0 0.0
    %622 = vmatprep.subr.mxu0 0.0
    %623 = vmatpush1.msra.mxu0 0.0
    %624 = vmatprep.subr.mxu0 0.0
    %625 = vmatpush1.msra.mxu0 0.0
    %626 = vmatprep.subr.mxu0 0.0
    %627 = vmatpush1.msra.mxu0 0.0
    %628 = vmatprep.subr.mxu0 0.0
    %629 = vmatpush1.msra.mxu0 0.0
    %630 = vmatprep.mubr.f32.mxu0 0.0
    %631 = vmatmul.mubr.f32.gmra.mrb[0].mxu0 %v564
    %v632 = vpop.f32.mrb[0].mxu0
    %v633 = vadd.f32 0.0, %v632
    %v634 = vpop.f32.mrb[0].mxu0
    %635 = vdwg.mxu0
    %v636 = vld [vmem:[#allocation2 + $0x8] sm:$0xff]
    %v637 = vld [vmem:[#allocation2 + $0x80] sm:$0xff]
    %v638 = vld [vmem:[#allocation2 + $0xf8] sm:$0xff]
    %v639 = vld [vmem:[#allocation2 + $0x170] sm:$0xff]
    %v640 = vld [vmem:[%s4 + $0x1] sm:$0x1]
    %v642 = vlaneseq
    %v643 = vshrl.u32 %v642, 7
    %v644 = vsub.s32 0, %v643
    %v645 = vrot.slane %v640, %v644
    %647 = vmatprep.subr.mxu0 0.0
    %648 = vmatpush1.msra.mxu0 %v636
    %649 = vmatprep.subr.mxu0 0.0
    %650 = vmatpush1.msra.mxu0 %v637
    %651 = vmatprep.subr.mxu0 0.0
    %652 = vmatpush1.msra.mxu0 %v638
    %653 = vmatprep.subr.mxu0 0.0
    %654 = vmatpush1.msra.mxu0 %v639
    %655 = vmatprep.subr.mxu0 0.0
    %656 = vmatpush1.msra.mxu0 0.0
    %657 = vmatprep.subr.mxu0 0.0
    %658 = vmatpush1.msra.mxu0 0.0
    %659 = vmatprep.subr.mxu0 0.0
    %660 = vmatpush1.msra.mxu0 0.0
    %661 = vmatprep.subr.mxu0 0.0
    %662 = vmatpush1.msra.mxu0 0.0
    %663 = vmatprep.subr.mxu0 0.0
    %664 = vmatpush1.msra.mxu0 0.0
    %665 = vmatprep.subr.mxu0 0.0
    %666 = vmatpush1.msra.mxu0 0.0
    %667 = vmatprep.subr.mxu0 0.0
    %668 = vmatpush1.msra.mxu0 0.0
    %669 = vmatprep.subr.mxu0 0.0
    %670 = vmatpush1.msra.mxu0 0.0
    %671 = vmatprep.subr.mxu0 0.0
    %672 = vmatpush1.msra.mxu0 0.0
    %673 = vmatprep.subr.mxu0 0.0
    %674 = vmatpush1.msra.mxu0 0.0
    %675 = vmatprep.subr.mxu0 0.0
    %676 = vmatpush1.msra.mxu0 0.0
    %677 = vmatprep.subr.mxu0 0.0
    %678 = vmatpush1.msra.mxu0 0.0
    %679 = vmatprep.subr.mxu0 0.0
    %680 = vmatpush1.msra.mxu0 0.0
    %681 = vmatprep.subr.mxu0 0.0
    %682 = vmatpush1.msra.mxu0 0.0
    %683 = vmatprep.subr.mxu0 0.0
    %684 = vmatpush1.msra.mxu0 0.0
    %685 = vmatprep.subr.mxu0 0.0
    %686 = vmatpush1.msra.mxu0 0.0
    %687 = vmatprep.subr.mxu0 0.0
    %688 = vmatpush1.msra.mxu0 0.0
    %689 = vmatprep.subr.mxu0 0.0
    %690 = vmatpush1.msra.mxu0 0.0
    %691 = vmatprep.subr.mxu0 0.0
    %692 = vmatpush1.msra.mxu0 0.0
    %693 = vmatprep.subr.mxu0 0.0
    %694 = vmatpush1.msra.mxu0 0.0
    %695 = vmatprep.subr.mxu0 0.0
    %696 = vmatpush1.msra.mxu0 0.0
    %697 = vmatprep.subr.mxu0 0.0
    %698 = vmatpush1.msra.mxu0 0.0
    %699 = vmatprep.subr.mxu0 0.0
    %700 = vmatpush1.msra.mxu0 0.0
    %701 = vmatprep.subr.mxu0 0.0
    %702 = vmatpush1.msra.mxu0 0.0
    %703 = vmatprep.subr.mxu0 0.0
    %704 = vmatpush1.msra.mxu0 0.0
    %705 = vmatprep.subr.mxu0 0.0
    %706 = vmatpush1.msra.mxu0 0.0
    %707 = vmatprep.subr.mxu0 0.0
    %708 = vmatpush1.msra.mxu0 0.0
    %709 = vmatprep.subr.mxu0 0.0
    %710 = vmatpush1.msra.mxu0 0.0
    %711 = vmatprep.mubr.f32.mxu0 0.0
    %712 = vmatmul.mubr.f32.gmra.mrb[0].mxu0 %v60
    %v713 = vpop.f32.mrb[0].mxu0
    %v714 = vadd.f32 %v645, %v713
    %v715 = vpop.f32.mrb[0].mxu0
    %716 = vmatprep.mubr.f32.mxu0 0.0
    %717 = vmatmul.mubr.f32.gmra.mrb[0].mxu0 %v63
    %v718 = vpop.f32.mrb[0].mxu0
    %v719 = vadd.f32 %v645, %v718
    %v720 = vpop.f32.mrb[0].mxu0
    %721 = vdwg.mxu0
    %v722 = vld [vmem:[#allocation2 + $0x18] sm:$0xff]
    %v723 = vld [vmem:[#allocation2 + $0x90] sm:$0xff]
    %v724 = vld [vmem:[#allocation2 + $0x108] sm:$0xff]
    %v725 = vld [vmem:[#allocation2 + $0x180] sm:$0xff]
    %v726 = vld [vmem:[%s4 + $0x3] sm:$0x1]
    %v728 = vlaneseq
    %v729 = vshrl.u32 %v728, 7
    %v730 = vsub.s32 0, %v729
    %v731 = vrot.slane %v726, %v730
    %733 = vmatprep.subr.mxu0 0.0
    %734 = vmatpush1.msra.mxu0 %v722
    %735 = vmatprep.subr.mxu0 0.0
    %736 = vmatpush1.msra.mxu0 %v723
    %737 = vmatprep.subr.mxu0 0.0
    %738 = vmatpush1.msra.mxu0 %v724
    %739 = vmatprep.subr.mxu0 0.0
    %740 = vmatpush1.msra.mxu0 %v725
    %741 = vmatprep.subr.mxu0 0.0
    %742 = vmatpush1.msra.mxu0 0.0
    %743 = vmatprep.subr.mxu0 0.0
    %744 = vmatpush1.msra.mxu0 0.0
    %745 = vmatprep.subr.mxu0 0.0
    %746 = vmatpush1.msra.mxu0 0.0
    %747 = vmatprep.subr.mxu0 0.0
    %748 = vmatpush1.msra.mxu0 0.0
    %749 = vmatprep.subr.mxu0 0.0
    %750 = vmatpush1.msra.mxu0 0.0
    %751 = vmatprep.subr.mxu0 0.0
    %752 = vmatpush1.msra.mxu0 0.0
    %753 = vmatprep.subr.mxu0 0.0
    %754 = vmatpush1.msra.mxu0 0.0
    %755 = vmatprep.subr.mxu0 0.0
    %756 = vmatpush1.msra.mxu0 0.0
    %757 = vmatprep.subr.mxu0 0.0
    %758 = vmatpush1.msra.mxu0 0.0
    %759 = vmatprep.subr.mxu0 0.0
    %760 = vmatpush1.msra.mxu0 0.0
    %761 = vmatprep.subr.mxu0 0.0
    %762 = vmatpush1.msra.mxu0 0.0
    %763 = vmatprep.subr.mxu0 0.0
    %764 = vmatpush1.msra.mxu0 0.0
    %765 = vmatprep.subr.mxu0 0.0
    %766 = vmatpush1.msra.mxu0 0.0
    %767 = vmatprep.subr.mxu0 0.0
    %768 = vmatpush1.msra.mxu0 0.0
    %769 = vmatprep.subr.mxu0 0.0
    %770 = vmatpush1.msra.mxu0 0.0
    %771 = vmatprep.subr.mxu0 0.0
    %772 = vmatpush1.msra.mxu0 0.0
    %773 = vmatprep.subr.mxu0 0.0
    %774 = vmatpush1.msra.mxu0 0.0
    %775 = vmatprep.subr.mxu0 0.0
    %776 = vmatpush1.msra.mxu0 0.0
    %777 = vmatprep.subr.mxu0 0.0
    %778 = vmatpush1.msra.mxu0 0.0
    %779 = vmatprep.subr.mxu0 0.0
    %780 = vmatpush1.msra.mxu0 0.0
    %781 = vmatprep.subr.mxu0 0.0
    %782 = vmatpush1.msra.mxu0 0.0
    %783 = vmatprep.subr.mxu0 0.0
    %784 = vmatpush1.msra.mxu0 0.0
    %785 = vmatprep.subr.mxu0 0.0
    %786 = vmatpush1.msra.mxu0 0.0
    %787 = vmatprep.subr.mxu0 0.0
    %788 = vmatpush1.msra.mxu0 0.0
    %789 = vmatprep.subr.mxu0 0.0
    %790 = vmatpush1.msra.mxu0 0.0
    %791 = vmatprep.subr.mxu0 0.0
    %792 = vmatpush1.msra.mxu0 0.0
    %793 = vmatprep.subr.mxu0 0.0
    %794 = vmatpush1.msra.mxu0 0.0
    %795 = vmatprep.subr.mxu0 0.0
    %796 = vmatpush1.msra.mxu0 0.0
    %797 = vmatprep.mubr.f32.mxu0 0.0
    %798 = vmatmul.mubr.f32.gmra.mrb[0].mxu0 %v60
    %v799 = vpop.f32.mrb[0].mxu0
    %v800 = vadd.f32 %v731, %v799
    %v801 = vpop.f32.mrb[0].mxu0
    %802 = vmatprep.mubr.f32.mxu0 0.0
    %803 = vmatmul.mubr.f32.gmra.mrb[0].mxu0 %v63
    %v804 = vpop.f32.mrb[0].mxu0
    %v805 = vadd.f32 %v731, %v804
    %v806 = vpop.f32.mrb[0].mxu0
    %807 = vdwg.mxu0
    %v808 = vld [vmem:[#allocation2 + $0x28] sm:$0xff]
    %v809 = vld [vmem:[#allocation2 + $0xa0] sm:$0xff]
    %v810 = vld [vmem:[#allocation2 + $0x118] sm:$0xff]
    %v811 = vld [vmem:[#allocation2 + $0x190] sm:$0xff]
    %v812 = vld [vmem:[%s4 + $0x5] sm:$0x1]
    %v814 = vlaneseq
    %v815 = vshrl.u32 %v814, 7
    %v816 = vsub.s32 0, %v815
    %v817 = vrot.slane %v812, %v816
    %819 = vmatprep.subr.mxu0 0.0
    %820 = vmatpush1.msra.mxu0 %v808
    %821 = vmatprep.subr.mxu0 0.0
    %822 = vmatpush1.msra.mxu0 %v809
    %823 = vmatprep.subr.mxu0 0.0
    %824 = vmatpush1.msra.mxu0 %v810
    %825 = vmatprep.subr.mxu0 0.0
    %826 = vmatpush1.msra.mxu0 %v811
    %827 = vmatprep.subr.mxu0 0.0
    %828 = vmatpush1.msra.mxu0 0.0
    %829 = vmatprep.subr.mxu0 0.0
    %830 = vmatpush1.msra.mxu0 0.0
    %831 = vmatprep.subr.mxu0 0.0
    %832 = vmatpush1.msra.mxu0 0.0
    %833 = vmatprep.subr.mxu0 0.0
    %834 = vmatpush1.msra.mxu0 0.0
    %835 = vmatprep.subr.mxu0 0.0
    %836 = vmatpush1.msra.mxu0 0.0
    %837 = vmatprep.subr.mxu0 0.0
    %838 = vmatpush1.msra.mxu0 0.0
    %839 = vmatprep.subr.mxu0 0.0
    %840 = vmatpush1.msra.mxu0 0.0
    %841 = vmatprep.subr.mxu0 0.0
    %842 = vmatpush1.msra.mxu0 0.0
    %843 = vmatprep.subr.mxu0 0.0
    %844 = vmatpush1.msra.mxu0 0.0
    %845 = vmatprep.subr.mxu0 0.0
    %846 = vmatpush1.msra.mxu0 0.0
    %847 = vmatprep.subr.mxu0 0.0
    %848 = vmatpush1.msra.mxu0 0.0
    %849 = vmatprep.subr.mxu0 0.0
    %850 = vmatpush1.msra.mxu0 0.0
    %851 = vmatprep.subr.mxu0 0.0
    %852 = vmatpush1.msra.mxu0 0.0
    %853 = vmatprep.subr.mxu0 0.0
    %854 = vmatpush1.msra.mxu0 0.0
    %855 = vmatprep.subr.mxu0 0.0
    %856 = vmatpush1.msra.mxu0 0.0
    %857 = vmatprep.subr.mxu0 0.0
    %858 = vmatpush1.msra.mxu0 0.0
    %859 = vmatprep.subr.mxu0 0.0
    %860 = vmatpush1.msra.mxu0 0.0
    %861 = vmatprep.subr.mxu0 0.0
    %862 = vmatpush1.msra.mxu0 0.0
    %863 = vmatprep.subr.mxu0 0.0
    %864 = vmatpush1.msra.mxu0 0.0
    %865 = vmatprep.subr.mxu0 0.0
    %866 = vmatpush1.msra.mxu0 0.0
    %867 = vmatprep.subr.mxu0 0.0
    %868 = vmatpush1.msra.mxu0 0.0
    %869 = vmatprep.subr.mxu0 0.0
    %870 = vmatpush1.msra.mxu0 0.0
    %871 = vmatprep.subr.mxu0 0.0
    %872 = vmatpush1.msra.mxu0 0.0
    %873 = vmatprep.subr.mxu0 0.0
    %874 = vmatpush1.msra.mxu0 0.0
    %875 = vmatprep.subr.mxu0 0.0
    %876 = vmatpush1.msra.mxu0 0.0
    %877 = vmatprep.subr.mxu0 0.0
    %878 = vmatpush1.msra.mxu0 0.0
    %879 = vmatprep.subr.mxu0 0.0
    %880 = vmatpush1.msra.mxu0 0.0
    %881 = vmatprep.subr.mxu0 0.0
    %882 = vmatpush1.msra.mxu0 0.0
    %883 = vmatprep.mubr.f32.mxu0 0.0
    %884 = vmatmul.mubr.f32.gmra.mrb[0].mxu0 %v60
    %v885 = vpop.f32.mrb[0].mxu0
    %v886 = vadd.f32 %v817, %v885
    %v887 = vpop.f32.mrb[0].mxu0
    %888 = vmatprep.mubr.f32.mxu0 0.0
    %889 = vmatmul.mubr.f32.gmra.mrb[0].mxu0 %v63
    %v890 = vpop.f32.mrb[0].mxu0
    %v891 = vadd.f32 %v817, %v890
    %v892 = vpop.f32.mrb[0].mxu0
    %893 = vdwg.mxu0
    %v895 = vsel %vm312, %v714, 0
    %v898 = vsel %vm312, %v800, 0
    %900 = vmatprep.subr.mxu0 0.0
    %901 = vmatpush1.xpose.msra.mxu0 %v898
    %902 = vmatprep.subr.mxu0 0.0
    %903 = vmatpush1.xpose.msra.mxu0 0.0
    %904 = vmatprep.subr.mxu0 0.0
    %905 = vmatpush1.xpose.msra.mxu0 0.0
    %906 = vmatprep.subr.mxu0 0.0
    %907 = vmatpush1.xpose.msra.mxu0 0.0
    %908 = vmatprep.subr.mxu0 0.0
    %909 = vmatpush1.xpose.msra.mxu0 0.0
    %910 = vmatprep.subr.mxu0 0.0
    %911 = vmatpush1.xpose.msra.mxu0 0.0
    %912 = vmatprep.subr.mxu0 0.0
    %913 = vmatpush1.xpose.msra.mxu0 0.0
    %914 = vmatprep.subr.mxu0 0.0
    %915 = vmatpush1.xpose.msra.mxu0 0.0
    %916 = vmatprep.subr.mxu0 0.0
    %917 = vmatpush1.xpose.msra.mxu0 0.0
    %918 = vmatprep.subr.mxu0 0.0
    %919 = vmatpush1.xpose.msra.mxu0 0.0
    %920 = vmatprep.subr.mxu0 0.0
    %921 = vmatpush1.xpose.msra.mxu0 0.0
    %922 = vmatprep.subr.mxu0 0.0
    %923 = vmatpush1.xpose.msra.mxu0 0.0
    %924 = vmatprep.subr.mxu0 0.0
    %925 = vmatpush1.xpose.msra.mxu0 0.0
    %926 = vmatprep.subr.mxu0 0.0
    %927 = vmatpush1.xpose.msra.mxu0 0.0
    %928 = vmatprep.subr.mxu0 0.0
    %929 = vmatpush1.xpose.msra.mxu0 0.0
    %930 = vmatprep.subr.mxu0 0.0
    %931 = vmatpush1.xpose.msra.mxu0 0.0
    %932 = vmatprep.subr.mxu0 0.0
    %933 = vmatpush1.xpose.msra.mxu0 0.0
    %934 = vmatprep.subr.mxu0 0.0
    %935 = vmatpush1.xpose.msra.mxu0 0.0
    %936 = vmatprep.subr.mxu0 0.0
    %937 = vmatpush1.xpose.msra.mxu0 0.0
    %938 = vmatprep.subr.mxu0 0.0
    %939 = vmatpush1.xpose.msra.mxu0 0.0
    %940 = vmatprep.subr.mxu0 0.0
    %941 = vmatpush1.xpose.msra.mxu0 0.0
    %942 = vmatprep.subr.mxu0 0.0
    %943 = vmatpush1.xpose.msra.mxu0 0.0
    %944 = vmatprep.subr.mxu0 0.0
    %945 = vmatpush1.xpose.msra.mxu0 0.0
    %946 = vmatprep.subr.mxu0 0.0
    %947 = vmatpush1.xpose.msra.mxu0 0.0
    %948 = vmatprep.subr.mxu0 0.0
    %949 = vmatpush1.xpose.msra.mxu0 0.0
    %950 = vmatprep.subr.mxu0 0.0
    %951 = vmatpush1.xpose.msra.mxu0 0.0
    %952 = vmatprep.subr.mxu0 0.0
    %953 = vmatpush1.xpose.msra.mxu0 0.0
    %954 = vmatprep.subr.mxu0 0.0
    %955 = vmatpush1.xpose.msra.mxu0 0.0
    %956 = vmatprep.subr.mxu0 0.0
    %957 = vmatpush1.xpose.msra.mxu0 0.0
    %958 = vmatprep.subr.mxu0 0.0
    %959 = vmatpush1.xpose.msra.mxu0 0.0
    %960 = vmatprep.subr.mxu0 0.0
    %961 = vmatpush1.xpose.msra.mxu0 0.0
    %962 = vmatprep.subr.mxu0 0.0
    %963 = vmatpush1.xpose.msra.mxu0 0.0
    %964 = vmatprep.mubr.f32.mxu0 0.0
    %965 = vmatmul.mubr.f32.gmra.mrb[0].mxu0 %v895
    %v966 = vpop.f32.mrb[0].mxu0
    %v967 = vadd.f32 0.0, %v966
    %v968 = vpop.f32.mrb[0].mxu0
    %969 = vdwg.mxu0
    %v971 = vsel %vm312, %v719, 0
    %v974 = vsel %vm312, %v805, 0
    %976 = vmatprep.subr.mxu0 0.0
    %977 = vmatpush1.xpose.msra.mxu0 %v974
    %978 = vmatprep.subr.mxu0 0.0
    %979 = vmatpush1.xpose.msra.mxu0 0.0
    %980 = vmatprep.subr.mxu0 0.0
    %981 = vmatpush1.xpose.msra.mxu0 0.0
    %982 = vmatprep.subr.mxu0 0.0
    %983 = vmatpush1.xpose.msra.mxu0 0.0
    %984 = vmatprep.subr.mxu0 0.0
    %985 = vmatpush1.xpose.msra.mxu0 0.0
    %986 = vmatprep.subr.mxu0 0.0
    %987 = vmatpush1.xpose.msra.mxu0 0.0
    %988 = vmatprep.subr.mxu0 0.0
    %989 = vmatpush1.xpose.msra.mxu0 0.0
    %990 = vmatprep.subr.mxu0 0.0
    %991 = vmatpush1.xpose.msra.mxu0 0.0
    %992 = vmatprep.subr.mxu0 0.0
    %993 = vmatpush1.xpose.msra.mxu0 0.0
    %994 = vmatprep.subr.mxu0 0.0
    %995 = vmatpush1.xpose.msra.mxu0 0.0
    %996 = vmatprep.subr.mxu0 0.0
    %997 = vmatpush1.xpose.msra.mxu0 0.0
    %998 = vmatprep.subr.mxu0 0.0
    %999 = vmatpush1.xpose.msra.mxu0 0.0
    %1000 = vmatprep.subr.mxu0 0.0
    %1001 = vmatpush1.xpose.msra.mxu0 0.0
    %1002 = vmatprep.subr.mxu0 0.0
    %1003 = vmatpush1.xpose.msra.mxu0 0.0
    %1004 = vmatprep.subr.mxu0 0.0
    %1005 = vmatpush1.xpose.msra.mxu0 0.0
    %1006 = vmatprep.subr.mxu0 0.0
    %1007 = vmatpush1.xpose.msra.mxu0 0.0
    %1008 = vmatprep.subr.mxu0 0.0
    %1009 = vmatpush1.xpose.msra.mxu0 0.0
    %1010 = vmatprep.subr.mxu0 0.0
    %1011 = vmatpush1.xpose.msra.mxu0 0.0
    %1012 = vmatprep.subr.mxu0 0.0
    %1013 = vmatpush1.xpose.msra.mxu0 0.0
    %1014 = vmatprep.subr.mxu0 0.0
    %1015 = vmatpush1.xpose.msra.mxu0 0.0
    %1016 = vmatprep.subr.mxu0 0.0
    %1017 = vmatpush1.xpose.msra.mxu0 0.0
    %1018 = vmatprep.subr.mxu0 0.0
    %1019 = vmatpush1.xpose.msra.mxu0 0.0
    %1020 = vmatprep.subr.mxu0 0.0
    %1021 = vmatpush1.xpose.msra.mxu0 0.0
    %1022 = vmatprep.subr.mxu0 0.0
    %1023 = vmatpush1.xpose.msra.mxu0 0.0
    %1024 = vmatprep.subr.mxu0 0.0
    %1025 = vmatpush1.xpose.msra.mxu0 0.0
    %1026 = vmatprep.subr.mxu0 0.0
    %1027 = vmatpush1.xpose.msra.mxu0 0.0
    %1028 = vmatprep.subr.mxu0 0.0
    %1029 = vmatpush1.xpose.msra.mxu0 0.0
    %1030 = vmatprep.subr.mxu0 0.0
    %1031 = vmatpush1.xpose.msra.mxu0 0.0
    %1032 = vmatprep.subr.mxu0 0.0
    %1033 = vmatpush1.xpose.msra.mxu0 0.0
    %1034 = vmatprep.subr.mxu0 0.0
    %1035 = vmatpush1.xpose.msra.mxu0 0.0
    %1036 = vmatprep.subr.mxu0 0.0
    %1037 = vmatpush1.xpose.msra.mxu0 0.0
    %1038 = vmatprep.subr.mxu0 0.0
    %1039 = vmatpush1.xpose.msra.mxu0 0.0
    %1040 = vmatprep.mubr.f32.mxu0 0.0
    %1041 = vmatmul.mubr.f32.gmra.mrb[0].mxu0 %v971
    %v1042 = vpop.f32.mrb[0].mxu0
    %v1043 = vadd.f32 0.0, %v1042
    %v1044 = vpop.f32.mrb[0].mxu0
    %1045 = vdwg.mxu0
    %v1046 = vmul.f32 %v967, 0.25
    %v1047 = vmul.f32 %v1043, 0.25
    %v1048 = vsel %vm467, %v1046, -inf
    %1049 = vmax.xlane.f32.xlu0 %v1048
    %v1050 = vpop.xlane.xlu0 %1049
    %v1051 = vsel %vm467, %v1047, -inf
    %1052 = vmax.xlane.f32.xlu0 %v1051
    %v1053 = vpop.xlane.xlu0 %1052
    %v1054 = vsub.f32 %v1046, %v1050
    %v1055 = vsub.f32 %v1047, %v1053
    %v1056 = vmul.f32 %v1054, 1.442695
    %v1057 = vpow.pop %v1056
    %v1058 = vmul.f32 %v1055, 1.442695
    %v1059 = vpow.pop %v1058
    %v1060 = vsel %vm467, %v1057, 0.0
    %1061 = vadd.xlane.f32.xlu0 %v1060
    %v1062 = vpop.xlane.xlu0 %1061
    %v1063 = vsel %vm467, %v1059, 0.0
    %1064 = vadd.xlane.f32.xlu0 %v1063
    %v1065 = vpop.xlane.xlu0 %1064
    %v1066 = vrcp.pop %v1062
    %v1067 = vrcp.pop %v1065
    %v1068 = vmul.f32 %v1057, %v1066
    %v1069 = vmul.f32 %v1059, %v1067
    %v1071 = vsel %vm467, %v1068, 0
    %1073 = vmatprep.subr.mxu0 0.0
    %1074 = vmatpush1.msra.mxu0 %v886
    %1075 = vmatprep.subr.mxu0 0.0
    %1076 = vmatpush1.msra.mxu0 0.0
    %1077 = vmatprep.subr.mxu0 0.0
    %1078 = vmatpush1.msra.mxu0 0.0
    %1079 = vmatprep.subr.mxu0 0.0
    %1080 = vmatpush1.msra.mxu0 0.0
    %1081 = vmatprep.subr.mxu0 0.0
    %1082 = vmatpush1.msra.mxu0 0.0
    %1083 = vmatprep.subr.mxu0 0.0
    %1084 = vmatpush1.msra.mxu0 0.0
    %1085 = vmatprep.subr.mxu0 0.0
    %1086 = vmatpush1.msra.mxu0 0.0
    %1087 = vmatprep.subr.mxu0 0.0
    %1088 = vmatpush1.msra.mxu0 0.0
    %1089 = vmatprep.subr.mxu0 0.0
    %1090 = vmatpush1.msra.mxu0 0.0
    %1091 = vmatprep.subr.mxu0 0.0
    %1092 = vmatpush1.msra.mxu0 0.0
    %1093 = vmatprep.subr.mxu0 0.0
    %1094 = vmatpush1.msra.mxu0 0.0
    %1095 = vmatprep.subr.mxu0 0.0
    %1096 = vmatpush1.msra.mxu0 0.0
    %1097 = vmatprep.subr.mxu0 0.0
    %1098 = vmatpush1.msra.mxu0 0.0
    %1099 = vmatprep.subr.mxu0 0.0
    %1100 = vmatpush1.msra.mxu0 0.0
    %1101 = vmatprep.subr.mxu0 0.0
    %1102 = vmatpush1.msra.mxu0 0.0
    %1103 = vmatprep.subr.mxu0 0.0
    %1104 = vmatpush1.msra.mxu0 0.0
    %1105 = vmatprep.subr.mxu0 0.0
    %1106 = vmatpush1.msra.mxu0 0.0
    %1107 = vmatprep.subr.mxu0 0.0
    %1108 = vmatpush1.msra.mxu0 0.0
    %1109 = vmatprep.subr.mxu0 0.0
    %1110 = vmatpush1.msra.mxu0 0.0
    %1111 = vmatprep.subr.mxu0 0.0
    %1112 = vmatpush1.msra.mxu0 0.0
    %1113 = vmatprep.subr.mxu0 0.0
    %1114 = vmatpush1.msra.mxu0 0.0
    %1115 = vmatprep.subr.mxu0 0.0
    %1116 = vmatpush1.msra.mxu0 0.0
    %1117 = vmatprep.subr.mxu0 0.0
    %1118 = vmatpush1.msra.mxu0 0.0
    %1119 = vmatprep.subr.mxu0 0.0
    %1120 = vmatpush1.msra.mxu0 0.0
    %1121 = vmatprep.subr.mxu0 0.0
    %1122 = vmatpush1.msra.mxu0 0.0
    %1123 = vmatprep.subr.mxu0 0.0
    %1124 = vmatpush1.msra.mxu0 0.0
    %1125 = vmatprep.subr.mxu0 0.0
    %1126 = vmatpush1.msra.mxu0 0.0
    %1127 = vmatprep.subr.mxu0 0.0
    %1128 = vmatpush1.msra.mxu0 0.0
    %1129 = vmatprep.subr.mxu0 0.0
    %1130 = vmatpush1.msra.mxu0 0.0
    %1131 = vmatprep.subr.mxu0 0.0
    %1132 = vmatpush1.msra.mxu0 0.0
    %1133 = vmatprep.subr.mxu0 0.0
    %1134 = vmatpush1.msra.mxu0 0.0
    %1135 = vmatprep.subr.mxu0 0.0
    %1136 = vmatpush1.msra.mxu0 0.0
    %1137 = vmatprep.mubr.f32.mxu0 0.0
    %1138 = vmatmul.mubr.f32.gmra.mrb[0].mxu0 %v1071
    %v1139 = vpop.f32.mrb[0].mxu0
    %v1140 = vadd.f32 0.0, %v1139
    %v1141 = vpop.f32.mrb[0].mxu0
    %1142 = vdwg.mxu0
    %v1144 = vsel %vm467, %v1069, 0
    %1146 = vmatprep.subr.mxu0 0.0
    %1147 = vmatpush1.msra.mxu0 %v891
    %1148 = vmatprep.subr.mxu0 0.0
    %1149 = vmatpush1.msra.mxu0 0.0
    %1150 = vmatprep.subr.mxu0 0.0
    %1151 = vmatpush1.msra.mxu0 0.0
    %1152 = vmatprep.subr.mxu0 0.0
    %1153 = vmatpush1.msra.mxu0 0.0
    %1154 = vmatprep.subr.mxu0 0.0
    %1155 = vmatpush1.msra.mxu0 0.0
    %1156 = vmatprep.subr.mxu0 0.0
    %1157 = vmatpush1.msra.mxu0 0.0
    %1158 = vmatprep.subr.mxu0 0.0
    %1159 = vmatpush1.msra.mxu0 0.0
    %1160 = vmatprep.subr.mxu0 0.0
    %1161 = vmatpush1.msra.mxu0 0.0
    %1162 = vmatprep.subr.mxu0 0.0
    %1163 = vmatpush1.msra.mxu0 0.0
    %1164 = vmatprep.subr.mxu0 0.0
    %1165 = vmatpush1.msra.mxu0 0.0
    %1166 = vmatprep.subr.mxu0 0.0
    %1167 = vmatpush1.msra.mxu0 0.0
    %1168 = vmatprep.subr.mxu0 0.0
    %1169 = vmatpush1.msra.mxu0 0.0
    %1170 = vmatprep.subr.mxu0 0.0
    %1171 = vmatpush1.msra.mxu0 0.0
    %1172 = vmatprep.subr.mxu0 0.0
    %1173 = vmatpush1.msra.mxu0 0.0
    %1174 = vmatprep.subr.mxu0 0.0
    %1175 = vmatpush1.msra.mxu0 0.0
    %1176 = vmatprep.subr.mxu0 0.0
    %1177 = vmatpush1.msra.mxu0 0.0
    %1178 = vmatprep.subr.mxu0 0.0
    %1179 = vmatpush1.msra.mxu0 0.0
    %1180 = vmatprep.subr.mxu0 0.0
    %1181 = vmatpush1.msra.mxu0 0.0
    %1182 = vmatprep.subr.mxu0 0.0
    %1183 = vmatpush1.msra.mxu0 0.0
    %1184 = vmatprep.subr.mxu0 0.0
    %1185 = vmatpush1.msra.mxu0 0.0
    %1186 = vmatprep.subr.mxu0 0.0
    %1187 = vmatpush1.msra.mxu0 0.0
    %1188 = vmatprep.subr.mxu0 0.0
    %1189 = vmatpush1.msra.mxu0 0.0
    %1190 = vmatprep.subr.mxu0 0.0
    %1191 = vmatpush1.msra.mxu0 0.0
    %1192 = vmatprep.subr.mxu0 0.0
    %1193 = vmatpush1.msra.mxu0 0.0
    %1194 = vmatprep.subr.mxu0 0.0
    %1195 = vmatpush1.msra.mxu0 0.0
    %1196 = vmatprep.subr.mxu0 0.0
    %1197 = vmatpush1.msra.mxu0 0.0
    %1198 = vmatprep.subr.mxu0 0.0
    %1199 = vmatpush1.msra.mxu0 0.0
    %1200 = vmatprep.subr.mxu0 0.0
    %1201 = vmatpush1.msra.mxu0 0.0
    %1202 = vmatprep.subr.mxu0 0.0
    %1203 = vmatpush1.msra.mxu0 0.0
    %1204 = vmatprep.subr.mxu0 0.0
    %1205 = vmatpush1.msra.mxu0 0.0
    %1206 = vmatprep.subr.mxu0 0.0
    %1207 = vmatpush1.msra.mxu0 0.0
    %1208 = vmatprep.subr.mxu0 0.0
    %1209 = vmatpush1.msra.mxu0 0.0
    %1210 = vmatprep.mubr.f32.mxu0 0.0
    %1211 = vmatmul.mubr.f32.gmra.mrb[0].mxu0 %v1144
    %v1212 = vpop.f32.mrb[0].mxu0
    %v1213 = vadd.f32 0.0, %v1212
    %v1214 = vpop.f32.mrb[0].mxu0
    %1215 = vdwg.mxu0
    %v1217 = vsel %vm312, %v1140, 0
    %v1220 = vsel %vm312, %v1213, 0
    %1222 = vmatprep.subr.mxu0 0.0
    %1223 = vmatpush1.msra.mxu0 %v45
    %1224 = vmatprep.subr.mxu0 0.0
    %1225 = vmatpush1.msra.mxu0 %v46
    %1226 = vmatprep.subr.mxu0 0.0
    %1227 = vmatpush1.msra.mxu0 0.0
    %1228 = vmatprep.subr.mxu0 0.0
    %1229 = vmatpush1.msra.mxu0 0.0
    %1230 = vmatprep.subr.mxu0 0.0
    %1231 = vmatpush1.msra.mxu0 0.0
    %1232 = vmatprep.subr.mxu0 0.0
    %1233 = vmatpush1.msra.mxu0 0.0
    %1234 = vmatprep.subr.mxu0 0.0
    %1235 = vmatpush1.msra.mxu0 0.0
    %1236 = vmatprep.subr.mxu0 0.0
    %1237 = vmatpush1.msra.mxu0 0.0
    %1238 = vmatprep.subr.mxu0 0.0
    %1239 = vmatpush1.msra.mxu0 0.0
    %1240 = vmatprep.subr.mxu0 0.0
    %1241 = vmatpush1.msra.mxu0 0.0
    %1242 = vmatprep.subr.mxu0 0.0
    %1243 = vmatpush1.msra.mxu0 0.0
    %1244 = vmatprep.subr.mxu0 0.0
    %1245 = vmatpush1.msra.mxu0 0.0
    %1246 = vmatprep.subr.mxu0 0.0
    %1247 = vmatpush1.msra.mxu0 0.0
    %1248 = vmatprep.subr.mxu0 0.0
    %1249 = vmatpush1.msra.mxu0 0.0
    %1250 = vmatprep.subr.mxu0 0.0
    %1251 = vmatpush1.msra.mxu0 0.0
    %1252 = vmatprep.subr.mxu0 0.0
    %1253 = vmatpush1.msra.mxu0 0.0
    %1254 = vmatprep.subr.mxu0 0.0
    %1255 = vmatpush1.msra.mxu0 0.0
    %1256 = vmatprep.subr.mxu0 0.0
    %1257 = vmatpush1.msra.mxu0 0.0
    %1258 = vmatprep.subr.mxu0 0.0
    %1259 = vmatpush1.msra.mxu0 0.0
    %1260 = vmatprep.subr.mxu0 0.0
    %1261 = vmatpush1.msra.mxu0 0.0
    %1262 = vmatprep.subr.mxu0 0.0
    %1263 = vmatpush1.msra.mxu0 0.0
    %1264 = vmatprep.subr.mxu0 0.0
    %1265 = vmatpush1.msra.mxu0 0.0
    %1266 = vmatprep.subr.mxu0 0.0
    %1267 = vmatpush1.msra.mxu0 0.0
    %1268 = vmatprep.subr.mxu0 0.0
    %1269 = vmatpush1.msra.mxu0 0.0
    %1270 = vmatprep.subr.mxu0 0.0
    %1271 = vmatpush1.msra.mxu0 0.0
    %1272 = vmatprep.subr.mxu0 0.0
    %1273 = vmatpush1.msra.mxu0 0.0
    %1274 = vmatprep.subr.mxu0 0.0
    %1275 = vmatpush1.msra.mxu0 0.0
    %1276 = vmatprep.subr.mxu0 0.0
    %1277 = vmatpush1.msra.mxu0 0.0
    %1278 = vmatprep.subr.mxu0 0.0
    %1279 = vmatpush1.msra.mxu0 0.0
    %1280 = vmatprep.subr.mxu0 0.0
    %1281 = vmatpush1.msra.mxu0 0.0
    %1282 = vmatprep.subr.mxu0 0.0
    %1283 = vmatpush1.msra.mxu0 0.0
    %1284 = vmatprep.subr.mxu0 0.0
    %1285 = vmatpush1.msra.mxu0 0.0
    %1286 = vmatprep.mubr.f32.mxu0 0.0
    %1287 = vmatmul.mubr.f32.gmra.mrb[0].mxu0 %v1217
    %v1288 = vpop.f32.mrb[0].mxu0
    %v1289 = vadd.f32 0.0, %v1288
    %v1290 = vpop.f32.mrb[0].mxu0
    %1291 = vmatprep.mubr.f32.mxu0 0.0
    %1292 = vmatmul.mubr.f32.gmra.mrb[0].mxu0 %v1220
    %v1293 = vpop.f32.mrb[0].mxu0
    %v1294 = vadd.f32 0.0, %v1293
    %v1295 = vpop.f32.mrb[0].mxu0
    %1296 = vdwg.mxu0
    %v1298 = vsel %vm312, %v560, 0
    %v1301 = vsel %vm312, %v633, 0
    %1303 = vmatprep.subr.mxu0 0.0
    %1304 = vmatpush1.msra.mxu0 %v43
    %1305 = vmatprep.subr.mxu0 0.0
    %1306 = vmatpush1.msra.mxu0 %v44
    %1307 = vmatprep.subr.mxu0 0.0
    %1308 = vmatpush1.msra.mxu0 0.0
    %1309 = vmatprep.subr.mxu0 0.0
    %1310 = vmatpush1.msra.mxu0 0.0
    %1311 = vmatprep.subr.mxu0 0.0
    %1312 = vmatpush1.msra.mxu0 0.0
    %1313 = vmatprep.subr.mxu0 0.0
    %1314 = vmatpush1.msra.mxu0 0.0
    %1315 = vmatprep.subr.mxu0 0.0
    %1316 = vmatpush1.msra.mxu0 0.0
    %1317 = vmatprep.subr.mxu0 0.0
    %1318 = vmatpush1.msra.mxu0 0.0
    %1319 = vmatprep.subr.mxu0 0.0
    %1320 = vmatpush1.msra.mxu0 0.0
    %1321 = vmatprep.subr.mxu0 0.0
    %1322 = vmatpush1.msra.mxu0 0.0
    %1323 = vmatprep.subr.mxu0 0.0
    %1324 = vmatpush1.msra.mxu0 0.0
    %1325 = vmatprep.subr.mxu0 0.0
    %1326 = vmatpush1.msra.mxu0 0.0
    %1327 = vmatprep.subr.mxu0 0.0
    %1328 = vmatpush1.msra.mxu0 0.0
    %1329 = vmatprep.subr.mxu0 0.0
    %1330 = vmatpush1.msra.mxu0 0.0
    %1331 = vmatprep.subr.mxu0 0.0
    %1332 = vmatpush1.msra.mxu0 0.0
    %1333 = vmatprep.subr.mxu0 0.0
    %1334 = vmatpush1.msra.mxu0 0.0
    %1335 = vmatprep.subr.mxu0 0.0
    %1336 = vmatpush1.msra.mxu0 0.0
    %1337 = vmatprep.subr.mxu0 0.0
    %1338 = vmatpush1.msra.mxu0 0.0
    %1339 = vmatprep.subr.mxu0 0.0
    %1340 = vmatpush1.msra.mxu0 0.0
    %1341 = vmatprep.subr.mxu0 0.0
    %1342 = vmatpush1.msra.mxu0 0.0
    %1343 = vmatprep.subr.mxu0 0.0
    %1344 = vmatpush1.msra.mxu0 0.0
    %1345 = vmatprep.subr.mxu0 0.0
    %1346 = vmatpush1.msra.mxu0 0.0
    %1347 = vmatprep.subr.mxu0 0.0
    %1348 = vmatpush1.msra.mxu0 0.0
    %1349 = vmatprep.subr.mxu0 0.0
    %1350 = vmatpush1.msra.mxu0 0.0
    %1351 = vmatprep.subr.mxu0 0.0
    %1352 = vmatpush1.msra.mxu0 0.0
    %1353 = vmatprep.subr.mxu0 0.0
    %1354 = vmatpush1.msra.mxu0 0.0
    %1355 = vmatprep.subr.mxu0 0.0
    %1356 = vmatpush1.msra.mxu0 0.0
    %1357 = vmatprep.subr.mxu0 0.0
    %1358 = vmatpush1.msra.mxu0 0.0
    %1359 = vmatprep.subr.mxu0 0.0
    %1360 = vmatpush1.msra.mxu0 0.0
    %1361 = vmatprep.subr.mxu0 0.0
    %1362 = vmatpush1.msra.mxu0 0.0
    %1363 = vmatprep.subr.mxu0 0.0
    %1364 = vmatpush1.msra.mxu0 0.0
    %1365 = vmatprep.subr.mxu0 0.0
    %1366 = vmatpush1.msra.mxu0 0.0
    %1367 = vmatprep.mubr.f32.mxu0 0.0
    %1368 = vmatmul.mubr.f32.gmra.mrb[0].mxu0 %v1298
    %v1369 = vpop.f32.mrb[0].mxu0
    %v1370 = vadd.f32 %v1289, %v1369
    %v1371 = vpop.f32.mrb[0].mxu0
    %1372 = vmatprep.mubr.f32.mxu0 0.0
    %1373 = vmatmul.mubr.f32.gmra.mrb[0].mxu0 %v1301
    %v1374 = vpop.f32.mrb[0].mxu0
    %v1375 = vadd.f32 %v1294, %v1374
    %v1376 = vpop.f32.mrb[0].mxu0
    %1377 = vdwg.mxu0
    %v1378 = vld [vmem:[%s4 + $0x6] sm:$0x1]
    %v1380 = vlaneseq
    %v1381 = vshrl.u32 %v1380, 7
    %v1382 = vsub.s32 0, %v1381
    %v1383 = vrot.slane %v1378, %v1382
    %v1385 = vadd.f32 %v1370, %v1383
    %v1386 = vadd.f32 %v1375, %v1383
    %v1387 = vadd.f32 %v1385, %v39
    %v1388 = vadd.f32 %v1386, %v40
    %v1389 = vld [vmem:[%s4 + $0x7] sm:$0x1]
    %v1390 = vld [vmem:[%s4 + $0x8] sm:$0x1]
    %v1391 = vsel %vm58, %v1387, 0.0
    %1392 = vadd.xlane.f32.xlu0 %v1391
    %v1393 = vpop.xlane.xlu0 %1392
    %v1394 = vsel %vm58, %v1388, 0.0
    %1395 = vadd.xlane.f32.xlu0 %v1394
    %v1396 = vpop.xlane.xlu0 %1395
    %v1397 = vrcp.pop 32.0
    %v1398 = vmul.f32 %v1393, %v1397
    %v1399 = vmul.f32 %v1396, %v1397
    %v1400 = vsub.f32 %v1387, %v1398
    %v1401 = vsub.f32 %v1388, %v1399
    %v1402 = vmul.f32 %v1400, %v1400
    %v1403 = vmul.f32 %v1401, %v1401
    %v1404 = vsel %vm58, %v1402, 0.0
    %1405 = vadd.xlane.f32.xlu0 %v1404
    %v1406 = vpop.xlane.xlu0 %1405
    %v1407 = vsel %vm58, %v1403, 0.0
    %1408 = vadd.xlane.f32.xlu0 %v1407
    %v1409 = vpop.xlane.xlu0 %1408
    %v1410 = vmul.f32 %v1406, %v1397
    %v1411 = vmul.f32 %v1409, %v1397
    %v1412 = vadd.f32 %v1410, 1e-05
    %v1413 = vadd.f32 %v1411, 1e-05
    %v1414 = vrsqrt.pop %v1412
    %v1415 = vrsqrt.pop %v1413
    %v1416 = vmul.f32 %v1400, %v1414
    %v1417 = vmul.f32 %v1401, %v1415
    %v1419 = vlaneseq
    %v1420 = vshrl.u32 %v1419, 7
    %v1421 = vsub.s32 0, %v1420
    %v1422 = vrot.slane %v1389, %v1421
    %v1424 = vmul.f32 %v1416, %v1422
    %v1425 = vmul.f32 %v1417, %v1422
    %v1427 = vlaneseq
    %v1428 = vshrl.u32 %v1427, 7
    %v1429 = vsub.s32 0, %v1428
    %v1430 = vrot.slane %v1390, %v1429
    %v1432 = vadd.f32 %v1424, %v1430
    %v1433 = vadd.f32 %v1425, %v1430
    %v1434 = vld [vmem:[#allocation2 + $0x68] sm:$0xff]
    %v1435 = vld [vmem:[#allocation2 + $0xe0] sm:$0xff]
    %v1436 = vld [vmem:[#allocation2 + $0x158] sm:$0xff]
    %v1437 = vld [vmem:[#allocation2 + $0x1d0] sm:$0xff]
    %v1438 = vld [vmem:[#allocation2 + $0x38] sm:$0xff]
    %v1439 = vld [vmem:[#allocation2 + $0xb0] sm:$0xff]
    %v1440 = vld [vmem:[#allocation2 + $0x128] sm:$0xff]
    %v1441 = vld [vmem:[#allocation2 + $0x1a0] sm:$0xff]
    %v1442 = vld [vmem:[%s4 + $0x9] sm:$0x1]
    %v1444 = vlaneseq
    %v1445 = vshrl.u32 %v1444, 7
    %v1446 = vsub.s32 0, %v1445
    %v1447 = vrot.slane %v1442, %v1446
    %v1450 = vsel %vm58, %v1432, 0
    %v1453 = vsel %vm58, %v1433, 0
    %1455 = vmatprep.subr.mxu0 0.0
    %1456 = vmatpush1.msra.mxu0 %v1438
    %1457 = vmatprep.subr.mxu0 0.0
    %1458 = vmatpush1.msra.mxu0 %v1439
    %1459 = vmatprep.subr.mxu0 0.0
    %1460 = vmatpush1.msra.mxu0 %v1440
    %1461 = vmatprep.subr.mxu0 0.0
    %1462 = vmatpush1.msra.mxu0 %v1441
    %1463 = vmatprep.subr.mxu0 0.0
    %1464 = vmatpush1.msra.mxu0 0.0
    %1465 = vmatprep.subr.mxu0 0.0
    %1466 = vmatpush1.msra.mxu0 0.0
    %1467 = vmatprep.subr.mxu0 0.0
    %1468 = vmatpush1.msra.mxu0 0.0
    %1469 = vmatprep.subr.mxu0 0.0
    %1470 = vmatpush1.msra.mxu0 0.0
    %1471 = vmatprep.subr.mxu0 0.0
    %1472 = vmatpush1.msra.mxu0 0.0
    %1473 = vmatprep.subr.mxu0 0.0
    %1474 = vmatpush1.msra.mxu0 0.0
    %1475 = vmatprep.subr.mxu0 0.0
    %1476 = vmatpush1.msra.mxu0 0.0
    %1477 = vmatprep.subr.mxu0 0.0
    %1478 = vmatpush1.msra.mxu0 0.0
    %1479 = vmatprep.subr.mxu0 0.0
    %1480 = vmatpush1.msra.mxu0 0.0
    %1481 = vmatprep.subr.mxu0 0.0
    %1482 = vmatpush1.msra.mxu0 0.0
    %1483 = vmatprep.subr.mxu0 0.0
    %1484 = vmatpush1.msra.mxu0 0.0
    %1485 = vmatprep.subr.mxu0 0.0
    %1486 = vmatpush1.msra.mxu0 0.0
    %1487 = vmatprep.subr.mxu0 0.0
    %1488 = vmatpush1.msra.mxu0 0.0
    %1489 = vmatprep.subr.mxu0 0.0
    %1490 = vmatpush1.msra.mxu0 0.0
    %1491 = vmatprep.subr.mxu0 0.0
    %1492 = vmatpush1.msra.mxu0 0.0
    %1493 = vmatprep.subr.mxu0 0.0
    %1494 = vmatpush1.msra.mxu0 0.0
    %1495 = vmatprep.subr.mxu0 0.0
    %1496 = vmatpush1.msra.mxu0 0.0
    %1497 = vmatprep.subr.mxu0 0.0
    %1498 = vmatpush1.msra.mxu0 0.0
    %1499 = vmatprep.subr.mxu0 0.0
    %1500 = vmatpush1.msra.mxu0 0.0
    %1501 = vmatprep.subr.mxu0 0.0
    %1502 = vmatpush1.msra.mxu0 0.0
    %1503 = vmatprep.subr.mxu0 0.0
    %1504 = vmatpush1.msra.mxu0 0.0
    %1505 = vmatprep.subr.mxu0 0.0
    %1506 = vmatpush1.msra.mxu0 0.0
    %1507 = vmatprep.subr.mxu0 0.0
    %1508 = vmatpush1.msra.mxu0 0.0
    %1509 = vmatprep.subr.mxu0 0.0
    %1510 = vmatpush1.msra.mxu0 0.0
    %1511 = vmatprep.subr.mxu0 0.0
    %1512 = vmatpush1.msra.mxu0 0.0
    %1513 = vmatprep.subr.mxu0 0.0
    %1514 = vmatpush1.msra.mxu0 0.0
    %1515 = vmatprep.subr.mxu0 0.0
    %1516 = vmatpush1.msra.mxu0 0.0
    %1517 = vmatprep.subr.mxu0 0.0
    %1518 = vmatpush1.msra.mxu0 0.0
    %1519 = vmatprep.mubr.f32.mxu0 0.0
    %1520 = vmatmul.mubr.f32.gmra.mrb[0].mxu0 %v1450
    %v1521 = vpop.f32.mrb[0].mxu0
    %v1522 = vadd.f32 %v1447, %v1521
    %v1523 = vpop.f32.mrb[0].mxu0
    %1524 = vmatprep.mubr.f32.mxu0 0.0
    %1525 = vmatmul.mubr.f32.gmra.mrb[0].mxu0 %v1453
    %v1526 = vpop.f32.mrb[0].mxu0
    %v1527 = vadd.f32 %v1447, %v1526
    %v1528 = vpop.f32.mrb[0].mxu0
    %1529 = vdwg.mxu0
    %v1530 = vld [vmem:[#allocation2 + $0x48] sm:$0xff]
    %v1531 = vld [vmem:[#allocation2 + $0xc0] sm:$0xff]
    %v1532 = vld [vmem:[#allocation2 + $0x138] sm:$0xff]
    %v1533 = vld [vmem:[#allocation2 + $0x1b0] sm:$0xff]
    %v1534 = vld [vmem:[%s4 + $0xb] sm:$0x1]
    %v1536 = vlaneseq
    %v1537 = vshrl.u32 %v1536, 7
    %v1538 = vsub.s32 0, %v1537
    %v1539 = vrot.slane %v1534, %v1538
    %v1542 = vsel %vm58, %v41, 0
    %v1545 = vsel %vm58, %v42, 0
    %1547 = vmatprep.subr.mxu0 0.0
    %1548 = vmatpush1.msra.mxu0 %v1530
    %1549 = vmatprep.subr.mxu0 0.0
    %1550 = vmatpush1.msra.mxu0 %v1531
    %1551 = vmatprep.subr.mxu0 0.0
    %1552 = vmatpush1.msra.mxu0 %v1532
    %1553 = vmatprep.subr.mxu0 0.0
    %1554 = vmatpush1.msra.mxu0 %v1533
    %1555 = vmatprep.subr.mxu0 0.0
    %1556 = vmatpush1.msra.mxu0 0.0
    %1557 = vmatprep.subr.mxu0 0.0
    %1558 = vmatpush1.msra.mxu0 0.0
    %1559 = vmatprep.subr.mxu0 0.0
    %1560 = vmatpush1.msra.mxu0 0.0
    %1561 = vmatprep.subr.mxu0 0.0
    %1562 = vmatpush1.msra.mxu0 0.0
    %1563 = vmatprep.subr.mxu0 0.0
    %1564 = vmatpush1.msra.mxu0 0.0
    %1565 = vmatprep.subr.mxu0 0.0
    %1566 = vmatpush1.msra.mxu0 0.0
    %1567 = vmatprep.subr.mxu0 0.0
    %1568 = vmatpush1.msra.mxu0 0.0
    %1569 = vmatprep.subr.mxu0 0.0
    %1570 = vmatpush1.msra.mxu0 0.0
    %1571 = vmatprep.subr.mxu0 0.0
    %1572 = vmatpush1.msra.mxu0 0.0
    %1573 = vmatprep.subr.mxu0 0.0
    %1574 = vmatpush1.msra.mxu0 0.0
    %1575 = vmatprep.subr.mxu0 0.0
    %1576 = vmatpush1.msra.mxu0 0.0
    %1577 = vmatprep.subr.mxu0 0.0
    %1578 = vmatpush1.msra.mxu0 0.0
    %1579 = vmatprep.subr.mxu0 0.0
    %1580 = vmatpush1.msra.mxu0 0.0
    %1581 = vmatprep.subr.mxu0 0.0
    %1582 = vmatpush1.msra.mxu0 0.0
    %1583 = vmatprep.subr.mxu0 0.0
    %1584 = vmatpush1.msra.mxu0 0.0
    %1585 = vmatprep.subr.mxu0 0.0
    %1586 = vmatpush1.msra.mxu0 0.0
    %1587 = vmatprep.subr.mxu0 0.0
    %1588 = vmatpush1.msra.mxu0 0.0
    %1589 = vmatprep.subr.mxu0 0.0
    %1590 = vmatpush1.msra.mxu0 0.0
    %1591 = vmatprep.subr.mxu0 0.0
    %1592 = vmatpush1.msra.mxu0 0.0
    %1593 = vmatprep.subr.mxu0 0.0
    %1594 = vmatpush1.msra.mxu0 0.0
    %1595 = vmatprep.subr.mxu0 0.0
    %1596 = vmatpush1.msra.mxu0 0.0
    %1597 = vmatprep.subr.mxu0 0.0
    %1598 = vmatpush1.msra.mxu0 0.0
    %1599 = vmatprep.subr.mxu0 0.0
    %1600 = vmatpush1.msra.mxu0 0.0
    %1601 = vmatprep.subr.mxu0 0.0
    %1602 = vmatpush1.msra.mxu0 0.0
    %1603 = vmatprep.subr.mxu0 0.0
    %1604 = vmatpush1.msra.mxu0 0.0
    %1605 = vmatprep.subr.mxu0 0.0
    %1606 = vmatpush1.msra.mxu0 0.0
    %1607 = vmatprep.subr.mxu0 0.0
    %1608 = vmatpush1.msra.mxu0 0.0
    %1609 = vmatprep.subr.mxu0 0.0
    %1610 = vmatpush1.msra.mxu0 0.0
    %1611 = vmatprep.mubr.f32.mxu0 0.0
    %1612 = vmatmul.mubr.f32.gmra.mrb[0].mxu0 %v1542
    %v1613 = vpop.f32.mrb[0].mxu0
    %v1614 = vadd.f32 %v1539, %v1613
    %v1615 = vpop.f32.mrb[0].mxu0
    %1616 = vmatprep.mubr.f32.mxu0 0.0
    %1617 = vmatmul.mubr.f32.gmra.mrb[0].mxu0 %v1545
    %v1618 = vpop.f32.mrb[0].mxu0
    %v1619 = vadd.f32 %v1539, %v1618
    %v1620 = vpop.f32.mrb[0].mxu0
    %1621 = vdwg.mxu0
    %v1622 = vld [vmem:[#allocation2 + $0x58] sm:$0xff]
    %v1623 = vld [vmem:[#allocation2 + $0xd0] sm:$0xff]
    %v1624 = vld [vmem:[#allocation2 + $0x148] sm:$0xff]
    %v1625 = vld [vmem:[#allocation2 + $0x1c0] sm:$0xff]
    %v1626 = vld [vmem:[%s4 + $0xd] sm:$0x1]
    %v1628 = vlaneseq
    %v1629 = vshrl.u32 %v1628, 7
    %v1630 = vsub.s32 0, %v1629
    %v1631 = vrot.slane %v1626, %v1630
    %1633 = vmatprep.subr.mxu0 0.0
    %1634 = vmatpush1.msra.mxu0 %v1622
    %1635 = vmatprep.subr.mxu0 0.0
    %1636 = vmatpush1.msra.mxu0 %v1623
    %1637 = vmatprep.subr.mxu0 0.0
    %1638 = vmatpush1.msra.mxu0 %v1624
    %1639 = vmatprep.subr.mxu0 0.0
    %1640 = vmatpush1.msra.mxu0 %v1625
    %1641 = vmatprep.subr.mxu0 0.0
    %1642 = vmatpush1.msra.mxu0 0.0
    %1643 = vmatprep.subr.mxu0 0.0
    %1644 = vmatpush1.msra.mxu0 0.0
    %1645 = vmatprep.subr.mxu0 0.0
    %1646 = vmatpush1.msra.mxu0 0.0
    %1647 = vmatprep.subr.mxu0 0.0
    %1648 = vmatpush1.msra.mxu0 0.0
    %1649 = vmatprep.subr.mxu0 0.0
    %1650 = vmatpush1.msra.mxu0 0.0
    %1651 = vmatprep.subr.mxu0 0.0
    %1652 = vmatpush1.msra.mxu0 0.0
    %1653 = vmatprep.subr.mxu0 0.0
    %1654 = vmatpush1.msra.mxu0 0.0
    %1655 = vmatprep.subr.mxu0 0.0
    %1656 = vmatpush1.msra.mxu0 0.0
    %1657 = vmatprep.subr.mxu0 0.0
    %1658 = vmatpush1.msra.mxu0 0.0
    %1659 = vmatprep.subr.mxu0 0.0
    %1660 = vmatpush1.msra.mxu0 0.0
    %1661 = vmatprep.subr.mxu0 0.0
    %1662 = vmatpush1.msra.mxu0 0.0
    %1663 = vmatprep.subr.mxu0 0.0
    %1664 = vmatpush1.msra.mxu0 0.0
    %1665 = vmatprep.subr.mxu0 0.0
    %1666 = vmatpush1.msra.mxu0 0.0
    %1667 = vmatprep.subr.mxu0 0.0
    %1668 = vmatpush1.msra.mxu0 0.0
    %1669 = vmatprep.subr.mxu0 0.0
    %1670 = vmatpush1.msra.mxu0 0.0
    %1671 = vmatprep.subr.mxu0 0.0
    %1672 = vmatpush1.msra.mxu0 0.0
    %1673 = vmatprep.subr.mxu0 0.0
    %1674 = vmatpush1.msra.mxu0 0.0
    %1675 = vmatprep.subr.mxu0 0.0
    %1676 = vmatpush1.msra.mxu0 0.0
    %1677 = vmatprep.subr.mxu0 0.0
    %1678 = vmatpush1.msra.mxu0 0.0
    %1679 = vmatprep.subr.mxu0 0.0
    %1680 = vmatpush1.msra.mxu0 0.0
    %1681 = vmatprep.subr.mxu0 0.0
    %1682 = vmatpush1.msra.mxu0 0.0
    %1683 = vmatprep.subr.mxu0 0.0
    %1684 = vmatpush1.msra.mxu0 0.0
    %1685 = vmatprep.subr.mxu0 0.0
    %1686 = vmatpush1.msra.mxu0 0.0
    %1687 = vmatprep.subr.mxu0 0.0
    %1688 = vmatpush1.msra.mxu0 0.0
    %1689 = vmatprep.subr.mxu0 0.0
    %1690 = vmatpush1.msra.mxu0 0.0
    %1691 = vmatprep.subr.mxu0 0.0
    %1692 = vmatpush1.msra.mxu0 0.0
    %1693 = vmatprep.subr.mxu0 0.0
    %1694 = vmatpush1.msra.mxu0 0.0
    %1695 = vmatprep.subr.mxu0 0.0
    %1696 = vmatpush1.msra.mxu0 0.0
    %1697 = vmatprep.mubr.f32.mxu0 0.0
    %1698 = vmatmul.mubr.f32.gmra.mrb[0].mxu0 %v1542
    %v1699 = vpop.f32.mrb[0].mxu0
    %v1700 = vadd.f32 %v1631, %v1699
    %v1701 = vpop.f32.mrb[0].mxu0
    %1702 = vmatprep.mubr.f32.mxu0 0.0
    %1703 = vmatmul.mubr.f32.gmra.mrb[0].mxu0 %v1545
    %v1704 = vpop.f32.mrb[0].mxu0
    %v1705 = vadd.f32 %v1631, %v1704
    %v1706 = vpop.f32.mrb[0].mxu0
    %1707 = vdwg.mxu0
    %v1709 = vsel %vm312, %v1522, 0
    %v1712 = vsel %vm312, %v1614, 0
    %1714 = vmatprep.subr.mxu0 0.0
    %1715 = vmatpush1.xpose.msra.mxu0 %v1712
    %1716 = vmatprep.subr.mxu0 0.0
    %1717 = vmatpush1.xpose.msra.mxu0 0.0
    %1718 = vmatprep.subr.mxu0 0.0
    %1719 = vmatpush1.xpose.msra.mxu0 0.0
    %1720 = vmatprep.subr.mxu0 0.0
    %1721 = vmatpush1.xpose.msra.mxu0 0.0
    %1722 = vmatprep.subr.mxu0 0.0
    %1723 = vmatpush1.xpose.msra.mxu0 0.0
    %1724 = vmatprep.subr.mxu0 0.0
    %1725 = vmatpush1.xpose.msra.mxu0 0.0
    %1726 = vmatprep.subr.mxu0 0.0
    %1727 = vmatpush1.xpose.msra.mxu0 0.0
    %1728 = vmatprep.subr.mxu0 0.0
    %1729 = vmatpush1.xpose.msra.mxu0 0.0
    %1730 = vmatprep.subr.mxu0 0.0
    %1731 = vmatpush1.xpose.msra.mxu0 0.0
    %1732 = vmatprep.subr.mxu0 0.0
    %1733 = vmatpush1.xpose.msra.mxu0 0.0
    %1734 = vmatprep.subr.mxu0 0.0
    %1735 = vmatpush1.xpose.msra.mxu0 0.0
    %1736 = vmatprep.subr.mxu0 0.0
    %1737 = vmatpush1.xpose.msra.mxu0 0.0
    %1738 = vmatprep.subr.mxu0 0.0
    %1739 = vmatpush1.xpose.msra.mxu0 0.0
    %1740 = vmatprep.subr.mxu0 0.0
    %1741 = vmatpush1.xpose.msra.mxu0 0.0
    %1742 = vmatprep.subr.mxu0 0.0
    %1743 = vmatpush1.xpose.msra.mxu0 0.0
    %1744 = vmatprep.subr.mxu0 0.0
    %1745 = vmatpush1.xpose.msra.mxu0 0.0
    %1746 = vmatprep.subr.mxu0 0.0
    %1747 = vmatpush1.xpose.msra.mxu0 0.0
    %1748 = vmatprep.subr.mxu0 0.0
    %1749 = vmatpush1.xpose.msra.mxu0 0.0
    %1750 = vmatprep.subr.mxu0 0.0
    %1751 = vmatpush1.xpose.msra.mxu0 0.0
    %1752 = vmatprep.subr.mxu0 0.0
    %1753 = vmatpush1.xpose.msra.mxu0 0.0
    %1754 = vmatprep.subr.mxu0 0.0
    %1755 = vmatpush1.xpose.msra.mxu0 0.0
    %1756 = vmatprep.subr.mxu0 0.0
    %1757 = vmatpush1.xpose.msra.mxu0 0.0
    %1758 = vmatprep.subr.mxu0 0.0
    %1759 = vmatpush1.xpose.msra.mxu0 0.0
    %1760 = vmatprep.subr.mxu0 0.0
    %1761 = vmatpush1.xpose.msra.mxu0 0.0
    %1762 = vmatprep.subr.mxu0 0.0
    %1763 = vmatpush1.xpose.msra.mxu0 0.0
    %1764 = vmatprep.subr.mxu0 0.0
    %1765 = vmatpush1.xpose.msra.mxu0 0.0
    %1766 = vmatprep.subr.mxu0 0.0
    %1767 = vmatpush1.xpose.msra.mxu0 0.0
    %1768 = vmatprep.subr.mxu0 0.0
    %1769 = vmatpush1.xpose.msra.mxu0 0.0
    %1770 = vmatprep.subr.mxu0 0.0
    %1771 = vmatpush1.xpose.msra.mxu0 0.0
    %1772 = vmatprep.subr.mxu0 0.0
    %1773 = vmatpush1.xpose.msra.mxu0 0.0
    %1774 = vmatprep.subr.mxu0 0.0
    %1775 = vmatpush1.xpose.msra.mxu0 0.0
    %1776 = vmatprep.subr.mxu0 0.0
    %1777 = vmatpush1.xpose.msra.mxu0 0.0
    %1778 = vmatprep.mubr.f32.mxu0 0.0
    %1779 = vmatmul.mubr.f32.gmra.mrb[0].mxu0 %v1709
    %v1780 = vpop.f32.mrb[0].mxu0
    %v1781 = vadd.f32 0.0, %v1780
    %v1782 = vpop.f32.mrb[0].mxu0
    %1783 = vdwg.mxu0
    %v1785 = vsel %vm312, %v1527, 0
    %v1788 = vsel %vm312, %v1619, 0
    %1790 = vmatprep.subr.mxu0 0.0
    %1791 = vmatpush1.xpose.msra.mxu0 %v1788
    %1792 = vmatprep.subr.mxu0 0.0
    %1793 = vmatpush1.xpose.msra.mxu0 0.0
    %1794 = vmatprep.subr.mxu0 0.0
    %1795 = vmatpush1.xpose.msra.mxu0 0.0
    %1796 = vmatprep.subr.mxu0 0.0
    %1797 = vmatpush1.xpose.msra.mxu0 0.0
    %1798 = vmatprep.subr.mxu0 0.0
    %1799 = vmatpush1.xpose.msra.mxu0 0.0
    %1800 = vmatprep.subr.mxu0 0.0
    %1801 = vmatpush1.xpose.msra.mxu0 0.0
    %1802 = vmatprep.subr.mxu0 0.0
    %1803 = vmatpush1.xpose.msra.mxu0 0.0
    %1804 = vmatprep.subr.mxu0 0.0
    %1805 = vmatpush1.xpose.msra.mxu0 0.0
    %1806 = vmatprep.subr.mxu0 0.0
    %1807 = vmatpush1.xpose.msra.mxu0 0.0
    %1808 = vmatprep.subr.mxu0 0.0
    %1809 = vmatpush1.xpose.msra.mxu0 0.0
    %1810 = vmatprep.subr.mxu0 0.0
    %1811 = vmatpush1.xpose.msra.mxu0 0.0
    %1812 = vmatprep.subr.mxu0 0.0
    %1813 = vmatpush1.xpose.msra.mxu0 0.0
    %1814 = vmatprep.subr.mxu0 0.0
    %1815 = vmatpush1.xpose.msra.mxu0 0.0
    %1816 = vmatprep.subr.mxu0 0.0
    %1817 = vmatpush1.xpose.msra.mxu0 0.0
    %1818 = vmatprep.subr.mxu0 0.0
    %1819 = vmatpush1.xpose.msra.mxu0 0.0
    %1820 = vmatprep.subr.mxu0 0.0
    %1821 = vmatpush1.xpose.msra.mxu0 0.0
    %1822 = vmatprep.subr.mxu0 0.0
    %1823 = vmatpush1.xpose.msra.mxu0 0.0
    %1824 = vmatprep.subr.mxu0 0.0
    %1825 = vmatpush1.xpose.msra.mxu0 0.0
    %1826 = vmatprep.subr.mxu0 0.0
    %1827 = vmatpush1.xpose.msra.mxu0 0.0
    %1828 = vmatprep.subr.mxu0 0.0
    %1829 = vmatpush1.xpose.msra.mxu0 0.0
    %1830 = vmatprep.subr.mxu0 0.0
    %1831 = vmatpush1.xpose.msra.mxu0 0.0
    %1832 = vmatprep.subr.mxu0 0.0
    %1833 = vmatpush1.xpose.msra.mxu0 0.0
    %1834 = vmatprep.subr.mxu0 0.0
    %1835 = vmatpush1.xpose.msra.mxu0 0.0
    %1836 = vmatprep.subr.mxu0 0.0
    %1837 = vmatpush1.xpose.msra.mxu0 0.0
    %1838 = vmatprep.subr.mxu0 0.0
    %1839 = vmatpush1.xpose.msra.mxu0 0.0
    %1840 = vmatprep.subr.mxu0 0.0
    %1841 = vmatpush1.xpose.msra.mxu0 0.0
    %1842 = vmatprep.subr.mxu0 0.0
    %1843 = vmatpush1.xpose.msra.mxu0 0.0
    %1844 = vmatprep.subr.mxu0 0.0
    %1845 = vmatpush1.xpose.msra.mxu0 0.0
    %1846 = vmatprep.subr.mxu0 0.0
    %1847 = vmatpush1.xpose.msra.mxu0 0.0
    %1848 = vmatprep.subr.mxu0 0.0
    %1849 = vmatpush1.xpose.msra.mxu0 0.0
    %1850 = vmatprep.subr.mxu0 0.0
    %1851 = vmatpush1.xpose.msra.mxu0 0.0
    %1852 = vmatprep.subr.mxu0 0.0
    %1853 = vmatpush1.xpose.msra.mxu0 0.0
    %1854 = vmatprep.mubr.f32.mxu0 0.0
    %1855 = vmatmul.mubr.f32.gmra.mrb[0].mxu0 %v1785
    %v1856 = vpop.f32.mrb[0].mxu0
    %v1857 = vadd.f32 0.0, %v1856
    %v1858 = vpop.f32.mrb[0].mxu0
    %1859 = vdwg.mxu0
    %v1860 = vmul.f32 %v1781, 0.25
    %v1861 = vmul.f32 %v1857, 0.25
    %v1862 = vsel %vm467, %v1860, -inf
    %1863 = vmax.xlane.f32.xlu0 %v1862
    %v1864 = vpop.xlane.xlu0 %1863
    %v1865 = vsel %vm467, %v1861, -inf
    %1866 = vmax.xlane.f32.xlu0 %v1865
    %v1867 = vpop.xlane.xlu0 %1866
    %v1868 = vsub.f32 %v1860, %v1864
    %v1869 = vsub.f32 %v1861, %v1867
    %v1870 = vmul.f32 %v1868, 1.442695
    %v1871 = vpow.pop %v1870
    %v1872 = vmul.f32 %v1869, 1.442695
    %v1873 = vpow.pop %v1872
    %v1874 = vsel %vm467, %v1871, 0.0
    %1875 = vadd.xlane.f32.xlu0 %v1874
    %v1876 = vpop.xlane.xlu0 %1875
    %v1877 = vsel %vm467, %v1873, 0.0
    %1878 = vadd.xlane.f32.xlu0 %v1877
    %v1879 = vpop.xlane.xlu0 %1878
    %v1880 = vrcp.pop %v1876
    %v1881 = vrcp.pop %v1879
    %v1882 = vmul.f32 %v1871, %v1880
    %v1883 = vmul.f32 %v1873, %v1881
    %v1885 = vsel %vm467, %v1882, 0
    %1887 = vmatprep.subr.mxu0 0.0
    %1888 = vmatpush1.msra.mxu0 %v1700
    %1889 = vmatprep.subr.mxu0 0.0
    %1890 = vmatpush1.msra.mxu0 0.0
    %1891 = vmatprep.subr.mxu0 0.0
    %1892 = vmatpush1.msra.mxu0 0.0
    %1893 = vmatprep.subr.mxu0 0.0
    %1894 = vmatpush1.msra.mxu0 0.0
    %1895 = vmatprep.subr.mxu0 0.0
    %1896 = vmatpush1.msra.mxu0 0.0
    %1897 = vmatprep.subr.mxu0 0.0
    %1898 = vmatpush1.msra.mxu0 0.0
    %1899 = vmatprep.subr.mxu0 0.0
    %1900 = vmatpush1.msra.mxu0 0.0
    %1901 = vmatprep.subr.mxu0 0.0
    %1902 = vmatpush1.msra.mxu0 0.0
    %1903 = vmatprep.subr.mxu0 0.0
    %1904 = vmatpush1.msra.mxu0 0.0
    %1905 = vmatprep.subr.mxu0 0.0
    %1906 = vmatpush1.msra.mxu0 0.0
    %1907 = vmatprep.subr.mxu0 0.0
    %1908 = vmatpush1.msra.mxu0 0.0
    %1909 = vmatprep.subr.mxu0 0.0
    %1910 = vmatpush1.msra.mxu0 0.0
    %1911 = vmatprep.subr.mxu0 0.0
    %1912 = vmatpush1.msra.mxu0 0.0
    %1913 = vmatprep.subr.mxu0 0.0
    %1914 = vmatpush1.msra.mxu0 0.0
    %1915 = vmatprep.subr.mxu0 0.0
    %1916 = vmatpush1.msra.mxu0 0.0
    %1917 = vmatprep.subr.mxu0 0.0
    %1918 = vmatpush1.msra.mxu0 0.0
    %1919 = vmatprep.subr.mxu0 0.0
    %1920 = vmatpush1.msra.mxu0 0.0
    %1921 = vmatprep.subr.mxu0 0.0
    %1922 = vmatpush1.msra.mxu0 0.0
    %1923 = vmatprep.subr.mxu0 0.0
    %1924 = vmatpush1.msra.mxu0 0.0
    %1925 = vmatprep.subr.mxu0 0.0
    %1926 = vmatpush1.msra.mxu0 0.0
    %1927 = vmatprep.subr.mxu0 0.0
    %1928 = vmatpush1.msra.mxu0 0.0
    %1929 = vmatprep.subr.mxu0 0.0
    %1930 = vmatpush1.msra.mxu0 0.0
    %1931 = vmatprep.subr.mxu0 0.0
    %1932 = vmatpush1.msra.mxu0 0.0
    %1933 = vmatprep.subr.mxu0 0.0
    %1934 = vmatpush1.msra.mxu0 0.0
    %1935 = vmatprep.subr.mxu0 0.0
    %1936 = vmatpush1.msra.mxu0 0.0
    %1937 = vmatprep.subr.mxu0 0.0
    %1938 = vmatpush1.msra.mxu0 0.0
    %1939 = vmatprep.subr.mxu0 0.0
    %1940 = vmatpush1.msra.mxu0 0.0
    %1941 = vmatprep.subr.mxu0 0.0
    %1942 = vmatpush1.msra.mxu0 0.0
    %1943 = vmatprep.subr.mxu0 0.0
    %1944 = vmatpush1.msra.mxu0 0.0
    %1945 = vmatprep.subr.mxu0 0.0
    %1946 = vmatpush1.msra.mxu0 0.0
    %1947 = vmatprep.subr.mxu0 0.0
    %1948 = vmatpush1.msra.mxu0 0.0
    %1949 = vmatprep.subr.mxu0 0.0
    %1950 = vmatpush1.msra.mxu0 0.0
    %1951 = vmatprep.mubr.f32.mxu0 0.0
    %1952 = vmatmul.mubr.f32.gmra.mrb[0].mxu0 %v1885
    %v1953 = vpop.f32.mrb[0].mxu0
    %v1954 = vadd.f32 0.0, %v1953
    %v1955 = vpop.f32.mrb[0].mxu0
    %1956 = vdwg.mxu0
    %v1958 = vsel %vm467, %v1883, 0
    %1960 = vmatprep.subr.mxu0 0.0
    %1961 = vmatpush1.msra.mxu0 %v1705
    %1962 = vmatprep.subr.mxu0 0.0
    %1963 = vmatpush1.msra.mxu0 0.0
    %1964 = vmatprep.subr.mxu0 0.0
    %1965 = vmatpush1.msra.mxu0 0.0
    %1966 = vmatprep.subr.mxu0 0.0
    %1967 = vmatpush1.msra.mxu0 0.0
    %1968 = vmatprep.subr.mxu0 0.0
    %1969 = vmatpush1.msra.mxu0 0.0
    %1970 = vmatprep.subr.mxu0 0.0
    %1971 = vmatpush1.msra.mxu0 0.0
    %1972 = vmatprep.subr.mxu0 0.0
    %1973 = vmatpush1.msra.mxu0 0.0
    %1974 = vmatprep.subr.mxu0 0.0
    %1975 = vmatpush1.msra.mxu0 0.0
    %1976 = vmatprep.subr.mxu0 0.0
    %1977 = vmatpush1.msra.mxu0 0.0
    %1978 = vmatprep.subr.mxu0 0.0
    %1979 = vmatpush1.msra.mxu0 0.0
    %1980 = vmatprep.subr.mxu0 0.0
    %1981 = vmatpush1.msra.mxu0 0.0
    %1982 = vmatprep.subr.mxu0 0.0
    %1983 = vmatpush1.msra.mxu0 0.0
    %1984 = vmatprep.subr.mxu0 0.0
    %1985 = vmatpush1.msra.mxu0 0.0
    %1986 = vmatprep.subr.mxu0 0.0
    %1987 = vmatpush1.msra.mxu0 0.0
    %1988 = vmatprep.subr.mxu0 0.0
    %1989 = vmatpush1.msra.mxu0 0.0
    %1990 = vmatprep.subr.mxu0 0.0
    %1991 = vmatpush1.msra.mxu0 0.0
    %1992 = vmatprep.subr.mxu0 0.0
    %1993 = vmatpush1.msra.mxu0 0.0
    %1994 = vmatprep.subr.mxu0 0.0
    %1995 = vmatpush1.msra.mxu0 0.0
    %1996 = vmatprep.subr.mxu0 0.0
    %1997 = vmatpush1.msra.mxu0 0.0
    %1998 = vmatprep.subr.mxu0 0.0
    %1999 = vmatpush1.msra.mxu0 0.0
    %2000 = vmatprep.subr.mxu0 0.0
    %2001 = vmatpush1.msra.mxu0 0.0
    %2002 = vmatprep.subr.mxu0 0.0
    %2003 = vmatpush1.msra.mxu0 0.0
    %2004 = vmatprep.subr.mxu0 0.0
    %2005 = vmatpush1.msra.mxu0 0.0
    %2006 = vmatprep.subr.mxu0 0.0
    %2007 = vmatpush1.msra.mxu0 0.0
    %2008 = vmatprep.subr.mxu0 0.0
    %2009 = vmatpush1.msra.mxu0 0.0
    %2010 = vmatprep.subr.mxu0 0.0
    %2011 = vmatpush1.msra.mxu0 0.0
    %2012 = vmatprep.subr.mxu0 0.0
    %2013 = vmatpush1.msra.mxu0 0.0
    %2014 = vmatprep.subr.mxu0 0.0
    %2015 = vmatpush1.msra.mxu0 0.0
    %2016 = vmatprep.subr.mxu0 0.0
    %2017 = vmatpush1.msra.mxu0 0.0
    %2018 = vmatprep.subr.mxu0 0.0
    %2019 = vmatpush1.msra.mxu0 0.0
    %2020 = vmatprep.subr.mxu0 0.0
    %2021 = vmatpush1.msra.mxu0 0.0
    %2022 = vmatprep.subr.mxu0 0.0
    %2023 = vmatpush1.msra.mxu0 0.0
    %2024 = vmatprep.mubr.f32.mxu0 0.0
    %2025 = vmatmul.mubr.f32.gmra.mrb[0].mxu0 %v1958
    %v2026 = vpop.f32.mrb[0].mxu0
    %v2027 = vadd.f32 0.0, %v2026
    %v2028 = vpop.f32.mrb[0].mxu0
    %2029 = vdwg.mxu0
    %v2030 = vld [vmem:[#allocation2 + $0x40] sm:$0xff]
    %v2031 = vld [vmem:[#allocation2 + $0xb8] sm:$0xff]
    %v2032 = vld [vmem:[#allocation2 + $0x130] sm:$0xff]
    %v2033 = vld [vmem:[#allocation2 + $0x1a8] sm:$0xff]
    %v2034 = vld [vmem:[%s4 + $0xa] sm:$0x1]
    %v2036 = vlaneseq
    %v2037 = vshrl.u32 %v2036, 7
    %v2038 = vsub.s32 0, %v2037
    %v2039 = vrot.slane %v2034, %v2038
    %2041 = vmatprep.subr.mxu0 0.0
    %2042 = vmatpush1.msra.mxu0 %v2030
    %2043 = vmatprep.subr.mxu0 0.0
    %2044 = vmatpush1.msra.mxu0 %v2031
    %2045 = vmatprep.subr.mxu0 0.0
    %2046 = vmatpush1.msra.mxu0 %v2032
    %2047 = vmatprep.subr.mxu0 0.0
    %2048 = vmatpush1.msra.mxu0 %v2033
    %2049 = vmatprep.subr.mxu0 0.0
    %2050 = vmatpush1.msra.mxu0 0.0
    %2051 = vmatprep.subr.mxu0 0.0
    %2052 = vmatpush1.msra.mxu0 0.0
    %2053 = vmatprep.subr.mxu0 0.0
    %2054 = vmatpush1.msra.mxu0 0.0
    %2055 = vmatprep.subr.mxu0 0.0
    %2056 = vmatpush1.msra.mxu0 0.0
    %2057 = vmatprep.subr.mxu0 0.0
    %2058 = vmatpush1.msra.mxu0 0.0
    %2059 = vmatprep.subr.mxu0 0.0
    %2060 = vmatpush1.msra.mxu0 0.0
    %2061 = vmatprep.subr.mxu0 0.0
    %2062 = vmatpush1.msra.mxu0 0.0
    %2063 = vmatprep.subr.mxu0 0.0
    %2064 = vmatpush1.msra.mxu0 0.0
    %2065 = vmatprep.subr.mxu0 0.0
    %2066 = vmatpush1.msra.mxu0 0.0
    %2067 = vmatprep.subr.mxu0 0.0
    %2068 = vmatpush1.msra.mxu0 0.0
    %2069 = vmatprep.subr.mxu0 0.0
    %2070 = vmatpush1.msra.mxu0 0.0
    %2071 = vmatprep.subr.mxu0 0.0
    %2072 = vmatpush1.msra.mxu0 0.0
    %2073 = vmatprep.subr.mxu0 0.0
    %2074 = vmatpush1.msra.mxu0 0.0
    %2075 = vmatprep.subr.mxu0 0.0
    %2076 = vmatpush1.msra.mxu0 0.0
    %2077 = vmatprep.subr.mxu0 0.0
    %2078 = vmatpush1.msra.mxu0 0.0
    %2079 = vmatprep.subr.mxu0 0.0
    %2080 = vmatpush1.msra.mxu0 0.0
    %2081 = vmatprep.subr.mxu0 0.0
    %2082 = vmatpush1.msra.mxu0 0.0
    %2083 = vmatprep.subr.mxu0 0.0
    %2084 = vmatpush1.msra.mxu0 0.0
    %2085 = vmatprep.subr.mxu0 0.0
    %2086 = vmatpush1.msra.mxu0 0.0
    %2087 = vmatprep.subr.mxu0 0.0
    %2088 = vmatpush1.msra.mxu0 0.0
    %2089 = vmatprep.subr.mxu0 0.0
    %2090 = vmatpush1.msra.mxu0 0.0
    %2091 = vmatprep.subr.mxu0 0.0
    %2092 = vmatpush1.msra.mxu0 0.0
    %2093 = vmatprep.subr.mxu0 0.0
    %2094 = vmatpush1.msra.mxu0 0.0
    %2095 = vmatprep.subr.mxu0 0.0
    %2096 = vmatpush1.msra.mxu0 0.0
    %2097 = vmatprep.subr.mxu0 0.0
    %2098 = vmatpush1.msra.mxu0 0.0
    %2099 = vmatprep.subr.mxu0 0.0
    %2100 = vmatpush1.msra.mxu0 0.0
    %2101 = vmatprep.subr.mxu0 0.0
    %2102 = vmatpush1.msra.mxu0 0.0
    %2103 = vmatprep.subr.mxu0 0.0
    %2104 = vmatpush1.msra.mxu0 0.0
    %2105 = vmatprep.mubr.f32.mxu0 0.0
    %2106 = vmatmul.mubr.f32.gmra.mrb[0].mxu0 %v1450
    %v2107 = vpop.f32.mrb[0].mxu0
    %v2108 = vadd.f32 %v2039, %v2107
    %v2109 = vpop.f32.mrb[0].mxu0
    %2110 = vmatprep.mubr.f32.mxu0 0.0
    %2111 = vmatmul.mubr.f32.gmra.mrb[0].mxu0 %v1453
    %v2112 = vpop.f32.mrb[0].mxu0
    %v2113 = vadd.f32 %v2039, %v2112
    %v2114 = vpop.f32.mrb[0].mxu0
    %2115 = vdwg.mxu0
    %v2116 = vld [vmem:[#allocation2 + $0x50] sm:$0xff]
    %v2117 = vld [vmem:[#allocation2 + $0xc8] sm:$0xff]
    %v2118 = vld [vmem:[#allocation2 + $0x140] sm:$0xff]
    %v2119 = vld [vmem:[#allocation2 + $0x1b8] sm:$0xff]
    %v2120 = vld [vmem:[%s4 + $0xc] sm:$0x1]
    %v2122 = vlaneseq
    %v2123 = vshrl.u32 %v2122, 7
    %v2124 = vsub.s32 0, %v2123
    %v2125 = vrot.slane %v2120, %v2124
    %2127 = vmatprep.subr.mxu0 0.0
    %2128 = vmatpush1.msra.mxu0 %v2116
    %2129 = vmatprep.subr.mxu0 0.0
    %2130 = vmatpush1.msra.mxu0 %v2117
    %2131 = vmatprep.subr.mxu0 0.0
    %2132 = vmatpush1.msra.mxu0 %v2118
    %2133 = vmatprep.subr.mxu0 0.0
    %2134 = vmatpush1.msra.mxu0 %v2119
    %2135 = vmatprep.subr.mxu0 0.0
    %2136 = vmatpush1.msra.mxu0 0.0
    %2137 = vmatprep.subr.mxu0 0.0
    %2138 = vmatpush1.msra.mxu0 0.0
    %2139 = vmatprep.subr.mxu0 0.0
    %2140 = vmatpush1.msra.mxu0 0.0
    %2141 = vmatprep.subr.mxu0 0.0
    %2142 = vmatpush1.msra.mxu0 0.0
    %2143 = vmatprep.subr.mxu0 0.0
    %2144 = vmatpush1.msra.mxu0 0.0
    %2145 = vmatprep.subr.mxu0 0.0
    %2146 = vmatpush1.msra.mxu0 0.0
    %2147 = vmatprep.subr.mxu0 0.0
    %2148 = vmatpush1.msra.mxu0 0.0
    %2149 = vmatprep.subr.mxu0 0.0
    %2150 = vmatpush1.msra.mxu0 0.0
    %2151 = vmatprep.subr.mxu0 0.0
    %2152 = vmatpush1.msra.mxu0 0.0
    %2153 = vmatprep.subr.mxu0 0.0
    %2154 = vmatpush1.msra.mxu0 0.0
    %2155 = vmatprep.subr.mxu0 0.0
    %2156 = vmatpush1.msra.mxu0 0.0
    %2157 = vmatprep.subr.mxu0 0.0
    %2158 = vmatpush1.msra.mxu0 0.0
    %2159 = vmatprep.subr.mxu0 0.0
    %2160 = vmatpush1.msra.mxu0 0.0
    %2161 = vmatprep.subr.mxu0 0.0
    %2162 = vmatpush1.msra.mxu0 0.0
    %2163 = vmatprep.subr.mxu0 0.0
    %2164 = vmatpush1.msra.mxu0 0.0
    %2165 = vmatprep.subr.mxu0 0.0
    %2166 = vmatpush1.msra.mxu0 0.0
    %2167 = vmatprep.subr.mxu0 0.0
    %2168 = vmatpush1.msra.mxu0 0.0
    %2169 = vmatprep.subr.mxu0 0.0
    %2170 = vmatpush1.msra.mxu0 0.0
    %2171 = vmatprep.subr.mxu0 0.0
    %2172 = vmatpush1.msra.mxu0 0.0
    %2173 = vmatprep.subr.mxu0 0.0
    %2174 = vmatpush1.msra.mxu0 0.0
    %2175 = vmatprep.subr.mxu0 0.0
    %2176 = vmatpush1.msra.mxu0 0.0
    %2177 = vmatprep.subr.mxu0 0.0
    %2178 = vmatpush1.msra.mxu0 0.0
    %2179 = vmatprep.subr.mxu0 0.0
    %2180 = vmatpush1.msra.mxu0 0.0
    %2181 = vmatprep.subr.mxu0 0.0
    %2182 = vmatpush1.msra.mxu0 0.0
    %2183 = vmatprep.subr.mxu0 0.0
    %2184 = vmatpush1.msra.mxu0 0.0
    %2185 = vmatprep.subr.mxu0 0.0
    %2186 = vmatpush1.msra.mxu0 0.0
    %2187 = vmatprep.subr.mxu0 0.0
    %2188 = vmatpush1.msra.mxu0 0.0
    %2189 = vmatprep.subr.mxu0 0.0
    %2190 = vmatpush1.msra.mxu0 0.0
    %2191 = vmatprep.mubr.f32.mxu0 0.0
    %2192 = vmatmul.mubr.f32.gmra.mrb[0].mxu0 %v1542
    %v2193 = vpop.f32.mrb[0].mxu0
    %v2194 = vadd.f32 %v2125, %v2193
    %v2195 = vpop.f32.mrb[0].mxu0
    %2196 = vmatprep.mubr.f32.mxu0 0.0
    %2197 = vmatmul.mubr.f32.gmra.mrb[0].mxu0 %v1545
    %v2198 = vpop.f32.mrb[0].mxu0
    %v2199 = vadd.f32 %v2125, %v2198
    %v2200 = vpop.f32.mrb[0].mxu0
    %2201 = vdwg.mxu0
    %v2202 = vld [vmem:[#allocation2 + $0x60] sm:$0xff]
    %v2203 = vld [vmem:[#allocation2 + $0xd8] sm:$0xff]
    %v2204 = vld [vmem:[#allocation2 + $0x150] sm:$0xff]
    %v2205 = vld [vmem:[#allocation2 + $0x1c8] sm:$0xff]
    %v2206 = vld [vmem:[%s4 + $0xe] sm:$0x1]
    %v2208 = vlaneseq
    %v2209 = vshrl.u32 %v2208, 7
    %v2210 = vsub.s32 0, %v2209
    %v2211 = vrot.slane %v2206, %v2210
    %2213 = vmatprep.subr.mxu0 0.0
    %2214 = vmatpush1.msra.mxu0 %v2202
    %2215 = vmatprep.subr.mxu0 0.0
    %2216 = vmatpush1.msra.mxu0 %v2203
    %2217 = vmatprep.subr.mxu0 0.0
    %2218 = vmatpush1.msra.mxu0 %v2204
    %2219 = vmatprep.subr.mxu0 0.0
    %2220 = vmatpush1.msra.mxu0 %v2205
    %2221 = vmatprep.subr.mxu0 0.0
    %2222 = vmatpush1.msra.mxu0 0.0
    %2223 = vmatprep.subr.mxu0 0.0
    %2224 = vmatpush1.msra.mxu0 0.0
    %2225 = vmatprep.subr.mxu0 0.0
    %2226 = vmatpush1.msra.mxu0 0.0
    %2227 = vmatprep.subr.mxu0 0.0
    %2228 = vmatpush1.msra.mxu0 0.0
    %2229 = vmatprep.subr.mxu0 0.0
    %2230 = vmatpush1.msra.mxu0 0.0
    %2231 = vmatprep.subr.mxu0 0.0
    %2232 = vmatpush1.msra.mxu0 0.0
    %2233 = vmatprep.subr.mxu0 0.0
    %2234 = vmatpush1.msra.mxu0 0.0
    %2235 = vmatprep.subr.mxu0 0.0
    %2236 = vmatpush1.msra.mxu0 0.0
    %2237 = vmatprep.subr.mxu0 0.0
    %2238 = vmatpush1.msra.mxu0 0.0
    %2239 = vmatprep.subr.mxu0 0.0
    %2240 = vmatpush1.msra.mxu0 0.0
    %2241 = vmatprep.subr.mxu0 0.0
    %2242 = vmatpush1.msra.mxu0 0.0
    %2243 = vmatprep.subr.mxu0 0.0
    %2244 = vmatpush1.msra.mxu0 0.0
    %2245 = vmatprep.subr.mxu0 0.0
    %2246 = vmatpush1.msra.mxu0 0.0
    %2247 = vmatprep.subr.mxu0 0.0
    %2248 = vmatpush1.msra.mxu0 0.0
    %2249 = vmatprep.subr.mxu0 0.0
    %2250 = vmatpush1.msra.mxu0 0.0
    %2251 = vmatprep.subr.mxu0 0.0
    %2252 = vmatpush1.msra.mxu0 0.0
    %2253 = vmatprep.subr.mxu0 0.0
    %2254 = vmatpush1.msra.mxu0 0.0
    %2255 = vmatprep.subr.mxu0 0.0
    %2256 = vmatpush1.msra.mxu0 0.0
    %2257 = vmatprep.subr.mxu0 0.0
    %2258 = vmatpush1.msra.mxu0 0.0
    %2259 = vmatprep.subr.mxu0 0.0
    %2260 = vmatpush1.msra.mxu0 0.0
    %2261 = vmatprep.subr.mxu0 0.0
    %2262 = vmatpush1.msra.mxu0 0.0
    %2263 = vmatprep.subr.mxu0 0.0
    %2264 = vmatpush1.msra.mxu0 0.0
    %2265 = vmatprep.subr.mxu0 0.0
    %2266 = vmatpush1.msra.mxu0 0.0
    %2267 = vmatprep.subr.mxu0 0.0
    %2268 = vmatpush1.msra.mxu0 0.0
    %2269 = vmatprep.subr.mxu0 0.0
    %2270 = vmatpush1.msra.mxu0 0.0
    %2271 = vmatprep.subr.mxu0 0.0
    %2272 = vmatpush1.msra.mxu0 0.0
    %2273 = vmatprep.subr.mxu0 0.0
    %2274 = vmatpush1.msra.mxu0 0.0
    %2275 = vmatprep.subr.mxu0 0.0
    %2276 = vmatpush1.msra.mxu0 0.0
    %2277 = vmatprep.mubr.f32.mxu0 0.0
    %2278 = vmatmul.mubr.f32.gmra.mrb[0].mxu0 %v1542
    %v2279 = vpop.f32.mrb[0].mxu0
    %v2280 = vadd.f32 %v2211, %v2279
    %v2281 = vpop.f32.mrb[0].mxu0
    %2282 = vmatprep.mubr.f32.mxu0 0.0
    %2283 = vmatmul.mubr.f32.gmra.mrb[0].mxu0 %v1545
    %v2284 = vpop.f32.mrb[0].mxu0
    %v2285 = vadd.f32 %v2211, %v2284
    %v2286 = vpop.f32.mrb[0].mxu0
    %2287 = vdwg.mxu0
    %v2289 = vsel %vm312, %v2108, 0
    %v2292 = vsel %vm312, %v2194, 0
    %2294 = vmatprep.subr.mxu0 0.0
    %2295 = vmatpush1.xpose.msra.mxu0 %v2292
    %2296 = vmatprep.subr.mxu0 0.0
    %2297 = vmatpush1.xpose.msra.mxu0 0.0
    %2298 = vmatprep.subr.mxu0 0.0
    %2299 = vmatpush1.xpose.msra.mxu0 0.0
    %2300 = vmatprep.subr.mxu0 0.0
    %2301 = vmatpush1.xpose.msra.mxu0 0.0
    %2302 = vmatprep.subr.mxu0 0.0
    %2303 = vmatpush1.xpose.msra.mxu0 0.0
    %2304 = vmatprep.subr.mxu0 0.0
    %2305 = vmatpush1.xpose.msra.mxu0 0.0
    %2306 = vmatprep.subr.mxu0 0.0
    %2307 = vmatpush1.xpose.msra.mxu0 0.0
    %2308 = vmatprep.subr.mxu0 0.0
    %2309 = vmatpush1.xpose.msra.mxu0 0.0
    %2310 = vmatprep.subr.mxu0 0.0
    %2311 = vmatpush1.xpose.msra.mxu0 0.0
    %2312 = vmatprep.subr.mxu0 0.0
    %2313 = vmatpush1.xpose.msra.mxu0 0.0
    %2314 = vmatprep.subr.mxu0 0.0
    %2315 = vmatpush1.xpose.msra.mxu0 0.0
    %2316 = vmatprep.subr.mxu0 0.0
    %2317 = vmatpush1.xpose.msra.mxu0 0.0
    %2318 = vmatprep.subr.mxu0 0.0
    %2319 = vmatpush1.xpose.msra.mxu0 0.0
    %2320 = vmatprep.subr.mxu0 0.0
    %2321 = vmatpush1.xpose.msra.mxu0 0.0
    %2322 = vmatprep.subr.mxu0 0.0
    %2323 = vmatpush1.xpose.msra.mxu0 0.0
    %2324 = vmatprep.subr.mxu0 0.0
    %2325 = vmatpush1.xpose.msra.mxu0 0.0
    %2326 = vmatprep.subr.mxu0 0.0
    %2327 = vmatpush1.xpose.msra.mxu0 0.0
    %2328 = vmatprep.subr.mxu0 0.0
    %2329 = vmatpush1.xpose.msra.mxu0 0.0
    %2330 = vmatprep.subr.mxu0 0.0
    %2331 = vmatpush1.xpose.msra.mxu0 0.0
    %2332 = vmatprep.subr.mxu0 0.0
    %2333 = vmatpush1.xpose.msra.mxu0 0.0
    %2334 = vmatprep.subr.mxu0 0.0
    %2335 = vmatpush1.xpose.msra.mxu0 0.0
    %2336 = vmatprep.subr.mxu0 0.0
    %2337 = vmatpush1.xpose.msra.mxu0 0.0
    %2338 = vmatprep.subr.mxu0 0.0
    %2339 = vmatpush1.xpose.msra.mxu0 0.0
    %2340 = vmatprep.subr.mxu0 0.0
    %2341 = vmatpush1.xpose.msra.mxu0 0.0
    %2342 = vmatprep.subr.mxu0 0.0
    %2343 = vmatpush1.xpose.msra.mxu0 0.0
    %2344 = vmatprep.subr.mxu0 0.0
    %2345 = vmatpush1.xpose.msra.mxu0 0.0
    %2346 = vmatprep.subr.mxu0 0.0
    %2347 = vmatpush1.xpose.msra.mxu0 0.0
    %2348 = vmatprep.subr.mxu0 0.0
    %2349 = vmatpush1.xpose.msra.mxu0 0.0
    %2350 = vmatprep.subr.mxu0 0.0
    %2351 = vmatpush1.xpose.msra.mxu0 0.0
    %2352 = vmatprep.subr.mxu0 0.0
    %2353 = vmatpush1.xpose.msra.mxu0 0.0
    %2354 = vmatprep.subr.mxu0 0.0
    %2355 = vmatpush1.xpose.msra.mxu0 0.0
    %2356 = vmatprep.subr.mxu0 0.0
    %2357 = vmatpush1.xpose.msra.mxu0 0.0
    %2358 = vmatprep.mubr.f32.mxu0 0.0
    %2359 = vmatmul.mubr.f32.gmra.mrb[0].mxu0 %v2289
    %v2360 = vpop.f32.mrb[0].mxu0
    %v2361 = vadd.f32 0.0, %v2360
    %v2362 = vpop.f32.mrb[0].mxu0
    %2363 = vdwg.mxu0
    %v2365 = vsel %vm312, %v2113, 0
    %v2368 = vsel %vm312, %v2199, 0
    %2370 = vmatprep.subr.mxu0 0.0
    %2371 = vmatpush1.xpose.msra.mxu0 %v2368
    %2372 = vmatprep.subr.mxu0 0.0
    %2373 = vmatpush1.xpose.msra.mxu0 0.0
    %2374 = vmatprep.subr.mxu0 0.0
    %2375 = vmatpush1.xpose.msra.mxu0 0.0
    %2376 = vmatprep.subr.mxu0 0.0
    %2377 = vmatpush1.xpose.msra.mxu0 0.0
    %2378 = vmatprep.subr.mxu0 0.0
    %2379 = vmatpush1.xpose.msra.mxu0 0.0
    %2380 = vmatprep.subr.mxu0 0.0
    %2381 = vmatpush1.xpose.msra.mxu0 0.0
    %2382 = vmatprep.subr.mxu0 0.0
    %2383 = vmatpush1.xpose.msra.mxu0 0.0
    %2384 = vmatprep.subr.mxu0 0.0
    %2385 = vmatpush1.xpose.msra.mxu0 0.0
    %2386 = vmatprep.subr.mxu0 0.0
    %2387 = vmatpush1.xpose.msra.mxu0 0.0
    %2388 = vmatprep.subr.mxu0 0.0
    %2389 = vmatpush1.xpose.msra.mxu0 0.0
    %2390 = vmatprep.subr.mxu0 0.0
    %2391 = vmatpush1.xpose.msra.mxu0 0.0
    %2392 = vmatprep.subr.mxu0 0.0
    %2393 = vmatpush1.xpose.msra.mxu0 0.0
    %2394 = vmatprep.subr.mxu0 0.0
    %2395 = vmatpush1.xpose.msra.mxu0 0.0
    %2396 = vmatprep.subr.mxu0 0.0
    %2397 = vmatpush1.xpose.msra.mxu0 0.0
    %2398 = vmatprep.subr.mxu0 0.0
    %2399 = vmatpush1.xpose.msra.mxu0 0.0
    %2400 = vmatprep.subr.mxu0 0.0
    %2401 = vmatpush1.xpose.msra.mxu0 0.0
    %2402 = vmatprep.subr.mxu0 0.0
    %2403 = vmatpush1.xpose.msra.mxu0 0.0
    %2404 = vmatprep.subr.mxu0 0.0
    %2405 = vmatpush1.xpose.msra.mxu0 0.0
    %2406 = vmatprep.subr.mxu0 0.0
    %2407 = vmatpush1.xpose.msra.mxu0 0.0
    %2408 = vmatprep.subr.mxu0 0.0
    %2409 = vmatpush1.xpose.msra.mxu0 0.0
    %2410 = vmatprep.subr.mxu0 0.0
    %2411 = vmatpush1.xpose.msra.mxu0 0.0
    %2412 = vmatprep.subr.mxu0 0.0
    %2413 = vmatpush1.xpose.msra.mxu0 0.0
    %2414 = vmatprep.subr.mxu0 0.0
    %2415 = vmatpush1.xpose.msra.mxu0 0.0
    %2416 = vmatprep.subr.mxu0 0.0
    %2417 = vmatpush1.xpose.msra.mxu0 0.0
    %2418 = vmatprep.subr.mxu0 0.0
    %2419 = vmatpush1.xpose.msra.mxu0 0.0
    %2420 = vmatprep.subr.mxu0 0.0
    %2421 = vmatpush1.xpose.msra.mxu0 0.0
    %2422 = vmatprep.subr.mxu0 0.0
    %2423 = vmatpush1.xpose.msra.mxu0 0.0
    %2424 = vmatprep.subr.mxu0 0.0
    %2425 = vmatpush1.xpose.msra.mxu0 0.0
    %2426 = vmatprep.subr.mxu0 0.0
    %2427 = vmatpush1.xpose.msra.mxu0 0.0
    %2428 = vmatprep.subr.mxu0 0.0
    %2429 = vmatpush1.xpose.msra.mxu0 0.0
    %2430 = vmatprep.subr.mxu0 0.0
    %2431 = vmatpush1.xpose.msra.mxu0 0.0
    %2432 = vmatprep.subr.mxu0 0.0
    %2433 = vmatpush1.xpose.msra.mxu0 0.0
    %2434 = vmatprep.mubr.f32.mxu0 0.0
    %2435 = vmatmul.mubr.f32.gmra.mrb[0].mxu0 %v2365
    %v2436 = vpop.f32.mrb[0].mxu0
    %v2437 = vadd.f32 0.0, %v2436
    %v2438 = vpop.f32.mrb[0].mxu0
    %2439 = vdwg.mxu0
    %v2440 = vmul.f32 %v2361, 0.25
    %v2441 = vmul.f32 %v2437, 0.25
    %v2442 = vsel %vm467, %v2440, -inf
    %2443 = vmax.xlane.f32.xlu0 %v2442
    %v2444 = vpop.xlane.xlu0 %2443
    %v2445 = vsel %vm467, %v2441, -inf
    %2446 = vmax.xlane.f32.xlu0 %v2445
    %v2447 = vpop.xlane.xlu0 %2446
    %v2448 = vsub.f32 %v2440, %v2444
    %v2449 = vsub.f32 %v2441, %v2447
    %v2450 = vmul.f32 %v2448, 1.442695
    %v2451 = vpow.pop %v2450
    %v2452 = vmul.f32 %v2449, 1.442695
    %v2453 = vpow.pop %v2452
    %v2454 = vsel %vm467, %v2451, 0.0
    %2455 = vadd.xlane.f32.xlu0 %v2454
    %v2456 = vpop.xlane.xlu0 %2455
    %v2457 = vsel %vm467, %v2453, 0.0
    %2458 = vadd.xlane.f32.xlu0 %v2457
    %v2459 = vpop.xlane.xlu0 %2458
    %v2460 = vrcp.pop %v2456
    %v2461 = vrcp.pop %v2459
    %v2462 = vmul.f32 %v2451, %v2460
    %v2463 = vmul.f32 %v2453, %v2461
    %v2465 = vsel %vm467, %v2462, 0
    %2467 = vmatprep.subr.mxu0 0.0
    %2468 = vmatpush1.msra.mxu0 %v2280
    %2469 = vmatprep.subr.mxu0 0.0
    %2470 = vmatpush1.msra.mxu0 0.0
    %2471 = vmatprep.subr.mxu0 0.0
    %2472 = vmatpush1.msra.mxu0 0.0
    %2473 = vmatprep.subr.mxu0 0.0
    %2474 = vmatpush1.msra.mxu0 0.0
    %2475 = vmatprep.subr.mxu0 0.0
    %2476 = vmatpush1.msra.mxu0 0.0
    %2477 = vmatprep.subr.mxu0 0.0
    %2478 = vmatpush1.msra.mxu0 0.0
    %2479 = vmatprep.subr.mxu0 0.0
    %2480 = vmatpush1.msra.mxu0 0.0
    %2481 = vmatprep.subr.mxu0 0.0
    %2482 = vmatpush1.msra.mxu0 0.0
    %2483 = vmatprep.subr.mxu0 0.0
    %2484 = vmatpush1.msra.mxu0 0.0
    %2485 = vmatprep.subr.mxu0 0.0
    %2486 = vmatpush1.msra.mxu0 0.0
    %2487 = vmatprep.subr.mxu0 0.0
    %2488 = vmatpush1.msra.mxu0 0.0
    %2489 = vmatprep.subr.mxu0 0.0
    %2490 = vmatpush1.msra.mxu0 0.0
    %2491 = vmatprep.subr.mxu0 0.0
    %2492 = vmatpush1.msra.mxu0 0.0
    %2493 = vmatprep.subr.mxu0 0.0
    %2494 = vmatpush1.msra.mxu0 0.0
    %2495 = vmatprep.subr.mxu0 0.0
    %2496 = vmatpush1.msra.mxu0 0.0
    %2497 = vmatprep.subr.mxu0 0.0
    %2498 = vmatpush1.msra.mxu0 0.0
    %2499 = vmatprep.subr.mxu0 0.0
    %2500 = vmatpush1.msra.mxu0 0.0
    %2501 = vmatprep.subr.mxu0 0.0
    %2502 = vmatpush1.msra.mxu0 0.0
    %2503 = vmatprep.subr.mxu0 0.0
    %2504 = vmatpush1.msra.mxu0 0.0
    %2505 = vmatprep.subr.mxu0 0.0
    %2506 = vmatpush1.msra.mxu0 0.0
    %2507 = vmatprep.subr.mxu0 0.0
    %2508 = vmatpush1.msra.mxu0 0.0
    %2509 = vmatprep.subr.mxu0 0.0
    %2510 = vmatpush1.msra.mxu0 0.0
    %2511 = vmatprep.subr.mxu0 0.0
    %2512 = vmatpush1.msra.mxu0 0.0
    %2513 = vmatprep.subr.mxu0 0.0
    %2514 = vmatpush1.msra.mxu0 0.0
    %2515 = vmatprep.subr.mxu0 0.0
    %2516 = vmatpush1.msra.mxu0 0.0
    %2517 = vmatprep.subr.mxu0 0.0
    %2518 = vmatpush1.msra.mxu0 0.0
    %2519 = vmatprep.subr.mxu0 0.0
    %2520 = vmatpush1.msra.mxu0 0.0
    %2521 = vmatprep.subr.mxu0 0.0
    %2522 = vmatpush1.msra.mxu0 0.0
    %2523 = vmatprep.subr.mxu0 0.0
    %2524 = vmatpush1.msra.mxu0 0.0
    %2525 = vmatprep.subr.mxu0 0.0
    %2526 = vmatpush1.msra.mxu0 0.0
    %2527 = vmatprep.subr.mxu0 0.0
    %2528 = vmatpush1.msra.mxu0 0.0
    %2529 = vmatprep.subr.mxu0 0.0
    %2530 = vmatpush1.msra.mxu0 0.0
    %2531 = vmatprep.mubr.f32.mxu0 0.0
    %2532 = vmatmul.mubr.f32.gmra.mrb[0].mxu0 %v2465
    %v2533 = vpop.f32.mrb[0].mxu0
    %v2534 = vadd.f32 0.0, %v2533
    %v2535 = vpop.f32.mrb[0].mxu0
    %2536 = vdwg.mxu0
    %v2538 = vsel %vm467, %v2463, 0
    %2540 = vmatprep.subr.mxu0 0.0
    %2541 = vmatpush1.msra.mxu0 %v2285
    %2542 = vmatprep.subr.mxu0 0.0
    %2543 = vmatpush1.msra.mxu0 0.0
    %2544 = vmatprep.subr.mxu0 0.0
    %2545 = vmatpush1.msra.mxu0 0.0
    %2546 = vmatprep.subr.mxu0 0.0
    %2547 = vmatpush1.msra.mxu0 0.0
    %2548 = vmatprep.subr.mxu0 0.0
    %2549 = vmatpush1.msra.mxu0 0.0
    %2550 = vmatprep.subr.mxu0 0.0
    %2551 = vmatpush1.msra.mxu0 0.0
    %2552 = vmatprep.subr.mxu0 0.0
    %2553 = vmatpush1.msra.mxu0 0.0
    %2554 = vmatprep.subr.mxu0 0.0
    %2555 = vmatpush1.msra.mxu0 0.0
    %2556 = vmatprep.subr.mxu0 0.0
    %2557 = vmatpush1.msra.mxu0 0.0
    %2558 = vmatprep.subr.mxu0 0.0
    %2559 = vmatpush1.msra.mxu0 0.0
    %2560 = vmatprep.subr.mxu0 0.0
    %2561 = vmatpush1.msra.mxu0 0.0
    %2562 = vmatprep.subr.mxu0 0.0
    %2563 = vmatpush1.msra.mxu0 0.0
    %2564 = vmatprep.subr.mxu0 0.0
    %2565 = vmatpush1.msra.mxu0 0.0
    %2566 = vmatprep.subr.mxu0 0.0
    %2567 = vmatpush1.msra.mxu0 0.0
    %2568 = vmatprep.subr.mxu0 0.0
    %2569 = vmatpush1.msra.mxu0 0.0
    %2570 = vmatprep.subr.mxu0 0.0
    %2571 = vmatpush1.msra.mxu0 0.0
    %2572 = vmatprep.subr.mxu0 0.0
    %2573 = vmatpush1.msra.mxu0 0.0
    %2574 = vmatprep.subr.mxu0 0.0
    %2575 = vmatpush1.msra.mxu0 0.0
    %2576 = vmatprep.subr.mxu0 0.0
    %2577 = vmatpush1.msra.mxu0 0.0
    %2578 = vmatprep.subr.mxu0 0.0
    %2579 = vmatpush1.msra.mxu0 0.0
    %2580 = vmatprep.subr.mxu0 0.0
    %2581 = vmatpush1.msra.mxu0 0.0
    %2582 = vmatprep.subr.mxu0 0.0
    %2583 = vmatpush1.msra.mxu0 0.0
    %2584 = vmatprep.subr.mxu0 0.0
    %2585 = vmatpush1.msra.mxu0 0.0
    %2586 = vmatprep.subr.mxu0 0.0
    %2587 = vmatpush1.msra.mxu0 0.0
    %2588 = vmatprep.subr.mxu0 0.0
    %2589 = vmatpush1.msra.mxu0 0.0
    %2590 = vmatprep.subr.mxu0 0.0
    %2591 = vmatpush1.msra.mxu0 0.0
    %2592 = vmatprep.subr.mxu0 0.0
    %2593 = vmatpush1.msra.mxu0 0.0
    %2594 = vmatprep.subr.mxu0 0.0
    %2595 = vmatpush1.msra.mxu0 0.0
    %2596 = vmatprep.subr.mxu0 0.0
    %2597 = vmatpush1.msra.mxu0 0.0
    %2598 = vmatprep.subr.mxu0 0.0
    %2599 = vmatpush1.msra.mxu0 0.0
    %2600 = vmatprep.subr.mxu0 0.0
    %2601 = vmatpush1.msra.mxu0 0.0
    %2602 = vmatprep.subr.mxu0 0.0
    %2603 = vmatpush1.msra.mxu0 0.0
    %2604 = vmatprep.mubr.f32.mxu0 0.0
    %2605 = vmatmul.mubr.f32.gmra.mrb[0].mxu0 %v2538
    %v2606 = vpop.f32.mrb[0].mxu0
    %v2607 = vadd.f32 0.0, %v2606
    %v2608 = vpop.f32.mrb[0].mxu0
    %2609 = vdwg.mxu0
    %v2611 = vsel %vm312, %v2534, 0
    %v2614 = vsel %vm312, %v2607, 0
    %2616 = vmatprep.subr.mxu0 0.0
    %2617 = vmatpush1.msra.mxu0 %v1436
    %2618 = vmatprep.subr.mxu0 0.0
    %2619 = vmatpush1.msra.mxu0 %v1437
    %2620 = vmatprep.subr.mxu0 0.0
    %2621 = vmatpush1.msra.mxu0 0.0
    %2622 = vmatprep.subr.mxu0 0.0
    %2623 = vmatpush1.msra.mxu0 0.0
    %2624 = vmatprep.subr.mxu0 0.0
    %2625 = vmatpush1.msra.mxu0 0.0
    %2626 = vmatprep.subr.mxu0 0.0
    %2627 = vmatpush1.msra.mxu0 0.0
    %2628 = vmatprep.subr.mxu0 0.0
    %2629 = vmatpush1.msra.mxu0 0.0
    %2630 = vmatprep.subr.mxu0 0.0
    %2631 = vmatpush1.msra.mxu0 0.0
    %2632 = vmatprep.subr.mxu0 0.0
    %2633 = vmatpush1.msra.mxu0 0.0
    %2634 = vmatprep.subr.mxu0 0.0
    %2635 = vmatpush1.msra.mxu0 0.0
    %2636 = vmatprep.subr.mxu0 0.0
    %2637 = vmatpush1.msra.mxu0 0.0
    %2638 = vmatprep.subr.mxu0 0.0
    %2639 = vmatpush1.msra.mxu0 0.0
    %2640 = vmatprep.subr.mxu0 0.0
    %2641 = vmatpush1.msra.mxu0 0.0
    %2642 = vmatprep.subr.mxu0 0.0
    %2643 = vmatpush1.msra.mxu0 0.0
    %2644 = vmatprep.subr.mxu0 0.0
    %2645 = vmatpush1.msra.mxu0 0.0
    %2646 = vmatprep.subr.mxu0 0.0
    %2647 = vmatpush1.msra.mxu0 0.0
    %2648 = vmatprep.subr.mxu0 0.0
    %2649 = vmatpush1.msra.mxu0 0.0
    %2650 = vmatprep.subr.mxu0 0.0
    %2651 = vmatpush1.msra.mxu0 0.0
    %2652 = vmatprep.subr.mxu0 0.0
    %2653 = vmatpush1.msra.mxu0 0.0
    %2654 = vmatprep.subr.mxu0 0.0
    %2655 = vmatpush1.msra.mxu0 0.0
    %2656 = vmatprep.subr.mxu0 0.0
    %2657 = vmatpush1.msra.mxu0 0.0
    %2658 = vmatprep.subr.mxu0 0.0
    %2659 = vmatpush1.msra.mxu0 0.0
    %2660 = vmatprep.subr.mxu0 0.0
    %2661 = vmatpush1.msra.mxu0 0.0
    %2662 = vmatprep.subr.mxu0 0.0
    %2663 = vmatpush1.msra.mxu0 0.0
    %2664 = vmatprep.subr.mxu0 0.0
    %2665 = vmatpush1.msra.mxu0 0.0
    %2666 = vmatprep.subr.mxu0 0.0
    %2667 = vmatpush1.msra.mxu0 0.0
    %2668 = vmatprep.subr.mxu0 0.0
    %2669 = vmatpush1.msra.mxu0 0.0
    %2670 = vmatprep.subr.mxu0 0.0
    %2671 = vmatpush1.msra.mxu0 0.0
    %2672 = vmatprep.subr.mxu0 0.0
    %2673 = vmatpush1.msra.mxu0 0.0
    %2674 = vmatprep.subr.mxu0 0.0
    %2675 = vmatpush1.msra.mxu0 0.0
    %2676 = vmatprep.subr.mxu0 0.0
    %2677 = vmatpush1.msra.mxu0 0.0
    %2678 = vmatprep.subr.mxu0 0.0
    %2679 = vmatpush1.msra.mxu0 0.0
    %2680 = vmatprep.mubr.f32.mxu0 0.0
    %2681 = vmatmul.mubr.f32.gmra.mrb[0].mxu0 %v2611
    %v2682 = vpop.f32.mrb[0].mxu0
    %v2683 = vadd.f32 0.0, %v2682
    %v2684 = vpop.f32.mrb[0].mxu0
    %2685 = vmatprep.mubr.f32.mxu0 0.0
    %2686 = vmatmul.mubr.f32.gmra.mrb[0].mxu0 %v2614
    %v2687 = vpop.f32.mrb[0].mxu0
    %v2688 = vadd.f32 0.0, %v2687
    %v2689 = vpop.f32.mrb[0].mxu0
    %2690 = vdwg.mxu0
    %v2692 = vsel %vm312, %v1954, 0
    %v2695 = vsel %vm312, %v2027, 0
    %2697 = vmatprep.subr.mxu0 0.0
    %2698 = vmatpush1.msra.mxu0 %v1434
    %2699 = vmatprep.subr.mxu0 0.0
    %2700 = vmatpush1.msra.mxu0 %v1435
    %2701 = vmatprep.subr.mxu0 0.0
    %2702 = vmatpush1.msra.mxu0 0.0
    %2703 = vmatprep.subr.mxu0 0.0
    %2704 = vmatpush1.msra.mxu0 0.0
    %2705 = vmatprep.subr.mxu0 0.0
    %2706 = vmatpush1.msra.mxu0 0.0
    %2707 = vmatprep.subr.mxu0 0.0
    %2708 = vmatpush1.msra.mxu0 0.0
    %2709 = vmatprep.subr.mxu0 0.0
    %2710 = vmatpush1.msra.mxu0 0.0
    %2711 = vmatprep.subr.mxu0 0.0
    %2712 = vmatpush1.msra.mxu0 0.0
    %2713 = vmatprep.subr.mxu0 0.0
    %2714 = vmatpush1.msra.mxu0 0.0
    %2715 = vmatprep.subr.mxu0 0.0
    %2716 = vmatpush1.msra.mxu0 0.0
    %2717 = vmatprep.subr.mxu0 0.0
    %2718 = vmatpush1.msra.mxu0 0.0
    %2719 = vmatprep.subr.mxu0 0.0
    %2720 = vmatpush1.msra.mxu0 0.0
    %2721 = vmatprep.subr.mxu0 0.0
    %2722 = vmatpush1.msra.mxu0 0.0
    %2723 = vmatprep.subr.mxu0 0.0
    %2724 = vmatpush1.msra.mxu0 0.0
    %2725 = vmatprep.subr.mxu0 0.0
    %2726 = vmatpush1.msra.mxu0 0.0
    %2727 = vmatprep.subr.mxu0 0.0
    %2728 = vmatpush1.msra.mxu0 0.0
    %2729 = vmatprep.subr.mxu0 0.0
    %2730 = vmatpush1.msra.mxu0 0.0
    %2731 = vmatprep.subr.mxu0 0.0
    %2732 = vmatpush1.msra.mxu0 0.0
    %2733 = vmatprep.subr.mxu0 0.0
    %2734 = vmatpush1.msra.mxu0 0.0
    %2735 = vmatprep.subr.mxu0 0.0
    %2736 = vmatpush1.msra.mxu0 0.0
    %2737 = vmatprep.subr.mxu0 0.0
    %2738 = vmatpush1.msra.mxu0 0.0
    %2739 = vmatprep.subr.mxu0 0.0
    %2740 = vmatpush1.msra.mxu0 0.0
    %2741 = vmatprep.subr.mxu0 0.0
    %2742 = vmatpush1.msra.mxu0 0.0
    %2743 = vmatprep.subr.mxu0 0.0
    %2744 = vmatpush1.msra.mxu0 0.0
    %2745 = vmatprep.subr.mxu0 0.0
    %2746 = vmatpush1.msra.mxu0 0.0
    %2747 = vmatprep.subr.mxu0 0.0
    %2748 = vmatpush1.msra.mxu0 0.0
    %2749 = vmatprep.subr.mxu0 0.0
    %2750 = vmatpush1.msra.mxu0 0.0
    %2751 = vmatprep.subr.mxu0 0.0
    %2752 = vmatpush1.msra.mxu0 0.0
    %2753 = vmatprep.subr.mxu0 0.0
    %2754 = vmatpush1.msra.mxu0 0.0
    %2755 = vmatprep.subr.mxu0 0.0
    %2756 = vmatpush1.msra.mxu0 0.0
    %2757 = vmatprep.subr.mxu0 0.0
    %2758 = vmatpush1.msra.mxu0 0.0
    %2759 = vmatprep.subr.mxu0 0.0
    %2760 = vmatpush1.msra.mxu0 0.0
    %2761 = vmatprep.mubr.f32.mxu0 0.0
    %2762 = vmatmul.mubr.f32.gmra.mrb[0].mxu0 %v2692
    %v2763 = vpop.f32.mrb[0].mxu0
    %v2764 = vadd.f32 %v2683, %v2763
    %v2765 = vpop.f32.mrb[0].mxu0
    %2766 = vmatprep.mubr.f32.mxu0 0.0
    %2767 = vmatmul.mubr.f32.gmra.mrb[0].mxu0 %v2695
    %v2768 = vpop.f32.mrb[0].mxu0
    %v2769 = vadd.f32 %v2688, %v2768
    %v2770 = vpop.f32.mrb[0].mxu0
    %2771 = vdwg.mxu0
    %v2772 = vld [vmem:[%s4 + $0xf] sm:$0x1]
    %v2774 = vlaneseq
    %v2775 = vshrl.u32 %v2774, 7
    %v2776 = vsub.s32 0, %v2775
    %v2777 = vrot.slane %v2772, %v2776
    %v2779 = vadd.f32 %v2764, %v2777
    %v2780 = vadd.f32 %v2769, %v2777
    %v2781 = vadd.f32 %v2779, %v1432
    %v2782 = vadd.f32 %v2780, %v1433
    %v2783 = vld [vmem:[%s4 + $0x10] sm:$0x1]
    %v2784 = vld [vmem:[%s4 + $0x11] sm:$0x1]
    %v2785 = vsel %vm58, %v2781, 0.0
    %2786 = vadd.xlane.f32.xlu0 %v2785
    %v2787 = vpop.xlane.xlu0 %2786
    %v2788 = vsel %vm58, %v2782, 0.0
    %2789 = vadd.xlane.f32.xlu0 %v2788
    %v2790 = vpop.xlane.xlu0 %2789
    %v2791 = vmul.f32 %v2787, %v1397
    %v2792 = vmul.f32 %v2790, %v1397
    %v2793 = vsub.f32 %v2781, %v2791
    %v2794 = vsub.f32 %v2782, %v2792
    %v2795 = vmul.f32 %v2793, %v2793
    %v2796 = vmul.f32 %v2794, %v2794
    %v2797 = vsel %vm58, %v2795, 0.0
    %2798 = vadd.xlane.f32.xlu0 %v2797
    %v2799 = vpop.xlane.xlu0 %2798
    %v2800 = vsel %vm58, %v2796, 0.0
    %2801 = vadd.xlane.f32.xlu0 %v2800
    %v2802 = vpop.xlane.xlu0 %2801
    %v2803 = vmul.f32 %v2799, %v1397
    %v2804 = vmul.f32 %v2802, %v1397
    %v2805 = vadd.f32 %v2803, 1e-05
    %v2806 = vadd.f32 %v2804, 1e-05
    %v2807 = vrsqrt.pop %v2805
    %v2808 = vrsqrt.pop %v2806
    %v2809 = vmul.f32 %v2793, %v2807
    %v2810 = vmul.f32 %v2794, %v2808
    %v2812 = vlaneseq
    %v2813 = vshrl.u32 %v2812, 7
    %v2814 = vsub.s32 0, %v2813
    %v2815 = vrot.slane %v2783, %v2814
    %v2817 = vmul.f32 %v2809, %v2815
    %v2818 = vmul.f32 %v2810, %v2815
    %v2820 = vlaneseq
    %v2821 = vshrl.u32 %v2820, 7
    %v2822 = vsub.s32 0, %v2821
    %v2823 = vrot.slane %v2784, %v2822
    %v2825 = vadd.f32 %v2817, %v2823
    %v2826 = vadd.f32 %v2818, %v2823
    %v2827 = vld [vmem:[#allocation2 + $0x70] sm:$0xff]
    %v2828 = vld [vmem:[#allocation2 + $0xe8] sm:$0xff]
    %v2829 = vld [vmem:[#allocation2 + $0x160] sm:$0xff]
    %v2830 = vld [vmem:[#allocation2 + $0x1d8] sm:$0xff]
    %v2831 = vld [vmem:[%s4 + $0x12] sm:$0x1]
    %v2833 = vlaneseq
    %v2834 = vshrl.u32 %v2833, 7
    %v2835 = vsub.s32 0, %v2834
    %v2836 = vrot.slane %v2831, %v2835
    %v2839 = vsel %vm58, %v2825, 0
    %v2842 = vsel %vm58, %v2826, 0
    %2844 = vmatprep.subr.mxu0 0.0
    %2845 = vmatpush1.msra.mxu0 %v2827
    %2846 = vmatprep.subr.mxu0 0.0
    %2847 = vmatpush1.msra.mxu0 %v2828
    %2848 = vmatprep.subr.mxu0 0.0
    %2849 = vmatpush1.msra.mxu0 %v2829
    %2850 = vmatprep.subr.mxu0 0.0
    %2851 = vmatpush1.msra.mxu0 %v2830
    %2852 = vmatprep.subr.mxu0 0.0
    %2853 = vmatpush1.msra.mxu0 0.0
    %2854 = vmatprep.subr.mxu0 0.0
    %2855 = vmatpush1.msra.mxu0 0.0
    %2856 = vmatprep.subr.mxu0 0.0
    %2857 = vmatpush1.msra.mxu0 0.0
    %2858 = vmatprep.subr.mxu0 0.0
    %2859 = vmatpush1.msra.mxu0 0.0
    %2860 = vmatprep.subr.mxu0 0.0
    %2861 = vmatpush1.msra.mxu0 0.0
    %2862 = vmatprep.subr.mxu0 0.0
    %2863 = vmatpush1.msra.mxu0 0.0
    %2864 = vmatprep.subr.mxu0 0.0
    %2865 = vmatpush1.msra.mxu0 0.0
    %2866 = vmatprep.subr.mxu0 0.0
    %2867 = vmatpush1.msra.mxu0 0.0
    %2868 = vmatprep.subr.mxu0 0.0
    %2869 = vmatpush1.msra.mxu0 0.0
    %2870 = vmatprep.subr.mxu0 0.0
    %2871 = vmatpush1.msra.mxu0 0.0
    %2872 = vmatprep.subr.mxu0 0.0
    %2873 = vmatpush1.msra.mxu0 0.0
    %2874 = vmatprep.subr.mxu0 0.0
    %2875 = vmatpush1.msra.mxu0 0.0
    %2876 = vmatprep.subr.mxu0 0.0
    %2877 = vmatpush1.msra.mxu0 0.0
    %2878 = vmatprep.subr.mxu0 0.0
    %2879 = vmatpush1.msra.mxu0 0.0
    %2880 = vmatprep.subr.mxu0 0.0
    %2881 = vmatpush1.msra.mxu0 0.0
    %2882 = vmatprep.subr.mxu0 0.0
    %2883 = vmatpush1.msra.mxu0 0.0
    %2884 = vmatprep.subr.mxu0 0.0
    %2885 = vmatpush1.msra.mxu0 0.0
    %2886 = vmatprep.subr.mxu0 0.0
    %2887 = vmatpush1.msra.mxu0 0.0
    %2888 = vmatprep.subr.mxu0 0.0
    %2889 = vmatpush1.msra.mxu0 0.0
    %2890 = vmatprep.subr.mxu0 0.0
    %2891 = vmatpush1.msra.mxu0 0.0
    %2892 = vmatprep.subr.mxu0 0.0
    %2893 = vmatpush1.msra.mxu0 0.0
    %2894 = vmatprep.subr.mxu0 0.0
    %2895 = vmatpush1.msra.mxu0 0.0
    %2896 = vmatprep.subr.mxu0 0.0
    %2897 = vmatpush1.msra.mxu0 0.0
    %2898 = vmatprep.subr.mxu0 0.0
    %2899 = vmatpush1.msra.mxu0 0.0
    %2900 = vmatprep.subr.mxu0 0.0
    %2901 = vmatpush1.msra.mxu0 0.0
    %2902 = vmatprep.subr.mxu0 0.0
    %2903 = vmatpush1.msra.mxu0 0.0
    %2904 = vmatprep.subr.mxu0 0.0
    %2905 = vmatpush1.msra.mxu0 0.0
    %2906 = vmatprep.subr.mxu0 0.0
    %2907 = vmatpush1.msra.mxu0 0.0
    %2908 = vmatprep.mubr.f32.mxu0 0.0
    %2909 = vmatmul.mubr.f32.gmra.mrb[0].mxu0 %v2839
    %v2910 = vpop.f32.mrb[0].mxu0
    %v2911 = vadd.f32 %v2836, %v2910
    %v2912 = vpop.f32.mrb[0].mxu0
    %2913 = vmatprep.mubr.f32.mxu0 0.0
    %2914 = vmatmul.mubr.f32.gmra.mrb[0].mxu0 %v2842
    %v2915 = vpop.f32.mrb[0].mxu0
    %v2916 = vadd.f32 %v2836, %v2915
    %v2917 = vpop.f32.mrb[0].mxu0
    %2918 = vdwg.mxu0
    %v2919 = vmax.f32 %v2911, 0.0
    %v2920 = vmax.f32 %v2916, 0.0
    %v2921 = vld [vmem:[%s3] sm:$0xff]
    %v2922 = vld [vmem:[%s3 + $0x8] sm:$0xff]
    %v2923 = vld [vmem:[%s3 + $0x10] sm:$0xff]
    %v2924 = vld [vmem:[%s3 + $0x18] sm:$0xff]
    %v2925 = vld [vmem:[%s3 + $0x20] sm:$0xff]
    %v2926 = vld [vmem:[%s3 + $0x28] sm:$0xff]
    %v2927 = vld [vmem:[%s3 + $0x30] sm:$0xff]
    %v2928 = vld [vmem:[%s3 + $0x38] sm:$0xff]
    %v2929 = vld [vmem:[%s4 + $0x13] sm:$0x1]
    %v2931 = vlaneseq
    %v2932 = vshrl.u32 %v2931, 7
    %v2933 = vsub.s32 0, %v2932
    %v2934 = vrot.slane %v2929, %v2933
    %vm2936 = vcmask 523264
    %v2938 = vsel %vm2936, %v2919, 0
    %v2941 = vsel %vm2936, %v2920, 0
    %2943 = vmatprep.subr.mxu0 0.0
    %2944 = vmatpush1.msra.mxu0 %v2921
    %2945 = vmatprep.subr.mxu0 0.0
    %2946 = vmatpush1.msra.mxu0 %v2922
    %2947 = vmatprep.subr.mxu0 0.0
    %2948 = vmatpush1.msra.mxu0 %v2923
    %2949 = vmatprep.subr.mxu0 0.0
    %2950 = vmatpush1.msra.mxu0 %v2924
    %2951 = vmatprep.subr.mxu0 0.0
    %2952 = vmatpush1.msra.mxu0 %v2925
    %2953 = vmatprep.subr.mxu0 0.0
    %2954 = vmatpush1.msra.mxu0 %v2926
    %2955 = vmatprep.subr.mxu0 0.0
    %2956 = vmatpush1.msra.mxu0 %v2927
    %2957 = vmatprep.subr.mxu0 0.0
    %2958 = vmatpush1.msra.mxu0 %v2928
    %2959 = vmatprep.subr.mxu0 0.0
    %2960 = vmatpush1.msra.mxu0 0.0
    %2961 = vmatprep.subr.mxu0 0.0
    %2962 = vmatpush1.msra.mxu0 0.0
    %2963 = vmatprep.subr.mxu0 0.0
    %2964 = vmatpush1.msra.mxu0 0.0
    %2965 = vmatprep.subr.mxu0 0.0
    %2966 = vmatpush1.msra.mxu0 0.0
    %2967 = vmatprep.subr.mxu0 0.0
    %2968 = vmatpush1.msra.mxu0 0.0
    %2969 = vmatprep.subr.mxu0 0.0
    %2970 = vmatpush1.msra.mxu0 0.0
    %2971 = vmatprep.subr.mxu0 0.0
    %2972 = vmatpush1.msra.mxu0 0.0
    %2973 = vmatprep.subr.mxu0 0.0
    %2974 = vmatpush1.msra.mxu0 0.0
    %2975 = vmatprep.subr.mxu0 0.0
    %2976 = vmatpush1.msra.mxu0 0.0
    %2977 = vmatprep.subr.mxu0 0.0
    %2978 = vmatpush1.msra.mxu0 0.0
    %2979 = vmatprep.subr.mxu0 0.0
    %2980 = vmatpush1.msra.mxu0 0.0
    %2981 = vmatprep.subr.mxu0 0.0
    %2982 = vmatpush1.msra.mxu0 0.0
    %2983 = vmatprep.subr.mxu0 0.0
    %2984 = vmatpush1.msra.mxu0 0.0
    %2985 = vmatprep.subr.mxu0 0.0
    %2986 = vmatpush1.msra.mxu0 0.0
    %2987 = vmatprep.subr.mxu0 0.0
    %2988 = vmatpush1.msra.mxu0 0.0
    %2989 = vmatprep.subr.mxu0 0.0
    %2990 = vmatpush1.msra.mxu0 0.0
    %2991 = vmatprep.subr.mxu0 0.0
    %2992 = vmatpush1.msra.mxu0 0.0
    %2993 = vmatprep.subr.mxu0 0.0
    %2994 = vmatpush1.msra.mxu0 0.0
    %2995 = vmatprep.subr.mxu0 0.0
    %2996 = vmatpush1.msra.mxu0 0.0
    %2997 = vmatprep.subr.mxu0 0.0
    %2998 = vmatpush1.msra.mxu0 0.0
    %2999 = vmatprep.subr.mxu0 0.0
    %3000 = vmatpush1.msra.mxu0 0.0
    %3001 = vmatprep.subr.mxu0 0.0
    %3002 = vmatpush1.msra.mxu0 0.0
    %3003 = vmatprep.subr.mxu0 0.0
    %3004 = vmatpush1.msra.mxu0 0.0
    %3005 = vmatprep.subr.mxu0 0.0
    %3006 = vmatpush1.msra.mxu0 0.0
    %3007 = vmatprep.mubr.f32.mxu0 0.0
    %3008 = vmatmul.mubr.f32.gmra.mrb[0].mxu0 %v2938
    %v3009 = vpop.f32.mrb[0].mxu0
    %v3010 = vadd.f32 %v2934, %v3009
    %v3011 = vpop.f32.mrb[0].mxu0
    %3012 = vmatprep.mubr.f32.mxu0 0.0
    %3013 = vmatmul.mubr.f32.gmra.mrb[0].mxu0 %v2941
    %v3014 = vpop.f32.mrb[0].mxu0
    %v3015 = vadd.f32 %v2934, %v3014
    %v3016 = vpop.f32.mrb[0].mxu0
    %3017 = vdwg.mxu0
    %v3018 = vadd.f32 %v3010, %v2825
    %v3019 = vadd.f32 %v3015, %v2826
    %v3020 = vld [vmem:[%s4 + $0x14] sm:$0x1]
    %v3021 = vld [vmem:[%s4 + $0x15] sm:$0x1]
    %v3022 = vsel %vm58, %v3018, 0.0
    %3023 = vadd.xlane.f32.xlu0 %v3022
    %v3024 = vpop.xlane.xlu0 %3023
    %v3025 = vsel %vm58, %v3019, 0.0
    %3026 = vadd.xlane.f32.xlu0 %v3025
    %v3027 = vpop.xlane.xlu0 %3026
    %v3028 = vmul.f32 %v3024, %v1397
    %v3029 = vmul.f32 %v3027, %v1397
    %v3030 = vsub.f32 %v3018, %v3028
    %v3031 = vsub.f32 %v3019, %v3029
    %v3032 = vmul.f32 %v3030, %v3030
    %v3033 = vmul.f32 %v3031, %v3031
    %v3034 = vsel %vm58, %v3032, 0.0
    %3035 = vadd.xlane.f32.xlu0 %v3034
    %v3036 = vpop.xlane.xlu0 %3035
    %v3037 = vsel %vm58, %v3033, 0.0
    %3038 = vadd.xlane.f32.xlu0 %v3037
    %v3039 = vpop.xlane.xlu0 %3038
    %v3040 = vmul.f32 %v3036, %v1397
    %v3041 = vmul.f32 %v3039, %v1397
    %v3042 = vadd.f32 %v3040, 1e-05
    %v3043 = vadd.f32 %v3041, 1e-05
    %v3044 = vrsqrt.pop %v3042
    %v3045 = vrsqrt.pop %v3043
    %v3046 = vmul.f32 %v3030, %v3044
    %v3047 = vmul.f32 %v3031, %v3045
    %v3049 = vlaneseq
    %v3050 = vshrl.u32 %v3049, 7
    %v3051 = vsub.s32 0, %v3050
    %v3052 = vrot.slane %v3020, %v3051
    %v3054 = vmul.f32 %v3046, %v3052
    %v3055 = vmul.f32 %v3047, %v3052
    %v3057 = vlaneseq
    %v3058 = vshrl.u32 %v3057, 7
    %v3059 = vsub.s32 0, %v3058
    %v3060 = vrot.slane %v3021, %v3059
    %v3062 = vadd.f32 %v3054, %v3060
    %v3063 = vadd.f32 %v3055, %v3060
    %3064 = vst.msk [vmem:[#allocation5] sm:$0xff] %vm58, %v3062
    %3065 = vst.msk [vmem:[#allocation5 + $0x8] sm:$0xff] %vm58, %v3063
    %3066 = vst.msk [vmem:[#allocation6] sm:$0xff] %vm467, %v1068
    %3067 = vst.msk [vmem:[#allocation6 + $0x8] sm:$0xff] %vm467, %v1069
    %3068 = vst.msk [vmem:[#allocation8] sm:$0xff] %vm467, %v2462
    %3069 = vst.msk [vmem:[#allocation8 + $0x8] sm:$0xff] %vm467, %v2463
    // Predicated region
    $region26: #{tpu_custom_call.1} parent=1 // pred_check
      _
    $region27: #{tpu_custom_call.1} parent=1 // pred_check_branch
      %3071 = sbr.rel (0) target = $region29
    $region28: #{tpu_custom_call.1} parent=1 // pred_region
      %s3073 = ssub.s32 256, 256
      %3074 = vsyncadd [#allocation4], %s3073
      %s3075 = sshll.u32 [#allocation5], 4
      %s3076 = int_to_ptr.vmem [resolvable:$true] %s3075
      %3081 = dma.vmem_to_hbm [thread:$0]  %s3076, 256, %s5, [#allocation4], 128, 128, 8
    $region29: #{tpu_custom_call.1} parent=1 // pred_fallthru
      _
    // Predicated region
    $region30: #{tpu_custom_call.1} parent=1 // pred_check
      _
    $region31: #{tpu_custom_call.1} parent=1 // pred_check_branch
      %3083 = sbr.rel (0) target = $region33
    $region32: #{tpu_custom_call.1} parent=1 // pred_region
      %s3085 = ssub.s32 256, 256
      %3086 = vsyncadd [#allocation7], %s3085
      %s3087 = sshll.u32 [#allocation6], 4
      %s3088 = int_to_ptr.vmem [resolvable:$true] %s3087
      %3093 = dma.vmem_to_hbm [thread:$0]  %s3088, 256, %s6, [#allocation7], 128, 128, 8
    $region33: #{tpu_custom_call.1} parent=1 // pred_fallthru
      _
    // Predicated region
    $region34: #{tpu_custom_call.1} parent=1 // pred_check
      _
    $region35: #{tpu_custom_call.1} parent=1 // pred_check_branch
      %3095 = sbr.rel (0) target = $region37
    $region36: #{tpu_custom_call.1} parent=1 // pred_region
      %s3097 = ssub.s32 256, 256
      %3098 = vsyncadd [#allocation7], %s3097
      %s3099 = sshll.u32 [#allocation8], 4
      %s3100 = int_to_ptr.vmem [resolvable:$true] %s3099
      %3105 = dma.vmem_to_hbm [thread:$0]  %s3100, 256, %s7, [#allocation7], 128, 128, 8
    $region37: #{tpu_custom_call.1} parent=1 // pred_fallthru
      _
    // Predicated region
    $region38: #{tpu_custom_call.1} parent=1 // pred_check
      _
    $region39: #{tpu_custom_call.1} parent=1 // pred_check_branch
      %3107 = sbr.rel (0) target = $region41
    $region40: #{tpu_custom_call.1} parent=1 // pred_region
      %3108 = dma.done [#allocation4], 256
    $region41: #{tpu_custom_call.1} parent=1 // pred_fallthru
      _
    // Predicated region
    $region42: #{tpu_custom_call.1} parent=1 // pred_check
      _
    $region43: #{tpu_custom_call.1} parent=1 // pred_check_branch
      %3110 = sbr.rel (0) target = $region45
    $region44: #{tpu_custom_call.1} parent=1 // pred_region
      %3111 = dma.done [#allocation7], 256
    $region45: #{tpu_custom_call.1} parent=1 // pred_fallthru
      _
    // Predicated region
    $region46: #{tpu_custom_call.1} parent=1 // pred_check
      _
    $region47: #{tpu_custom_call.1} parent=1 // pred_check_branch
      %3113 = sbr.rel (0) target = $region49
    $region48: #{tpu_custom_call.1} parent=1 // pred_region
      %3114 = dma.done [#allocation7], 256
    $region49: #{tpu_custom_call.1} parent=1 // pred_fallthru
      _
    %3115 = vsyncpa [#allocation3], 1
    %3116 = vsyncpa [#allocation4], 1
    %3117 = vsyncpa [#allocation7], 1

</llo_original>
